<compile_context>
chip_gen: v5e
topology: v5e:2x2
jax: 0.10.0
libtpu: 0.0.40
codegen_flags: <defaults>
</compile_context>

<pallas_src>
import functools

import jax
import jax.numpy as jnp
import numpy as np
from jax import lax
from jax.experimental import pallas as pl
from jax.experimental.pallas import tpu as pltpu

_LANE = 128
_BN_EPS = 1e-5


def _round_up(x, m):
    return ((x + m - 1) // m) * m


def _pad_last(a, target):
    pad = target - a.shape[-1]
    if pad == 0:
        return a
    cfg = [(0, 0)] * (a.ndim - 1) + [(0, pad)]
    return jnp.pad(a, cfg)


def _prep_weight(w_hwio, cin_pad, cout_pad, dtype):
    """(3,3,Cin,Cout) HWIO -> zero-padded, flattened (9*Cin_pad, Cout_pad).

    Row order (kh, kw, cin) matches the im2col column order built in-kernel.
    """
    kh, kw, cin, cout = w_hwio.shape
    w = jnp.pad(w_hwio, ((0, 0), (0, 0), (0, cin_pad - cin), (0, cout_pad - cout)))
    return w.reshape(kh * kw * cin_pad, cout_pad).astype(dtype)


# ---------------------------------------------------------------------------
# Kernel 1: fused conv_io + conv_ih (+ per-batch BN partial stats of t_ih).
#   One batch element per grid step. The SAME-conv halo is built in a VMEM
#   scratch (zero borders), then a single im2col matmul per weight.
#
#   x_ref   : (1, H, W, Cin)        original (unpadded-channel) input tile
#   wio_ref : (9*Cp, Cq)            flattened conv_io weight (lane-dense)
#   wih_ref : (9*Cp, Cq)            flattened conv_ih weight
#   tio_ref : (1, H, W, Cq)         conv_io(t)
#   tih_ref : (1, H, W, Cq)         conv_ih(t)
#   st_ref  : (1, 2, Cq)            per-batch [sum, sum of squares] of t_ih
#   xpad_ref: (H+2, W+2, Cp) VMEM   halo scratch, compute dtype
# ---------------------------------------------------------------------------
def conv_dual_kernel(x_ref, wio_ref, wih_ref, tio_ref, tih_ref, st_ref,
                     xpad_ref, *, compute_dtype):
    H, W, Cq = tio_ref.shape[1], tio_ref.shape[2], tio_ref.shape[3]
    Cin = x_ref.shape[3]
    Cp = xpad_ref.shape[2]

    # Zero-filled halo (and channel-pad) scratch; interior gets the input.
    # Re-zeroed every step so the kernel is safe under megacore grid sharding.
    xpad_ref[...] = jnp.zeros_like(xpad_ref)
    xpad_ref[1:H + 1, 1:W + 1, 0:Cin] = x_ref[0].astype(compute_dtype)

    # im2col: one (H*W, 9*Cp) patch slab -> single MXU matmul per weight
    # (K = 9*Cp instead of 9 separate K = Cin matmuls).
    cols = [
        xpad_ref[kh:kh + H, kw:kw + W, :].reshape(H * W, Cp)
        for kh in range(3) for kw in range(3)
    ]
    patches = jnp.concatenate(cols, axis=1)

    y_io = jnp.dot(patches, wio_ref[...], preferred_element_type=jnp.float32)
    y_ih = jnp.dot(patches, wih_ref[...], preferred_element_type=jnp.float32)

    tio_ref[0] = y_io.reshape(H, W, Cq).astype(tio_ref.dtype)
    tih_ref[0] = y_ih.reshape(H, W, Cq).astype(tih_ref.dtype)

    # Per-batch BN partial statistics (fp32), reduced across batch in wrapper.
    st_ref[0] = jnp.concatenate(
        [jnp.sum(y_ih, axis=0, keepdims=True),
         jnp.sum(y_ih * y_ih, axis=0, keepdims=True)],
        axis=0)


# ---------------------------------------------------------------------------
# Kernel 2: fused BN-apply + ReLU + conv_ho + residual add.
#   scale/bias are precomputed per-channel (gamma*rsqrt(var+eps), beta-mean*scale).
#
#   tih_ref  : (1, H, W, Cq)
#   tio_ref  : (1, H, W, Cq)   residual (conv_io output)
#   scale_ref: (1, Cq) fp32
#   bias_ref : (1, Cq) fp32
#   who_ref  : (9*Cq, Cq)
#   out_ref  : (1, H, W, Cq)
#   hpad_ref : (H+2, W+2, Cq) VMEM halo scratch, compute dtype
# ---------------------------------------------------------------------------
def conv_ho_fused_kernel(tih_ref, tio_ref, scale_ref, bias_ref, who_ref,
                         out_ref, hpad_ref, *, compute_dtype):
    H, W, Cq = out_ref.shape[1], out_ref.shape[2], out_ref.shape[3]

    # BN apply + ReLU in fp32 (VPU), then cast once for the MXU.
    h = jnp.maximum(tih_ref[0] * scale_ref[...] + bias_ref[...], 0.0)

    hpad_ref[...] = jnp.zeros_like(hpad_ref)
    hpad_ref[1:H + 1, 1:W + 1, :] = h.astype(compute_dtype)

    cols = [
        hpad_ref[kh:kh + H, kw:kw + W, :].reshape(H * W, Cq)
        for kh in range(3) for kw in range(3)
    ]
    patches = jnp.concatenate(cols, axis=1)
    y = jnp.dot(patches, who_ref[...], preferred_element_type=jnp.float32)

    out_ref[0] = (y.reshape(H, W, Cq) + tio_ref[0]).astype(out_ref.dtype)


# ---------------------------------------------------------------------------
# BaseBlock forward
# ---------------------------------------------------------------------------
@functools.partial(jax.jit, static_argnames=("compute_dtype",))
def base_block_forward(x_nchw, params, compute_dtype=jnp.bfloat16):
    # TODO(synk): stride > 1 (module constructor arg) is not implemented; only
    # the default stride=1 path is supported.
    N, Cin, H, W = x_nchw.shape
    Cout = params["w_io"].shape[-1]
    Cp = _round_up(Cin, _LANE)    # lane-dense padded input channels
    Cq = _round_up(Cout, _LANE)   # lane-dense padded output channels

    x = jnp.transpose(x_nchw, (0, 2, 3, 1)).astype(compute_dtype)  # NCHW->NHWC

    w_io = _prep_weight(params["w_io"], Cp, Cq, compute_dtype)
    w_ih = _prep_weight(params["w_ih"], Cp, Cq, compute_dtype)
    w_ho = _prep_weight(params["w_ho"], Cq, Cq, compute_dtype)

    cparams = pltpu.CompilerParams(
        dimension_semantics=("parallel",),
        vmem_limit_bytes=32 * 1024 * 1024,
    )

    # --- pass 1: conv_io + conv_ih + BN partial stats (x read once) ---------
    t_io, t_ih, stats = pl.pallas_call(
        functools.partial(conv_dual_kernel, compute_dtype=compute_dtype),
        out_shape=(
            jax.ShapeDtypeStruct((N, H, W, Cq), jnp.float32),
            jax.ShapeDtypeStruct((N, H, W, Cq), jnp.float32),
            jax.ShapeDtypeStruct((N, 2, Cq), jnp.float32),
        ),
        grid=(N,),
        in_specs=[
            pl.BlockSpec((1, H, W, Cin), lambda n: (n, 0, 0, 0)),
            pl.BlockSpec((9 * Cp, Cq), lambda n: (0, 0)),
            pl.BlockSpec((9 * Cp, Cq), lambda n: (0, 0)),
        ],
        out_specs=(
            pl.BlockSpec((1, H, W, Cq), lambda n: (n, 0, 0, 0)),
            pl.BlockSpec((1, H, W, Cq), lambda n: (n, 0, 0, 0)),
            pl.BlockSpec((1, 2, Cq), lambda n: (n, 0, 0)),
        ),
        scratch_shapes=[pltpu.VMEM((H + 2, W + 2, Cp), compute_dtype)],
        compiler_params=cparams,
    )(x, w_io, w_ih)

    # --- BN stats finalize (tiny per-channel math, done in fp32 in XLA) -----
    # TODO(synk): running_mean/running_var buffer updates (training-mode side
    # effect) are not modeled; they do not affect the forward output.
    count = float(N * H * W)
    s = jnp.sum(stats[:, 0, :], axis=0)
    ss = jnp.sum(stats[:, 1, :], axis=0)
    mean = s / count
    var = jnp.maximum(ss / count - mean * mean, 0.0)   # biased variance
    gamma = _pad_last(params["bn_gamma"].astype(jnp.float32), Cq)
    beta = _pad_last(params["bn_beta"].astype(jnp.float32), Cq)
    scale = gamma * lax.rsqrt(var + _BN_EPS)
    bias = beta - mean * scale
    scale = scale.reshape(1, Cq)
    bias = bias.reshape(1, Cq)

    # --- pass 2: relu(BN(t_ih)) -> conv_ho -> + t_io, all fused --------------
    out = pl.pallas_call(
        functools.partial(conv_ho_fused_kernel, compute_dtype=compute_dtype),
        out_shape=jax.ShapeDtypeStruct((N, H, W, Cq), jnp.float32),
        grid=(N,),
        in_specs=[
            pl.BlockSpec((1, H, W, Cq), lambda n: (n, 0, 0, 0)),  # t_ih
            pl.BlockSpec((1, H, W, Cq), lambda n: (n, 0, 0, 0)),  # t_io (residual)
            pl.BlockSpec((1, Cq), lambda n: (0, 0)),              # scale
            pl.BlockSpec((1, Cq), lambda n: (0, 0)),              # bias
            pl.BlockSpec((9 * Cq, Cq), lambda n: (0, 0)),         # w_ho
        ],
        out_specs=pl.BlockSpec((1, H, W, Cq), lambda n: (n, 0, 0, 0)),
        scratch_shapes=[pltpu.VMEM((H + 2, W + 2, Cq), compute_dtype)],
        compiler_params=cparams,
    )(t_ih, t_io, scale, bias, w_ho)

    out = out[..., :Cout]                                 # drop channel padding
    return jnp.transpose(out, (0, 3, 1, 2))               # NHWC -> NCHW


# ---------------------------------------------------------------------------
# Pure-JAX reference for the correctness check
# ---------------------------------------------------------------------------
def ref_forward(x_nchw, params, eps=_BN_EPS):
    x = jnp.transpose(x_nchw, (0, 2, 3, 1))
    dn = ("NHWC", "HWIO", "NHWC")
    conv = lambda inp, w: lax.conv_general_dilated(inp, w, (1, 1), "SAME",
                                                   dimension_numbers=dn)
    t_io = conv(x, params["w_io"])
    t_ih = conv(x, params["w_ih"])
    mean = jnp.mean(t_ih, axis=(0, 1, 2), keepdims=True)
    var = jnp.mean((t_ih - mean) ** 2, axis=(0, 1, 2), keepdims=True)
    h = jnp.maximum((t_ih - mean) * lax.rsqrt(var + eps) * params["bn_gamma"]
                    + params["bn_beta"], 0.0)
    out = t_io + conv(h, params["w_ho"])
    return jnp.transpose(out, (0, 3, 1, 2))


if __name__ == "__main__":
    key = jax.random.PRNGKey(0)
    k1, k2, k3, k4 = jax.random.split(key, 4)

    N, Cin, Cout, H, W = 2, 4, 8, 16, 16
    x = jax.random.normal(k1, (N, Cin, H, W), jnp.float32)

    # Deterministic parameter init. Conv weights are (kh, kw, Cin, Cout) = HWIO
    # (PyTorch OIHW transposed). BN params use nn.BatchNorm2d default init.
    params = {
        "w_io": jax.random.normal(k2, (3, 3, Cin, Cout), jnp.float32) * 0.1,
        "w_ih": jax.random.normal(k3, (3, 3, Cin, Cout), jnp.float32) * 0.1,
        "w_ho": jax.random.normal(k4, (3, 3, Cout, Cout), jnp.float32) * 0.1,
        "bn_gamma": jnp.ones((Cout,), jnp.float32),
        "bn_beta": jnp.zeros((Cout,), jnp.float32),
    }

    ref = jax.block_until_ready(ref_forward(x, params))

    # fp32 compute path: tight check against the fp32 reference.
    out_f32 = jax.block_until_ready(
        base_block_forward(x, params, compute_dtype=jnp.float32))
    assert out_f32.shape == (N, Cout, H, W), out_f32.shape
    np.testing.assert_allclose(np.asarray(out_f32), np.asarray(ref),
                               atol=2e-2, rtol=2e-2)

    # bf16 MXU-operand path (default): loose tolerance appropriate for bf16
    # inputs/weights vs. an fp32 reference.
    out_bf16 = jax.block_until_ready(
        base_block_forward(x, params, compute_dtype=jnp.bfloat16))
    assert out_bf16.shape == (N, Cout, H, W), out_bf16.shape
    np.testing.assert_allclose(np.asarray(out_bf16), np.asarray(ref),
                               atol=1e-1, rtol=1e-1)

    print("KERNEL_OK")
</pallas_src>

<mosaic_0001>
module attributes {stable_mosaic.version = 11 : i64} {
  func.func @conv_dual_kernel(%arg0: i32, %arg1: memref<1x16x16x4xf32, #tpu.memory_space<vmem>>, %arg2: memref<1152x128xf32, #tpu.memory_space<vmem>>, %arg3: memref<1152x128xf32, #tpu.memory_space<vmem>>, %arg4: memref<1x16x16x128xf32, #tpu.memory_space<vmem>>, %arg5: memref<1x16x16x128xf32, #tpu.memory_space<vmem>>, %arg6: memref<1x2x128xf32, #tpu.memory_space<vmem>>, %arg7: memref<18x18x128xf32, #tpu.memory_space<vmem>>) attributes {dimension_semantics = [#tpu.dimension_semantics<parallel>], iteration_bounds = array<i64: 2>, scalar_prefetch = 0 : i64, scratch_operands = 1 : i64, tpu.core_type = #tpu.core_type<tc>, window_params = [{transform_indices = @transform_0, window_bounds = array<i64: 1, 16, 16, 4>}, {pipeline_mode = #tpu.pipeline_mode<synchronous>, transform_indices = @transform_1, window_bounds = array<i64: 1152, 128>}, {pipeline_mode = #tpu.pipeline_mode<synchronous>, transform_indices = @transform_2, window_bounds = array<i64: 1152, 128>}, {transform_indices = @transform_3, window_bounds = array<i64: 1, 16, 16, 128>}, {transform_indices = @transform_4, window_bounds = array<i64: 1, 16, 16, 128>}, {transform_indices = @transform_5, window_bounds = array<i64: 1, 2, 128>}]} {
    %cst = arith.constant 0.000000e+00 : f32
    %0 = vector.broadcast %cst : f32 to vector<18x18x128xf32>
    %c0 = arith.constant 0 : index
    %c0_0 = arith.constant 0 : index
    %c0_1 = arith.constant 0 : index
    %1 = vector.load %arg7[%c0, %c0_0, %c0_1] : memref<18x18x128xf32, #tpu.memory_space<vmem>>, vector<18x18x128xf32>
    tpu.vector_store %arg7[%c0, %c0_0, %c0_1], %0 {strides = array<i32>} : memref<18x18x128xf32, #tpu.memory_space<vmem>>, vector<18x18x128xf32>,
    %c0_2 = arith.constant 0 : index
    %c0_3 = arith.constant 0 : index
    %c0_4 = arith.constant 0 : index
    %c0_5 = arith.constant 0 : index
    %2 = vector.load %arg1[%c0_2, %c0_3, %c0_4, %c0_5] : memref<1x16x16x4xf32, #tpu.memory_space<vmem>>, vector<1x16x16x4xf32>
    %3 = vector.shape_cast %2 : vector<1x16x16x4xf32> to vector<16x16x4xf32>
    %c1 = arith.constant 1 : index
    %c1_6 = arith.constant 1 : index
    %c0_7 = arith.constant 0 : index
    %4 = vector.load %arg7[%c1, %c1_6, %c0_7] : memref<18x18x128xf32, #tpu.memory_space<vmem>>, vector<16x16x4xf32>
    tpu.vector_store %arg7[%c1, %c1_6, %c0_7], %3 {strides = array<i32>} : memref<18x18x128xf32, #tpu.memory_space<vmem>>, vector<16x16x4xf32>,
    %c0_8 = arith.constant 0 : index
    %c0_9 = arith.constant 0 : index
    %c0_10 = arith.constant 0 : index
    %5 = vector.load %arg7[%c0_8, %c0_9, %c0_10] : memref<18x18x128xf32, #tpu.memory_space<vmem>>, vector<16x16x128xf32>
    %6 = vector.shape_cast %5 : vector<16x16x128xf32> to vector<256x128xf32>
    %c0_11 = arith.constant 0 : index
    %c1_12 = arith.constant 1 : index
    %c0_13 = arith.constant 0 : index
    %7 = vector.load %arg7[%c0_11, %c1_12, %c0_13] : memref<18x18x128xf32, #tpu.memory_space<vmem>>, vector<16x16x128xf32>
    %8 = vector.shape_cast %7 : vector<16x16x128xf32> to vector<256x128xf32>
    %c0_14 = arith.constant 0 : index
    %c2 = arith.constant 2 : index
    %c0_15 = arith.constant 0 : index
    %9 = vector.load %arg7[%c0_14, %c2, %c0_15] : memref<18x18x128xf32, #tpu.memory_space<vmem>>, vector<16x16x128xf32>
    %10 = vector.shape_cast %9 : vector<16x16x128xf32> to vector<256x128xf32>
    %c1_16 = arith.constant 1 : index
    %c0_17 = arith.constant 0 : index
    %c0_18 = arith.constant 0 : index
    %11 = vector.load %arg7[%c1_16, %c0_17, %c0_18] : memref<18x18x128xf32, #tpu.memory_space<vmem>>, vector<16x16x128xf32>
    %12 = vector.shape_cast %11 : vector<16x16x128xf32> to vector<256x128xf32>
    %c1_19 = arith.constant 1 : index
    %c1_20 = arith.constant 1 : index
    %c0_21 = arith.constant 0 : index
    %13 = vector.load %arg7[%c1_19, %c1_20, %c0_21] : memref<18x18x128xf32, #tpu.memory_space<vmem>>, vector<16x16x128xf32>
    %14 = vector.shape_cast %13 : vector<16x16x128xf32> to vector<256x128xf32>
    %c1_22 = arith.constant 1 : index
    %c2_23 = arith.constant 2 : index
    %c0_24 = arith.constant 0 : index
    %15 = vector.load %arg7[%c1_22, %c2_23, %c0_24] : memref<18x18x128xf32, #tpu.memory_space<vmem>>, vector<16x16x128xf32>
    %16 = vector.shape_cast %15 : vector<16x16x128xf32> to vector<256x128xf32>
    %c2_25 = arith.constant 2 : index
    %c0_26 = arith.constant 0 : index
    %c0_27 = arith.constant 0 : index
    %17 = vector.load %arg7[%c2_25, %c0_26, %c0_27] : memref<18x18x128xf32, #tpu.memory_space<vmem>>, vector<16x16x128xf32>
    %18 = vector.shape_cast %17 : vector<16x16x128xf32> to vector<256x128xf32>
    %c2_28 = arith.constant 2 : index
    %c1_29 = arith.constant 1 : index
    %c0_30 = arith.constant 0 : index
    %19 = vector.load %arg7[%c2_28, %c1_29, %c0_30] : memref<18x18x128xf32, #tpu.memory_space<vmem>>, vector<16x16x128xf32>
    %20 = vector.shape_cast %19 : vector<16x16x128xf32> to vector<256x128xf32>
    %c2_31 = arith.constant 2 : index
    %c2_32 = arith.constant 2 : index
    %c0_33 = arith.constant 0 : index
    %21 = vector.load %arg7[%c2_31, %c2_32, %c0_33] : memref<18x18x128xf32, #tpu.memory_space<vmem>>, vector<16x16x128xf32>
    %22 = vector.shape_cast %21 : vector<16x16x128xf32> to vector<256x128xf32>
    %23 = tpu.concatenate %6, %8, %10, %12, %14, %16, %18, %20, %22 in 1 : vector<256x128xf32>, vector<256x128xf32>, vector<256x128xf32>, vector<256x128xf32>, vector<256x128xf32>, vector<256x128xf32>, vector<256x128xf32>, vector<256x128xf32>, vector<256x128xf32> -> vector<256x1152xf32>
    %c0_34 = arith.constant 0 : index
    %c0_35 = arith.constant 0 : index
    %24 = vector.load %arg2[%c0_34, %c0_35] : memref<1152x128xf32, #tpu.memory_space<vmem>>, vector<1152x128xf32>
    %cst_36 = arith.constant dense<0.000000e+00> : vector<256x128xf32>
    %25 = tpu.matmul %23, %24, %cst_36 {dimension_numbers = #tpu.dot_dimension_numbers<[1], [0], [0], [1], [0, 0, 1, 1], [], []>} : vector<256x1152xf32>, vector<1152x128xf32>, vector<256x128xf32> -> vector<256x128xf32>
    %c0_37 = arith.constant 0 : index
    %c0_38 = arith.constant 0 : index
    %26 = vector.load %arg3[%c0_37, %c0_38] : memref<1152x128xf32, #tpu.memory_space<vmem>>, vector<1152x128xf32>
    %cst_39 = arith.constant dense<0.000000e+00> : vector<256x128xf32>
    %27 = tpu.matmul %23, %26, %cst_39 {dimension_numbers = #tpu.dot_dimension_numbers<[1], [0], [0], [1], [0, 0, 1, 1], [], []>} : vector<256x1152xf32>, vector<1152x128xf32>, vector<256x128xf32> -> vector<256x128xf32>
    %28 = vector.shape_cast %25 : vector<256x128xf32> to vector<16x16x128xf32>
    %c0_40 = arith.constant 0 : index
    %c0_41 = arith.constant 0 : index
    %c0_42 = arith.constant 0 : index
    %c0_43 = arith.constant 0 : index
    %29 = vector.load %arg4[%c0_40, %c0_41, %c0_42, %c0_43] : memref<1x16x16x128xf32, #tpu.memory_space<vmem>>, vector<1x16x16x128xf32>
    %30 = vector.shape_cast %29 : vector<1x16x16x128xf32> to vector<16x16x128xf32>
    %31 = vector.shape_cast %28 : vector<16x16x128xf32> to vector<1x16x16x128xf32>
    tpu.vector_store %arg4[%c0_40, %c0_41, %c0_42, %c0_43], %31 {strides = array<i32>} : memref<1x16x16x128xf32, #tpu.memory_space<vmem>>, vector<1x16x16x128xf32>,
    %32 = vector.shape_cast %27 : vector<256x128xf32> to vector<16x16x128xf32>
    %c0_44 = arith.constant 0 : index
    %c0_45 = arith.constant 0 : index
    %c0_46 = arith.constant 0 : index
    %c0_47 = arith.constant 0 : index
    %33 = vector.load %arg5[%c0_44, %c0_45, %c0_46, %c0_47] : memref<1x16x16x128xf32, #tpu.memory_space<vmem>>, vector<1x16x16x128xf32>
    %34 = vector.shape_cast %33 : vector<1x16x16x128xf32> to vector<16x16x128xf32>
    %35 = vector.shape_cast %32 : vector<16x16x128xf32> to vector<1x16x16x128xf32>
    tpu.vector_store %arg5[%c0_44, %c0_45, %c0_46, %c0_47], %35 {strides = array<i32>} : memref<1x16x16x128xf32, #tpu.memory_space<vmem>>, vector<1x16x16x128xf32>,
    %cst_48 = arith.constant dense<0.000000e+00> : vector<128xf32>
    %36 = vector.multi_reduction <add>, %27, %cst_48 [0] : vector<256x128xf32> to vector<128xf32>
    %37 = vector.shape_cast %36 : vector<128xf32> to vector<1x128xf32>
    %38 = arith.mulf %27, %27 : vector<256x128xf32>
    %cst_49 = arith.constant dense<0.000000e+00> : vector<128xf32>
    %39 = vector.multi_reduction <add>, %38, %cst_49 [0] : vector<256x128xf32> to vector<128xf32>
    %40 = vector.shape_cast %39 : vector<128xf32> to vector<1x128xf32>
    %41 = tpu.concatenate %37, %40 in 0 : vector<1x128xf32>, vector<1x128xf32> -> vector<2x128xf32>
    %c0_50 = arith.constant 0 : index
    %c0_51 = arith.constant 0 : index
    %c0_52 = arith.constant 0 : index
    %42 = vector.load %arg6[%c0_50, %c0_51, %c0_52] : memref<1x2x128xf32, #tpu.memory_space<vmem>>, vector<1x2x128xf32>
    %43 = vector.shape_cast %42 : vector<1x2x128xf32> to vector<2x128xf32>
    %44 = vector.shape_cast %41 : vector<2x128xf32> to vector<1x2x128xf32>
    tpu.vector_store %arg6[%c0_50, %c0_51, %c0_52], %44 {strides = array<i32>} : memref<1x2x128xf32, #tpu.memory_space<vmem>>, vector<1x2x128xf32>,
    return
  }
  func.func @transform_0(%arg0: i32) -> (i32, i32, i32, i32) {
    %c0_i32 = arith.constant 0 : i32
    %c0_i32_0 = arith.constant 0 : i32
    %c0_i32_1 = arith.constant 0 : i32
    %c0_i32_2 = arith.constant 0 : i32
    return %arg0, %c0_i32, %c0_i32_0, %c0_i32_1 : i32, i32, i32, i32
  }
  func.func @transform_1(%arg0: i32) -> (i32, i32) {
    %c0_i32 = arith.constant 0 : i32
    %c0_i32_0 = arith.constant 0 : i32
    %c0_i32_1 = arith.constant 0 : i32
    return %c0_i32, %c0_i32_0 : i32, i32
  }
  func.func @transform_2(%arg0: i32) -> (i32, i32) {
    %c0_i32 = arith.constant 0 : i32
    %c0_i32_0 = arith.constant 0 : i32
    %c0_i32_1 = arith.constant 0 : i32
    return %c0_i32, %c0_i32_0 : i32, i32
  }
  func.func @transform_3(%arg0: i32) -> (i32, i32, i32, i32) {
    %c0_i32 = arith.constant 0 : i32
    %c0_i32_0 = arith.constant 0 : i32
    %c0_i32_1 = arith.constant 0 : i32
    %c0_i32_2 = arith.constant 0 : i32
    return %arg0, %c0_i32, %c0_i32_0, %c0_i32_1 : i32, i32, i32, i32
  }
  func.func @transform_4(%arg0: i32) -> (i32, i32, i32, i32) {
    %c0_i32 = arith.constant 0 : i32
    %c0_i32_0 = arith.constant 0 : i32
    %c0_i32_1 = arith.constant 0 : i32
    %c0_i32_2 = arith.constant 0 : i32
    return %arg0, %c0_i32, %c0_i32_0, %c0_i32_1 : i32, i32, i32, i32
  }
  func.func @transform_5(%arg0: i32) -> (i32, i32, i32) {
    %c0_i32 = arith.constant 0 : i32
    %c0_i32_0 = arith.constant 0 : i32
    %c0_i32_1 = arith.constant 0 : i32
    return %arg0, %c0_i32, %c0_i32_0 : i32, i32, i32
  }
}

module attributes {stable_mosaic.version = 11 : i64} {
  func.func @conv_ho_fused_kernel(%arg0: i32, %arg1: memref<1x16x16x128xf32, #tpu.memory_space<vmem>>, %arg2: memref<1x16x16x128xf32, #tpu.memory_space<vmem>>, %arg3: memref<1x128xf32, #tpu.memory_space<vmem>>, %arg4: memref<1x128xf32, #tpu.memory_space<vmem>>, %arg5: memref<1152x128xf32, #tpu.memory_space<vmem>>, %arg6: memref<1x16x16x128xf32, #tpu.memory_space<vmem>>, %arg7: memref<18x18x128xf32, #tpu.memory_space<vmem>>) attributes {dimension_semantics = [#tpu.dimension_semantics<parallel>], iteration_bounds = array<i64: 2>, scalar_prefetch = 0 : i64, scratch_operands = 1 : i64, tpu.core_type = #tpu.core_type<tc>, window_params = [{transform_indices = @transform_0, window_bounds = array<i64: 1, 16, 16, 128>}, {transform_indices = @transform_1, window_bounds = array<i64: 1, 16, 16, 128>}, {pipeline_mode = #tpu.pipeline_mode<synchronous>, transform_indices = @transform_2, window_bounds = array<i64: 1, 128>}, {pipeline_mode = #tpu.pipeline_mode<synchronous>, transform_indices = @transform_3, window_bounds = array<i64: 1, 128>}, {pipeline_mode = #tpu.pipeline_mode<synchronous>, transform_indices = @transform_4, window_bounds = array<i64: 1152, 128>}, {transform_indices = @transform_5, window_bounds = array<i64: 1, 16, 16, 128>}]} {
    %c0 = arith.constant 0 : index
    %c0_0 = arith.constant 0 : index
    %c0_1 = arith.constant 0 : index
    %c0_2 = arith.constant 0 : index
    %0 = vector.load %arg1[%c0, %c0_0, %c0_1, %c0_2] : memref<1x16x16x128xf32, #tpu.memory_space<vmem>>, vector<1x16x16x128xf32>
    %1 = vector.shape_cast %0 : vector<1x16x16x128xf32> to vector<16x16x128xf32>
    %c0_3 = arith.constant 0 : index
    %c0_4 = arith.constant 0 : index
    %2 = vector.load %arg3[%c0_3, %c0_4] : memref<1x128xf32, #tpu.memory_space<vmem>>, vector<1x128xf32>
    %3 = vector.shape_cast %2 : vector<1x128xf32> to vector<1x1x128xf32>
    %4 = vector.broadcast %3 : vector<1x1x128xf32> to vector<16x16x128xf32>
    %5 = arith.mulf %1, %4 : vector<16x16x128xf32>
    %c0_5 = arith.constant 0 : index
    %c0_6 = arith.constant 0 : index
    %6 = vector.load %arg4[%c0_5, %c0_6] : memref<1x128xf32, #tpu.memory_space<vmem>>, vector<1x128xf32>
    %7 = vector.shape_cast %6 : vector<1x128xf32> to vector<1x1x128xf32>
    %8 = vector.broadcast %7 : vector<1x1x128xf32> to vector<16x16x128xf32>
    %9 = arith.addf %5, %8 : vector<16x16x128xf32>
    %cst = arith.constant 0.000000e+00 : f32
    %10 = vector.broadcast %cst : f32 to vector<16x16x128xf32>
    %11 = arith.maximumf %9, %10 : vector<16x16x128xf32>
    %cst_7 = arith.constant 0.000000e+00 : f32
    %12 = vector.broadcast %cst_7 : f32 to vector<18x18x128xf32>
    %c0_8 = arith.constant 0 : index
    %c0_9 = arith.constant 0 : index
    %c0_10 = arith.constant 0 : index
    %13 = vector.load %arg7[%c0_8, %c0_9, %c0_10] : memref<18x18x128xf32, #tpu.memory_space<vmem>>, vector<18x18x128xf32>
    tpu.vector_store %arg7[%c0_8, %c0_9, %c0_10], %12 {strides = array<i32>} : memref<18x18x128xf32, #tpu.memory_space<vmem>>, vector<18x18x128xf32>,
    %c1 = arith.constant 1 : index
    %c1_11 = arith.constant 1 : index
    %c0_12 = arith.constant 0 : index
    %14 = vector.load %arg7[%c1, %c1_11, %c0_12] : memref<18x18x128xf32, #tpu.memory_space<vmem>>, vector<16x16x128xf32>
    tpu.vector_store %arg7[%c1, %c1_11, %c0_12], %11 {strides = array<i32>} : memref<18x18x128xf32, #tpu.memory_space<vmem>>, vector<16x16x128xf32>,
    %c0_13 = arith.constant 0 : index
    %c0_14 = arith.constant 0 : index
    %c0_15 = arith.constant 0 : index
    %15 = vector.load %arg7[%c0_13, %c0_14, %c0_15] : memref<18x18x128xf32, #tpu.memory_space<vmem>>, vector<16x16x128xf32>
    %16 = vector.shape_cast %15 : vector<16x16x128xf32> to vector<256x128xf32>
    %c0_16 = arith.constant 0 : index
    %c1_17 = arith.constant 1 : index
    %c0_18 = arith.constant 0 : index
    %17 = vector.load %arg7[%c0_16, %c1_17, %c0_18] : memref<18x18x128xf32, #tpu.memory_space<vmem>>, vector<16x16x128xf32>
    %18 = vector.shape_cast %17 : vector<16x16x128xf32> to vector<256x128xf32>
    %c0_19 = arith.constant 0 : index
    %c2 = arith.constant 2 : index
    %c0_20 = arith.constant 0 : index
    %19 = vector.load %arg7[%c0_19, %c2, %c0_20] : memref<18x18x128xf32, #tpu.memory_space<vmem>>, vector<16x16x128xf32>
    %20 = vector.shape_cast %19 : vector<16x16x128xf32> to vector<256x128xf32>
    %c1_21 = arith.constant 1 : index
    %c0_22 = arith.constant 0 : index
    %c0_23 = arith.constant 0 : index
    %21 = vector.load %arg7[%c1_21, %c0_22, %c0_23] : memref<18x18x128xf32, #tpu.memory_space<vmem>>, vector<16x16x128xf32>
    %22 = vector.shape_cast %21 : vector<16x16x128xf32> to vector<256x128xf32>
    %c1_24 = arith.constant 1 : index
    %c1_25 = arith.constant 1 : index
    %c0_26 = arith.constant 0 : index
    %23 = vector.load %arg7[%c1_24, %c1_25, %c0_26] : memref<18x18x128xf32, #tpu.memory_space<vmem>>, vector<16x16x128xf32>
    %24 = vector.shape_cast %23 : vector<16x16x128xf32> to vector<256x128xf32>
    %c1_27 = arith.constant 1 : index
    %c2_28 = arith.constant 2 : index
    %c0_29 = arith.constant 0 : index
    %25 = vector.load %arg7[%c1_27, %c2_28, %c0_29] : memref<18x18x128xf32, #tpu.memory_space<vmem>>, vector<16x16x128xf32>
    %26 = vector.shape_cast %25 : vector<16x16x128xf32> to vector<256x128xf32>
    %c2_30 = arith.constant 2 : index
    %c0_31 = arith.constant 0 : index
    %c0_32 = arith.constant 0 : index
    %27 = vector.load %arg7[%c2_30, %c0_31, %c0_32] : memref<18x18x128xf32, #tpu.memory_space<vmem>>, vector<16x16x128xf32>
    %28 = vector.shape_cast %27 : vector<16x16x128xf32> to vector<256x128xf32>
    %c2_33 = arith.constant 2 : index
    %c1_34 = arith.constant 1 : index
    %c0_35 = arith.constant 0 : index
    %29 = vector.load %arg7[%c2_33, %c1_34, %c0_35] : memref<18x18x128xf32, #tpu.memory_space<vmem>>, vector<16x16x128xf32>
    %30 = vector.shape_cast %29 : vector<16x16x128xf32> to vector<256x128xf32>
    %c2_36 = arith.constant 2 : index
    %c2_37 = arith.constant 2 : index
    %c0_38 = arith.constant 0 : index
    %31 = vector.load %arg7[%c2_36, %c2_37, %c0_38] : memref<18x18x128xf32, #tpu.memory_space<vmem>>, vector<16x16x128xf32>
    %32 = vector.shape_cast %31 : vector<16x16x128xf32> to vector<256x128xf32>
    %33 = tpu.concatenate %16, %18, %20, %22, %24, %26, %28, %30, %32 in 1 : vector<256x128xf32>, vector<256x128xf32>, vector<256x128xf32>, vector<256x128xf32>, vector<256x128xf32>, vector<256x128xf32>, vector<256x128xf32>, vector<256x128xf32>, vector<256x128xf32> -> vector<256x1152xf32>
    %c0_39 = arith.constant 0 : index
    %c0_40 = arith.constant 0 : index
    %34 = vector.load %arg5[%c0_39, %c0_40] : memref<1152x128xf32, #tpu.memory_space<vmem>>, vector<1152x128xf32>
    %cst_41 = arith.constant dense<0.000000e+00> : vector<256x128xf32>
    %35 = tpu.matmul %33, %34, %cst_41 {dimension_numbers = #tpu.dot_dimension_numbers<[1], [0], [0], [1], [0, 0, 1, 1], [], []>} : vector<256x1152xf32>, vector<1152x128xf32>, vector<256x128xf32> -> vector<256x128xf32>
    %36 = vector.shape_cast %35 : vector<256x128xf32> to vector<16x16x128xf32>
    %c0_42 = arith.constant 0 : index
    %c0_43 = arith.constant 0 : index
    %c0_44 = arith.constant 0 : index
    %c0_45 = arith.constant 0 : index
    %37 = vector.load %arg2[%c0_42, %c0_43, %c0_44, %c0_45] : memref<1x16x16x128xf32, #tpu.memory_space<vmem>>, vector<1x16x16x128xf32>
    %38 = vector.shape_cast %37 : vector<1x16x16x128xf32> to vector<16x16x128xf32>
    %39 = arith.addf %36, %38 : vector<16x16x128xf32>
    %c0_46 = arith.constant 0 : index
    %c0_47 = arith.constant 0 : index
    %c0_48 = arith.constant 0 : index
    %c0_49 = arith.constant 0 : index
    %40 = vector.load %arg6[%c0_46, %c0_47, %c0_48, %c0_49] : memref<1x16x16x128xf32, #tpu.memory_space<vmem>>, vector<1x16x16x128xf32>
    %41 = vector.shape_cast %40 : vector<1x16x16x128xf32> to vector<16x16x128xf32>
    %42 = vector.shape_cast %39 : vector<16x16x128xf32> to vector<1x16x16x128xf32>
    tpu.vector_store %arg6[%c0_46, %c0_47, %c0_48, %c0_49], %42 {strides = array<i32>} : memref<1x16x16x128xf32, #tpu.memory_space<vmem>>, vector<1x16x16x128xf32>,
    return
  }
  func.func @transform_0(%arg0: i32) -> (i32, i32, i32, i32) {
    %c0_i32 = arith.constant 0 : i32
    %c0_i32_0 = arith.constant 0 : i32
    %c0_i32_1 = arith.constant 0 : i32
    %c0_i32_2 = arith.constant 0 : i32
    return %arg0, %c0_i32, %c0_i32_0, %c0_i32_1 : i32, i32, i32, i32
  }
  func.func @transform_1(%arg0: i32) -> (i32, i32, i32, i32) {
    %c0_i32 = arith.constant 0 : i32
    %c0_i32_0 = arith.constant 0 : i32
    %c0_i32_1 = arith.constant 0 : i32
    %c0_i32_2 = arith.constant 0 : i32
    return %arg0, %c0_i32, %c0_i32_0, %c0_i32_1 : i32, i32, i32, i32
  }
  func.func @transform_2(%arg0: i32) -> (i32, i32) {
    %c0_i32 = arith.constant 0 : i32
    %c0_i32_0 = arith.constant 0 : i32
    %c0_i32_1 = arith.constant 0 : i32
    return %c0_i32, %c0_i32_0 : i32, i32
  }
  func.func @transform_3(%arg0: i32) -> (i32, i32) {
    %c0_i32 = arith.constant 0 : i32
    %c0_i32_0 = arith.constant 0 : i32
    %c0_i32_1 = arith.constant 0 : i32
    return %c0_i32, %c0_i32_0 : i32, i32
  }
  func.func @transform_4(%arg0: i32) -> (i32, i32) {
    %c0_i32 = arith.constant 0 : i32
    %c0_i32_0 = arith.constant 0 : i32
    %c0_i32_1 = arith.constant 0 : i32
    return %c0_i32, %c0_i32_0 : i32, i32
  }
  func.func @transform_5(%arg0: i32) -> (i32, i32, i32, i32) {
    %c0_i32 = arith.constant 0 : i32
    %c0_i32_0 = arith.constant 0 : i32
    %c0_i32_1 = arith.constant 0 : i32
    %c0_i32_2 = arith.constant 0 : i32
    return %arg0, %c0_i32, %c0_i32_0, %c0_i32_1 : i32, i32, i32, i32
  }
}

</mosaic_0001>

<llo_original>
// kernel: base_block_forward.2
$region0: #{base_block_forward.2}
  #allocation0 [shape = 'u32[]', space=smem, size = 0x4, offset = 0x4, fixed_abs, tag = 'smem constant byte address 0x4 - core index']
  #allocation1 [shape = 'u32[72,128]{1,0:T(1,128)}', space=vmem, size = 0x9000, scoped, tag = 'internal scratch']
  #allocation2 [shape = 'f32[18,18,128]{2,1,0:T(8,128)}', space=vmem, size = 0x36000, scoped, tag = 'scratch operand']
  %s0 = inlined_call_operand.vmem [shape: f32[2,16,16,4], index: 0, kind: input, shape index: {}]
  %s1 = inlined_call_operand.vmem [shape: f32[1152,128], index: 1, kind: input, shape index: {}]
  %s2 = inlined_call_operand.vmem [shape: f32[1152,128], index: 2, kind: input, shape index: {}]
  %s3 = inlined_call_operand.vmem [shape: f32[2,16,16,128], index: 3, kind: output, shape index: {0}]
  %s4 = inlined_call_operand.vmem [shape: f32[2,16,16,128], index: 4, kind: output, shape index: {1}]
  %s5 = inlined_call_operand.vmem [shape: f32[2,2,128], index: 5, kind: output, shape index: {2}]
  %6 = xla_tuple %s3, %s4, %s5
  %s7 = sld [smem:[#allocation0]]
  $region61: #{base_block_forward.2} parent=0
    _
  %s9 = ssub.s32 1, %s7
  %s10 = scalar_select 0, %s9, %s7
  loop: start=0, step=1, limit=4
  $region2: #{base_block_forward.2} parent=0 // loop_pre_header
    _
  $region3: #{base_block_forward.2} parent=0 // loop_header
    %s12 = sphi 0, %s16
    %p13 = scmp.ge.s32.totalorder %s12, 4
    %s22 = sphi 0, %s24
    %s25 = sphi 0, %s22
    %s26 = sphi 0, %s25
    %s42 = sphi 0, %s26
    %s46 = sphi 0, %s46
    %s48 = sphi 0, %s46
    %s49 = sphi 0, %s48
    %s63 = sphi 0, %s49
    %s67 = sphi 0, %s67
    %s69 = sphi 0, %s67
    %s70 = sphi 0, %s69
    %s84 = sphi 0, %s70
    %s90 = sphi 0, %s92
    %s93 = sphi 0, %s90
    %s94 = sphi 0, %s93
    %s110 = sphi 0, %s94
    %s116 = sphi 0, %s118
    %s119 = sphi 0, %s116
    %s120 = sphi 0, %s119
    %s136 = sphi 0, %s120
    %s142 = sphi 0, %s144
    %s145 = sphi 0, %s142
    %s146 = sphi 0, %s145
    %s162 = sphi 0, %s146
  $region4: #{base_block_forward.2} parent=0 // loop_header_branch
    %15 = sbr.rel (%p13) target = $region8
  $region5: #{base_block_forward.2} parent=0 // loop_body
    %s17 = ssub.s32 %s12, 1
    %s18 = ssub.s32 %s12, 2
    %s19 = sadd.s32 %s12, 1
    %s20 = ssub.s32 %s12, %s19
    %p21 = scmp.eq.s32.totalorder %s20, 0
    %s23 = sadd.s32 %s22, 1
    %s24 = scalar_select %p21, %s22, %s23
    %p27 = pneg %p21
    %p28 = scmp.eq.s32.totalorder %s12, 1
    %p29 = por %p27, %p28
    %p30 = scmp.ne.s32.totalorder %s22, %s25
    %p31 = scmp.eq.s32.totalorder %s12, 0
    %p32 = por %p30, %p31
    %p33 = scmp.ne.s32.totalorder %s22, %s25
    %p34 = scmp.eq.s32.totalorder %s17, 1
    %p35 = por %p33, %p34
    %p36 = scmp.ne.s32.totalorder %s25, %s26
    %p37 = scmp.eq.s32.totalorder %s17, 0
    %p38 = por %p36, %p37
    %p39 = scmp.ne.s32.totalorder %s25, %s26
    %p40 = scmp.eq.s32.totalorder %s18, 1
    %p41 = por %p39, %p40
    %p43 = scmp.ne.s32.totalorder %s26, %s42
    %p44 = scmp.eq.s32.totalorder %s18, 0
    %p45 = por %p43, %p44
    %s47 = sadd.s32 %s46, 1
    %p50 = scmp.eq.s32.totalorder %s12, 1
    %p51 = scmp.ne.s32.totalorder %s46, %s48
    %p52 = scmp.eq.s32.totalorder %s12, 0
    %p53 = por %p51, %p52
    %p54 = scmp.ne.s32.totalorder %s46, %s48
    %p55 = scmp.eq.s32.totalorder %s17, 1
    %p56 = por %p54, %p55
    %p57 = scmp.ne.s32.totalorder %s48, %s49
    %p58 = scmp.eq.s32.totalorder %s17, 0
    %p59 = por %p57, %p58
    %p60 = scmp.ne.s32.totalorder %s48, %s49
    %p61 = scmp.eq.s32.totalorder %s18, 1
    %p62 = por %p60, %p61
    %p64 = scmp.ne.s32.totalorder %s49, %s63
    %p65 = scmp.eq.s32.totalorder %s18, 0
    %p66 = por %p64, %p65
    %s68 = sadd.s32 %s67, 1
    %p71 = scmp.eq.s32.totalorder %s12, 1
    %p72 = scmp.ne.s32.totalorder %s67, %s69
    %p73 = scmp.eq.s32.totalorder %s12, 0
    %p74 = por %p72, %p73
    %p75 = scmp.ne.s32.totalorder %s67, %s69
    %p76 = scmp.eq.s32.totalorder %s17, 1
    %p77 = por %p75, %p76
    %p78 = scmp.ne.s32.totalorder %s69, %s70
    %p79 = scmp.eq.s32.totalorder %s17, 0
    %p80 = por %p78, %p79
    %p81 = scmp.ne.s32.totalorder %s69, %s70
    %p82 = scmp.eq.s32.totalorder %s18, 1
    %p83 = por %p81, %p82
    %p85 = scmp.ne.s32.totalorder %s70, %s84
    %p86 = scmp.eq.s32.totalorder %s18, 0
    %p87 = por %p85, %p86
    %s88 = ssub.s32 %s12, %s19
    %p89 = scmp.eq.s32.totalorder %s88, 0
    %s91 = sadd.s32 %s90, 1
    %s92 = scalar_select %p89, %s90, %s91
    %p95 = pneg %p89
    %p96 = scmp.eq.s32.totalorder %s12, 1
    %p97 = por %p95, %p96
    %p98 = scmp.ne.s32.totalorder %s90, %s93
    %p99 = scmp.eq.s32.totalorder %s12, 0
    %p100 = por %p98, %p99
    %p101 = scmp.ne.s32.totalorder %s90, %s93
    %p102 = scmp.eq.s32.totalorder %s17, 1
    %p103 = por %p101, %p102
    %p104 = scmp.ne.s32.totalorder %s93, %s94
    %p105 = scmp.eq.s32.totalorder %s17, 0
    %p106 = por %p104, %p105
    %p107 = scmp.ne.s32.totalorder %s93, %s94
    %p108 = scmp.eq.s32.totalorder %s18, 1
    %p109 = por %p107, %p108
    %p111 = scmp.ne.s32.totalorder %s94, %s110
    %p112 = scmp.eq.s32.totalorder %s18, 0
    %p113 = por %p111, %p112
    %s114 = ssub.s32 %s12, %s19
    %p115 = scmp.eq.s32.totalorder %s114, 0
    %s117 = sadd.s32 %s116, 1
    %s118 = scalar_select %p115, %s116, %s117
    %p121 = pneg %p115
    %p122 = scmp.eq.s32.totalorder %s12, 1
    %p123 = por %p121, %p122
    %p124 = scmp.ne.s32.totalorder %s116, %s119
    %p125 = scmp.eq.s32.totalorder %s12, 0
    %p126 = por %p124, %p125
    %p127 = scmp.ne.s32.totalorder %s116, %s119
    %p128 = scmp.eq.s32.totalorder %s17, 1
    %p129 = por %p127, %p128
    %p130 = scmp.ne.s32.totalorder %s119, %s120
    %p131 = scmp.eq.s32.totalorder %s17, 0
    %p132 = por %p130, %p131
    %p133 = scmp.ne.s32.totalorder %s119, %s120
    %p134 = scmp.eq.s32.totalorder %s18, 1
    %p135 = por %p133, %p134
    %p137 = scmp.ne.s32.totalorder %s120, %s136
    %p138 = scmp.eq.s32.totalorder %s18, 0
    %p139 = por %p137, %p138
    %s140 = ssub.s32 %s12, %s19
    %p141 = scmp.eq.s32.totalorder %s140, 0
    %s143 = sadd.s32 %s142, 1
    %s144 = scalar_select %p141, %s142, %s143
    %p147 = pneg %p141
    %p148 = scmp.eq.s32.totalorder %s12, 1
    %p149 = por %p147, %p148
    %p150 = scmp.ne.s32.totalorder %s142, %s145
    %p151 = scmp.eq.s32.totalorder %s12, 0
    %p152 = por %p150, %p151
    %p153 = scmp.ne.s32.totalorder %s142, %s145
    %p154 = scmp.eq.s32.totalorder %s17, 1
    %p155 = por %p153, %p154
    %p156 = scmp.ne.s32.totalorder %s145, %s146
    %p157 = scmp.eq.s32.totalorder %s17, 0
    %p158 = por %p156, %p157
    %p159 = scmp.ne.s32.totalorder %s145, %s146
    %p160 = scmp.eq.s32.totalorder %s18, 1
    %p161 = por %p159, %p160
    %p163 = scmp.ne.s32.totalorder %s146, %s162
    %p164 = scmp.eq.s32.totalorder %s18, 0
    %p165 = por %p163, %p164
    %p166 = scmp.le.s32.totalorder 1, %s12
    %p167 = scmp.lt.s32.totalorder %s12, 3
    %p168 = pnand %p166, %p167
    %p169 = pneg %p168
    // Predicated region
    $region9: #{base_block_forward.2} parent=5 // pred_check
      _
    $region10: #{base_block_forward.2} parent=5 // pred_check_branch
      %171 = sbr.rel (%p168) target = $region12
    $region11: #{base_block_forward.2} parent=5 // pred_region
      %s172 = ssub.s32 %s12, 1
      // Predicated region
      $region13: #{base_block_forward.2} parent=11 // pred_check
        %p173 = pneg %p59
      $region14: #{base_block_forward.2} parent=11 // pred_check_branch
        %175 = sbr.rel (%p173) target = $region16
      $region15: #{base_block_forward.2} parent=11 // pred_region
        _
      $region16: #{base_block_forward.2} parent=11 // pred_fallthru
        _
      // Predicated region
      $region17: #{base_block_forward.2} parent=11 // pred_check
        %p176 = pneg %p80
      $region18: #{base_block_forward.2} parent=11 // pred_check_branch
        %178 = sbr.rel (%p176) target = $region20
      $region19: #{base_block_forward.2} parent=11 // pred_region
        _
      $region20: #{base_block_forward.2} parent=11 // pred_fallthru
        _
    $region12: #{base_block_forward.2} parent=5 // pred_fallthru
      _
    %p179 = scmp.lt.s32.totalorder %s12, 2
    // Predicated region
    $region21: #{base_block_forward.2} parent=5 // pred_check
      %p180 = pneg %p179
    $region22: #{base_block_forward.2} parent=5 // pred_check_branch
      %182 = sbr.rel (%p180) target = $region24
    $region23: #{base_block_forward.2} parent=5 // pred_region
      // Predicated region
      $region25: #{base_block_forward.2} parent=23 // pred_check
        %p183 = pneg %p32
      $region26: #{base_block_forward.2} parent=23 // pred_check_branch
        %185 = sbr.rel (%p183) target = $region28
      $region27: #{base_block_forward.2} parent=23 // pred_region
        %p186 = scmp.lt.s32.totalorder %s12, 1
        %s187 = scalar_select %p186, %s12, 1
        %s188 = smul.addr %s187, 32
        %s189 = smul.addr %s188, 8
        %s190 = scalar_lea.vmem %s0, %s189
      $region28: #{base_block_forward.2} parent=23 // pred_fallthru
        _
    $region24: #{base_block_forward.2} parent=5 // pred_fallthru
      _
    %p191 = scmp.le.s32.totalorder 1, %s12
    %p192 = scmp.lt.s32.totalorder %s12, 3
    %p193 = pnand %p191, %p192
    %p194 = pneg %p193
    // Predicated region
    $region29: #{base_block_forward.2} parent=5 // pred_check
      _
    $region30: #{base_block_forward.2} parent=5 // pred_check_branch
      %196 = sbr.rel (%p193) target = $region32
    $region31: #{base_block_forward.2} parent=5 // pred_region
      %s197 = ssub.s32 %s12, 1
      %p198 = scmp.lt.s32.totalorder %s17, 1
      %s199 = scalar_select %p198, %s17, 1
      %s200 = smul.addr %s199, 32
      %s201 = smul.addr %s200, 8
      %s202 = scalar_lea.vmem %s0, %s201
      %p203 = pneg %p38
      %p204 = pneg %p35
      %p205 = pneg %p59
      %p206 = pneg %p56
      %p207 = pneg %p80
      %p208 = pneg %p77
      %p209 = pneg %p106
      %p210 = pneg %p103
      %p211 = scmp.lt.s32.totalorder %s17, 1
      %s212 = scalar_select %p211, %s17, 1
      %s213 = smul.addr %s212, 32
      %s214 = smul.addr %s213, 8
      %s215 = scalar_lea.vmem %s3, %s214
      %p216 = pneg %p132
      %p217 = pneg %p129
      %p218 = scmp.lt.s32.totalorder %s17, 1
      %s219 = scalar_select %p218, %s17, 1
      %s220 = smul.addr %s219, 32
      %s221 = smul.addr %s220, 8
      %s222 = scalar_lea.vmem %s4, %s221
      %p223 = pneg %p158
      %p224 = pneg %p155
      %p225 = scmp.lt.s32.totalorder %s17, 1
      %s226 = scalar_select %p225, %s17, 1
      %s227 = smul.addr %s226, 2
      %s228 = scalar_lea.vmem %s5, %s227
      %p229 = scmp.lt.s32.totalorder %s17, 1
      %s230 = scalar_select %p229, %s17, 1
      %s231 = smul.addr %s230, 32
      %s232 = smul.addr %s231, 8
      %s233 = scalar_lea.vmem %s0, %s232
      %p234 = scmp.lt.s32.totalorder %s17, 1
      %s235 = scalar_select %p234, %s17, 1
      %s236 = smul.addr %s235, 32
      %s237 = smul.addr %s236, 8
      %s238 = scalar_lea.vmem %s3, %s237
      %p239 = scmp.lt.s32.totalorder %s17, 1
      %s240 = scalar_select %p239, %s17, 1
      %s241 = smul.addr %s240, 32
      %s242 = smul.addr %s241, 8
      %s243 = scalar_lea.vmem %s4, %s242
      %p244 = scmp.lt.s32.totalorder %s17, 1
      %s245 = scalar_select %p244, %s17, 1
      %s246 = smul.addr %s245, 2
      %s247 = scalar_lea.vmem %s5, %s246
      %248 = vst [vmem:[#allocation2] sm:$0xff] 0.0
      %249 = vst [vmem:[#allocation2 + $0x8] sm:$0xff] 0.0
      %250 = vst [vmem:[#allocation2 + $0x10] sm:$0x3] 0.0
      %251 = vst [vmem:[#allocation2 + $0x18] sm:$0xff] 0.0
      %252 = vst [vmem:[#allocation2 + $0x20] sm:$0xff] 0.0
      %253 = vst [vmem:[#allocation2 + $0x28] sm:$0x3] 0.0
      %254 = vst [vmem:[#allocation2 + $0x30] sm:$0xff] 0.0
      %255 = vst [vmem:[#allocation2 + $0x38] sm:$0xff] 0.0
      %256 = vst [vmem:[#allocation2 + $0x40] sm:$0x3] 0.0
      %257 = vst [vmem:[#allocation2 + $0x48] sm:$0xff] 0.0
      %258 = vst [vmem:[#allocation2 + $0x50] sm:$0xff] 0.0
      %259 = vst [vmem:[#allocation2 + $0x58] sm:$0x3] 0.0
      %260 = vst [vmem:[#allocation2 + $0x60] sm:$0xff] 0.0
      %261 = vst [vmem:[#allocation2 + $0x68] sm:$0xff] 0.0
      %262 = vst [vmem:[#allocation2 + $0x70] sm:$0x3] 0.0
      %263 = vst [vmem:[#allocation2 + $0x78] sm:$0xff] 0.0
      %264 = vst [vmem:[#allocation2 + $0x80] sm:$0xff] 0.0
      %265 = vst [vmem:[#allocation2 + $0x88] sm:$0x3] 0.0
      %266 = vst [vmem:[#allocation2 + $0x90] sm:$0xff] 0.0
      %267 = vst [vmem:[#allocation2 + $0x98] sm:$0xff] 0.0
      %268 = vst [vmem:[#allocation2 + $0xa0] sm:$0x3] 0.0
      %269 = vst [vmem:[#allocation2 + $0xa8] sm:$0xff] 0.0
      %270 = vst [vmem:[#allocation2 + $0xb0] sm:$0xff] 0.0
      %271 = vst [vmem:[#allocation2 + $0xb8] sm:$0x3] 0.0
      %272 = vst [vmem:[#allocation2 + $0xc0] sm:$0xff] 0.0
      %273 = vst [vmem:[#allocation2 + $0xc8] sm:$0xff] 0.0
      %274 = vst [vmem:[#allocation2 + $0xd0] sm:$0x3] 0.0
      %275 = vst [vmem:[#allocation2 + $0xd8] sm:$0xff] 0.0
      %276 = vst [vmem:[#allocation2 + $0xe0] sm:$0xff] 0.0
      %277 = vst [vmem:[#allocation2 + $0xe8] sm:$0x3] 0.0
      %278 = vst [vmem:[#allocation2 + $0xf0] sm:$0xff] 0.0
      %279 = vst [vmem:[#allocation2 + $0xf8] sm:$0xff] 0.0
      %280 = vst [vmem:[#allocation2 + $0x100] sm:$0x3] 0.0
      %281 = vst [vmem:[#allocation2 + $0x108] sm:$0xff] 0.0
      %282 = vst [vmem:[#allocation2 + $0x110] sm:$0xff] 0.0
      %283 = vst [vmem:[#allocation2 + $0x118] sm:$0x3] 0.0
      %284 = vst [vmem:[#allocation2 + $0x120] sm:$0xff] 0.0
      %285 = vst [vmem:[#allocation2 + $0x128] sm:$0xff] 0.0
      %286 = vst [vmem:[#allocation2 + $0x130] sm:$0x3] 0.0
      %287 = vst [vmem:[#allocation2 + $0x138] sm:$0xff] 0.0
      %288 = vst [vmem:[#allocation2 + $0x140] sm:$0xff] 0.0
      %289 = vst [vmem:[#allocation2 + $0x148] sm:$0x3] 0.0
      %290 = vst [vmem:[#allocation2 + $0x150] sm:$0xff] 0.0
      %291 = vst [vmem:[#allocation2 + $0x158] sm:$0xff] 0.0
      %292 = vst [vmem:[#allocation2 + $0x160] sm:$0x3] 0.0
      %293 = vst [vmem:[#allocation2 + $0x168] sm:$0xff] 0.0
      %294 = vst [vmem:[#allocation2 + $0x170] sm:$0xff] 0.0
      %295 = vst [vmem:[#allocation2 + $0x178] sm:$0x3] 0.0
      %296 = vst [vmem:[#allocation2 + $0x180] sm:$0xff] 0.0
      %297 = vst [vmem:[#allocation2 + $0x188] sm:$0xff] 0.0
      %298 = vst [vmem:[#allocation2 + $0x190] sm:$0x3] 0.0
      %299 = vst [vmem:[#allocation2 + $0x198] sm:$0xff] 0.0
      %300 = vst [vmem:[#allocation2 + $0x1a0] sm:$0xff] 0.0
      %301 = vst [vmem:[#allocation2 + $0x1a8] sm:$0x3] 0.0
      %v302 = vld [vmem:[%s233] sm:$0xff]
      %v303 = vld [vmem:[%s233 + $0x8] sm:$0xff]
      %v304 = vld [vmem:[%s233 + $0x10] sm:$0xff]
      %v305 = vld [vmem:[%s233 + $0x18] sm:$0xff]
      %v306 = vld [vmem:[%s233 + $0x20] sm:$0xff]
      %v307 = vld [vmem:[%s233 + $0x28] sm:$0xff]
      %v308 = vld [vmem:[%s233 + $0x30] sm:$0xff]
      %v309 = vld [vmem:[%s233 + $0x38] sm:$0xff]
      %v310 = vld [vmem:[%s233 + $0x40] sm:$0xff]
      %v311 = vld [vmem:[%s233 + $0x48] sm:$0xff]
      %v312 = vld [vmem:[%s233 + $0x50] sm:$0xff]
      %v313 = vld [vmem:[%s233 + $0x58] sm:$0xff]
      %v314 = vld [vmem:[%s233 + $0x60] sm:$0xff]
      %v315 = vld [vmem:[%s233 + $0x68] sm:$0xff]
      %v316 = vld [vmem:[%s233 + $0x70] sm:$0xff]
      %v317 = vld [vmem:[%s233 + $0x78] sm:$0xff]
      %v318 = vld [vmem:[%s233 + $0x80] sm:$0xff]
      %v319 = vld [vmem:[%s233 + $0x88] sm:$0xff]
      %v320 = vld [vmem:[%s233 + $0x90] sm:$0xff]
      %v321 = vld [vmem:[%s233 + $0x98] sm:$0xff]
      %v322 = vld [vmem:[%s233 + $0xa0] sm:$0xff]
      %v323 = vld [vmem:[%s233 + $0xa8] sm:$0xff]
      %v324 = vld [vmem:[%s233 + $0xb0] sm:$0xff]
      %v325 = vld [vmem:[%s233 + $0xb8] sm:$0xff]
      %v326 = vld [vmem:[%s233 + $0xc0] sm:$0xff]
      %v327 = vld [vmem:[%s233 + $0xc8] sm:$0xff]
      %v328 = vld [vmem:[%s233 + $0xd0] sm:$0xff]
      %v329 = vld [vmem:[%s233 + $0xd8] sm:$0xff]
      %v330 = vld [vmem:[%s233 + $0xe0] sm:$0xff]
      %v331 = vld [vmem:[%s233 + $0xe8] sm:$0xff]
      %v332 = vld [vmem:[%s233 + $0xf0] sm:$0xff]
      %v333 = vld [vmem:[%s233 + $0xf8] sm:$0xff]
      %s334 = scalar_lea.vmem [#allocation2], 24
      %vm335 = vcmask 31744
      %336 = vst.msk [vmem:[%s334 + $0x1] sm:$0xff] %vm335, %v302
      %337 = vst.msk [vmem:[%s334 + $0x9] sm:$0xff] %vm335, %v303
      %338 = vst.msk [vmem:[%s334 + $0x19] sm:$0xff] %vm335, %v304
      %339 = vst.msk [vmem:[%s334 + $0x21] sm:$0xff] %vm335, %v305
      %340 = vst.msk [vmem:[%s334 + $0x31] sm:$0xff] %vm335, %v306
      %341 = vst.msk [vmem:[%s334 + $0x39] sm:$0xff] %vm335, %v307
      %342 = vst.msk [vmem:[%s334 + $0x49] sm:$0xff] %vm335, %v308
      %343 = vst.msk [vmem:[%s334 + $0x51] sm:$0xff] %vm335, %v309
      %344 = vst.msk [vmem:[%s334 + $0x61] sm:$0xff] %vm335, %v310
      %345 = vst.msk [vmem:[%s334 + $0x69] sm:$0xff] %vm335, %v311
      %346 = vst.msk [vmem:[%s334 + $0x79] sm:$0xff] %vm335, %v312
      %347 = vst.msk [vmem:[%s334 + $0x81] sm:$0xff] %vm335, %v313
      %348 = vst.msk [vmem:[%s334 + $0x91] sm:$0xff] %vm335, %v314
      %349 = vst.msk [vmem:[%s334 + $0x99] sm:$0xff] %vm335, %v315
      %350 = vst.msk [vmem:[%s334 + $0xa9] sm:$0xff] %vm335, %v316
      %351 = vst.msk [vmem:[%s334 + $0xb1] sm:$0xff] %vm335, %v317
      %352 = vst.msk [vmem:[%s334 + $0xc1] sm:$0xff] %vm335, %v318
      %353 = vst.msk [vmem:[%s334 + $0xc9] sm:$0xff] %vm335, %v319
      %354 = vst.msk [vmem:[%s334 + $0xd9] sm:$0xff] %vm335, %v320
      %355 = vst.msk [vmem:[%s334 + $0xe1] sm:$0xff] %vm335, %v321
      %356 = vst.msk [vmem:[%s334 + $0xf1] sm:$0xff] %vm335, %v322
      %357 = vst.msk [vmem:[%s334 + $0xf9] sm:$0xff] %vm335, %v323
      %358 = vst.msk [vmem:[%s334 + $0x109] sm:$0xff] %vm335, %v324
      %359 = vst.msk [vmem:[%s334 + $0x111] sm:$0xff] %vm335, %v325
      %360 = vst.msk [vmem:[%s334 + $0x121] sm:$0xff] %vm335, %v326
      %361 = vst.msk [vmem:[%s334 + $0x129] sm:$0xff] %vm335, %v327
      %362 = vst.msk [vmem:[%s334 + $0x139] sm:$0xff] %vm335, %v328
      %363 = vst.msk [vmem:[%s334 + $0x141] sm:$0xff] %vm335, %v329
      %364 = vst.msk [vmem:[%s334 + $0x151] sm:$0xff] %vm335, %v330
      %365 = vst.msk [vmem:[%s334 + $0x159] sm:$0xff] %vm335, %v331
      %366 = vst.msk [vmem:[%s334 + $0x169] sm:$0xff] %vm335, %v332
      %367 = vst.msk [vmem:[%s334 + $0x171] sm:$0xff] %vm335, %v333
      %v368 = vld [vmem:[#allocation2] sm:$0xff]
      %v369 = vld [vmem:[#allocation2 + $0x8] sm:$0xff]
      %v370 = vld [vmem:[#allocation2 + $0x18] sm:$0xff]
      %v371 = vld [vmem:[#allocation2 + $0x20] sm:$0xff]
      %v372 = vld [vmem:[#allocation2 + $0x30] sm:$0xff]
      %v373 = vld [vmem:[#allocation2 + $0x38] sm:$0xff]
      %v374 = vld [vmem:[#allocation2 + $0x48] sm:$0xff]
      %v375 = vld [vmem:[#allocation2 + $0x50] sm:$0xff]
      %v376 = vld [vmem:[#allocation2 + $0x60] sm:$0xff]
      %v377 = vld [vmem:[#allocation2 + $0x68] sm:$0xff]
      %v378 = vld [vmem:[#allocation2 + $0x78] sm:$0xff]
      %v379 = vld [vmem:[#allocation2 + $0x80] sm:$0xff]
      %v380 = vld [vmem:[#allocation2 + $0x90] sm:$0xff]
      %v381 = vld [vmem:[#allocation2 + $0x98] sm:$0xff]
      %v382 = vld [vmem:[#allocation2 + $0xa8] sm:$0xff]
      %v383 = vld [vmem:[#allocation2 + $0xb0] sm:$0xff]
      %v384 = vld [vmem:[#allocation2 + $0xc0] sm:$0xff]
      %v385 = vld [vmem:[#allocation2 + $0xc8] sm:$0xff]
      %v386 = vld [vmem:[#allocation2 + $0xd8] sm:$0xff]
      %v387 = vld [vmem:[#allocation2 + $0xe0] sm:$0xff]
      %v388 = vld [vmem:[#allocation2 + $0xf0] sm:$0xff]
      %v389 = vld [vmem:[#allocation2 + $0xf8] sm:$0xff]
      %v390 = vld [vmem:[#allocation2 + $0x108] sm:$0xff]
      %v391 = vld [vmem:[#allocation2 + $0x110] sm:$0xff]
      %v392 = vld [vmem:[#allocation2 + $0x120] sm:$0xff]
      %v393 = vld [vmem:[#allocation2 + $0x128] sm:$0xff]
      %v394 = vld [vmem:[#allocation2 + $0x138] sm:$0xff]
      %v395 = vld [vmem:[#allocation2 + $0x140] sm:$0xff]
      %v396 = vld [vmem:[#allocation2 + $0x150] sm:$0xff]
      %v397 = vld [vmem:[#allocation2 + $0x158] sm:$0xff]
      %v398 = vld [vmem:[#allocation2 + $0x168] sm:$0xff]
      %v399 = vld [vmem:[#allocation2 + $0x170] sm:$0xff]
      %v400 = vld [vmem:[#allocation2 + $0x1] sm:$0xff]
      %v401 = vld [vmem:[#allocation2 + $0x9] sm:$0xff]
      %v402 = vld [vmem:[#allocation2 + $0x19] sm:$0xff]
      %v403 = vld [vmem:[#allocation2 + $0x21] sm:$0xff]
      %v404 = vld [vmem:[#allocation2 + $0x31] sm:$0xff]
      %v405 = vld [vmem:[#allocation2 + $0x39] sm:$0xff]
      %v406 = vld [vmem:[#allocation2 + $0x49] sm:$0xff]
      %v407 = vld [vmem:[#allocation2 + $0x51] sm:$0xff]
      %v408 = vld [vmem:[#allocation2 + $0x61] sm:$0xff]
      %v409 = vld [vmem:[#allocation2 + $0x69] sm:$0xff]
      %v410 = vld [vmem:[#allocation2 + $0x79] sm:$0xff]
      %v411 = vld [vmem:[#allocation2 + $0x81] sm:$0xff]
      %v412 = vld [vmem:[#allocation2 + $0x91] sm:$0xff]
      %v413 = vld [vmem:[#allocation2 + $0x99] sm:$0xff]
      %v414 = vld [vmem:[#allocation2 + $0xa9] sm:$0xff]
      %v415 = vld [vmem:[#allocation2 + $0xb1] sm:$0xff]
      %v416 = vld [vmem:[#allocation2 + $0xc1] sm:$0xff]
      %v417 = vld [vmem:[#allocation2 + $0xc9] sm:$0xff]
      %v418 = vld [vmem:[#allocation2 + $0xd9] sm:$0xff]
      %v419 = vld [vmem:[#allocation2 + $0xe1] sm:$0xff]
      %v420 = vld [vmem:[#allocation2 + $0xf1] sm:$0xff]
      %v421 = vld [vmem:[#allocation2 + $0xf9] sm:$0xff]
      %v422 = vld [vmem:[#allocation2 + $0x109] sm:$0xff]
      %v423 = vld [vmem:[#allocation2 + $0x111] sm:$0xff]
      %v424 = vld [vmem:[#allocation2 + $0x121] sm:$0xff]
      %v425 = vld [vmem:[#allocation2 + $0x129] sm:$0xff]
      %v426 = vld [vmem:[#allocation2 + $0x139] sm:$0xff]
      %v427 = vld [vmem:[#allocation2 + $0x141] sm:$0xff]
      %v428 = vld [vmem:[#allocation2 + $0x151] sm:$0xff]
      %v429 = vld [vmem:[#allocation2 + $0x159] sm:$0xff]
      %v430 = vld [vmem:[#allocation2 + $0x169] sm:$0xff]
      %v431 = vld [vmem:[#allocation2 + $0x171] sm:$0xff]
      %v432 = vld [vmem:[#allocation2 + $0x2] sm:$0xff]
      %v433 = vld [vmem:[#allocation2 + $0xa] sm:$0xff]
      %v434 = vld [vmem:[#allocation2 + $0x1a] sm:$0xff]
      %v435 = vld [vmem:[#allocation2 + $0x22] sm:$0xff]
      %v436 = vld [vmem:[#allocation2 + $0x32] sm:$0xff]
      %v437 = vld [vmem:[#allocation2 + $0x3a] sm:$0xff]
      %v438 = vld [vmem:[#allocation2 + $0x4a] sm:$0xff]
      %v439 = vld [vmem:[#allocation2 + $0x52] sm:$0xff]
      %v440 = vld [vmem:[#allocation2 + $0x62] sm:$0xff]
      %v441 = vld [vmem:[#allocation2 + $0x6a] sm:$0xff]
      %v442 = vld [vmem:[#allocation2 + $0x7a] sm:$0xff]
      %v443 = vld [vmem:[#allocation2 + $0x82] sm:$0xff]
      %v444 = vld [vmem:[#allocation2 + $0x92] sm:$0xff]
      %v445 = vld [vmem:[#allocation2 + $0x9a] sm:$0xff]
      %v446 = vld [vmem:[#allocation2 + $0xaa] sm:$0xff]
      %v447 = vld [vmem:[#allocation2 + $0xb2] sm:$0xff]
      %v448 = vld [vmem:[#allocation2 + $0xc2] sm:$0xff]
      %v449 = vld [vmem:[#allocation2 + $0xca] sm:$0xff]
      %v450 = vld [vmem:[#allocation2 + $0xda] sm:$0xff]
      %v451 = vld [vmem:[#allocation2 + $0xe2] sm:$0xff]
      %v452 = vld [vmem:[#allocation2 + $0xf2] sm:$0xff]
      %v453 = vld [vmem:[#allocation2 + $0xfa] sm:$0xff]
      %v454 = vld [vmem:[#allocation2 + $0x10a] sm:$0xff]
      %v455 = vld [vmem:[#allocation2 + $0x112] sm:$0xff]
      %v456 = vld [vmem:[#allocation2 + $0x122] sm:$0xff]
      %v457 = vld [vmem:[#allocation2 + $0x12a] sm:$0xff]
      %v458 = vld [vmem:[#allocation2 + $0x13a] sm:$0xff]
      %v459 = vld [vmem:[#allocation2 + $0x142] sm:$0xff]
      %v460 = vld [vmem:[#allocation2 + $0x152] sm:$0xff]
      %v461 = vld [vmem:[#allocation2 + $0x15a] sm:$0xff]
      %v462 = vld [vmem:[#allocation2 + $0x16a] sm:$0xff]
      %v463 = vld [vmem:[#allocation2 + $0x172] sm:$0xff]
      %v464 = vld [vmem:[%s334] sm:$0xff]
      %v465 = vld [vmem:[%s334 + $0x8] sm:$0xff]
      %v466 = vld [vmem:[%s334 + $0x18] sm:$0xff]
      %v467 = vld [vmem:[%s334 + $0x20] sm:$0xff]
      %v468 = vld [vmem:[%s334 + $0x30] sm:$0xff]
      %v469 = vld [vmem:[%s334 + $0x38] sm:$0xff]
      %v470 = vld [vmem:[%s334 + $0x48] sm:$0xff]
      %v471 = vld [vmem:[%s334 + $0x50] sm:$0xff]
      %v472 = vld [vmem:[%s334 + $0x60] sm:$0xff]
      %v473 = vld [vmem:[%s334 + $0x68] sm:$0xff]
      %v474 = vld [vmem:[%s334 + $0x78] sm:$0xff]
      %v475 = vld [vmem:[%s334 + $0x80] sm:$0xff]
      %v476 = vld [vmem:[%s334 + $0x90] sm:$0xff]
      %v477 = vld [vmem:[%s334 + $0x98] sm:$0xff]
      %v478 = vld [vmem:[%s334 + $0xa8] sm:$0xff]
      %v479 = vld [vmem:[%s334 + $0xb0] sm:$0xff]
      %v480 = vld [vmem:[%s334 + $0xc0] sm:$0xff]
      %v481 = vld [vmem:[%s334 + $0xc8] sm:$0xff]
      %v482 = vld [vmem:[%s334 + $0xd8] sm:$0xff]
      %v483 = vld [vmem:[%s334 + $0xe0] sm:$0xff]
      %v484 = vld [vmem:[%s334 + $0xf0] sm:$0xff]
      %v485 = vld [vmem:[%s334 + $0xf8] sm:$0xff]
      %v486 = vld [vmem:[%s334 + $0x108] sm:$0xff]
      %v487 = vld [vmem:[%s334 + $0x110] sm:$0xff]
      %v488 = vld [vmem:[%s334 + $0x120] sm:$0xff]
      %v489 = vld [vmem:[%s334 + $0x128] sm:$0xff]
      %v490 = vld [vmem:[%s334 + $0x138] sm:$0xff]
      %v491 = vld [vmem:[%s334 + $0x140] sm:$0xff]
      %v492 = vld [vmem:[%s334 + $0x150] sm:$0xff]
      %v493 = vld [vmem:[%s334 + $0x158] sm:$0xff]
      %v494 = vld [vmem:[%s334 + $0x168] sm:$0xff]
      %v495 = vld [vmem:[%s334 + $0x170] sm:$0xff]
      %v496 = vld [vmem:[%s334 + $0x1] sm:$0xff]
      %v497 = vld [vmem:[%s334 + $0x9] sm:$0xff]
      %v498 = vld [vmem:[%s334 + $0x19] sm:$0xff]
      %v499 = vld [vmem:[%s334 + $0x21] sm:$0xff]
      %v500 = vld [vmem:[%s334 + $0x31] sm:$0xff]
      %v501 = vld [vmem:[%s334 + $0x39] sm:$0xff]
      %v502 = vld [vmem:[%s334 + $0x49] sm:$0xff]
      %v503 = vld [vmem:[%s334 + $0x51] sm:$0xff]
      %v504 = vld [vmem:[%s334 + $0x61] sm:$0xff]
      %v505 = vld [vmem:[%s334 + $0x69] sm:$0xff]
      %v506 = vld [vmem:[%s334 + $0x79] sm:$0xff]
      %v507 = vld [vmem:[%s334 + $0x81] sm:$0xff]
      %v508 = vld [vmem:[%s334 + $0x91] sm:$0xff]
      %v509 = vld [vmem:[%s334 + $0x99] sm:$0xff]
      %v510 = vld [vmem:[%s334 + $0xa9] sm:$0xff]
      %v511 = vld [vmem:[%s334 + $0xb1] sm:$0xff]
      %v512 = vld [vmem:[%s334 + $0xc1] sm:$0xff]
      %v513 = vld [vmem:[%s334 + $0xc9] sm:$0xff]
      %v514 = vld [vmem:[%s334 + $0xd9] sm:$0xff]
      %v515 = vld [vmem:[%s334 + $0xe1] sm:$0xff]
      %v516 = vld [vmem:[%s334 + $0xf1] sm:$0xff]
      %v517 = vld [vmem:[%s334 + $0xf9] sm:$0xff]
      %v518 = vld [vmem:[%s334 + $0x109] sm:$0xff]
      %v519 = vld [vmem:[%s334 + $0x111] sm:$0xff]
      %v520 = vld [vmem:[%s334 + $0x121] sm:$0xff]
      %v521 = vld [vmem:[%s334 + $0x129] sm:$0xff]
      %v522 = vld [vmem:[%s334 + $0x139] sm:$0xff]
      %v523 = vld [vmem:[%s334 + $0x141] sm:$0xff]
      %v524 = vld [vmem:[%s334 + $0x151] sm:$0xff]
      %v525 = vld [vmem:[%s334 + $0x159] sm:$0xff]
      %v526 = vld [vmem:[%s334 + $0x169] sm:$0xff]
      %v527 = vld [vmem:[%s334 + $0x171] sm:$0xff]
      %v528 = vld [vmem:[%s334 + $0x2] sm:$0xff]
      %v529 = vld [vmem:[%s334 + $0xa] sm:$0xff]
      %v530 = vld [vmem:[%s334 + $0x1a] sm:$0xff]
      %v531 = vld [vmem:[%s334 + $0x22] sm:$0xff]
      %v532 = vld [vmem:[%s334 + $0x32] sm:$0xff]
      %v533 = vld [vmem:[%s334 + $0x3a] sm:$0xff]
      %v534 = vld [vmem:[%s334 + $0x4a] sm:$0xff]
      %v535 = vld [vmem:[%s334 + $0x52] sm:$0xff]
      %v536 = vld [vmem:[%s334 + $0x62] sm:$0xff]
      %v537 = vld [vmem:[%s334 + $0x6a] sm:$0xff]
      %v538 = vld [vmem:[%s334 + $0x7a] sm:$0xff]
      %v539 = vld [vmem:[%s334 + $0x82] sm:$0xff]
      %v540 = vld [vmem:[%s334 + $0x92] sm:$0xff]
      %v541 = vld [vmem:[%s334 + $0x9a] sm:$0xff]
      %v542 = vld [vmem:[%s334 + $0xaa] sm:$0xff]
      %v543 = vld [vmem:[%s334 + $0xb2] sm:$0xff]
      %v544 = vld [vmem:[%s334 + $0xc2] sm:$0xff]
      %v545 = vld [vmem:[%s334 + $0xca] sm:$0xff]
      %v546 = vld [vmem:[%s334 + $0xda] sm:$0xff]
      %v547 = vld [vmem:[%s334 + $0xe2] sm:$0xff]
      %v548 = vld [vmem:[%s334 + $0xf2] sm:$0xff]
      %v549 = vld [vmem:[%s334 + $0xfa] sm:$0xff]
      %v550 = vld [vmem:[%s334 + $0x10a] sm:$0xff]
      %v551 = vld [vmem:[%s334 + $0x112] sm:$0xff]
      %v552 = vld [vmem:[%s334 + $0x122] sm:$0xff]
      %v553 = vld [vmem:[%s334 + $0x12a] sm:$0xff]
      %v554 = vld [vmem:[%s334 + $0x13a] sm:$0xff]
      %v555 = vld [vmem:[%s334 + $0x142] sm:$0xff]
      %v556 = vld [vmem:[%s334 + $0x152] sm:$0xff]
      %v557 = vld [vmem:[%s334 + $0x15a] sm:$0xff]
      %v558 = vld [vmem:[%s334 + $0x16a] sm:$0xff]
      %v559 = vld [vmem:[%s334 + $0x172] sm:$0xff]
      %s560 = scalar_lea.vmem [#allocation2], 48
      %v561 = vld [vmem:[%s560] sm:$0xff]
      %v562 = vld [vmem:[%s560 + $0x8] sm:$0xff]
      %v563 = vld [vmem:[%s560 + $0x18] sm:$0xff]
      %v564 = vld [vmem:[%s560 + $0x20] sm:$0xff]
      %v565 = vld [vmem:[%s560 + $0x30] sm:$0xff]
      %v566 = vld [vmem:[%s560 + $0x38] sm:$0xff]
      %v567 = vld [vmem:[%s560 + $0x48] sm:$0xff]
      %v568 = vld [vmem:[%s560 + $0x50] sm:$0xff]
      %v569 = vld [vmem:[%s560 + $0x60] sm:$0xff]
      %v570 = vld [vmem:[%s560 + $0x68] sm:$0xff]
      %v571 = vld [vmem:[%s560 + $0x78] sm:$0xff]
      %v572 = vld [vmem:[%s560 + $0x80] sm:$0xff]
      %v573 = vld [vmem:[%s560 + $0x90] sm:$0xff]
      %v574 = vld [vmem:[%s560 + $0x98] sm:$0xff]
      %v575 = vld [vmem:[%s560 + $0xa8] sm:$0xff]
      %v576 = vld [vmem:[%s560 + $0xb0] sm:$0xff]
      %v577 = vld [vmem:[%s560 + $0xc0] sm:$0xff]
      %v578 = vld [vmem:[%s560 + $0xc8] sm:$0xff]
      %v579 = vld [vmem:[%s560 + $0xd8] sm:$0xff]
      %v580 = vld [vmem:[%s560 + $0xe0] sm:$0xff]
      %v581 = vld [vmem:[%s560 + $0xf0] sm:$0xff]
      %v582 = vld [vmem:[%s560 + $0xf8] sm:$0xff]
      %v583 = vld [vmem:[%s560 + $0x108] sm:$0xff]
      %v584 = vld [vmem:[%s560 + $0x110] sm:$0xff]
      %v585 = vld [vmem:[%s560 + $0x120] sm:$0xff]
      %v586 = vld [vmem:[%s560 + $0x128] sm:$0xff]
      %v587 = vld [vmem:[%s560 + $0x138] sm:$0xff]
      %v588 = vld [vmem:[%s560 + $0x140] sm:$0xff]
      %v589 = vld [vmem:[%s560 + $0x150] sm:$0xff]
      %v590 = vld [vmem:[%s560 + $0x158] sm:$0xff]
      %v591 = vld [vmem:[%s560 + $0x168] sm:$0xff]
      %v592 = vld [vmem:[%s560 + $0x170] sm:$0xff]
      %v593 = vld [vmem:[%s560 + $0x1] sm:$0xff]
      %v594 = vld [vmem:[%s560 + $0x9] sm:$0xff]
      %v595 = vld [vmem:[%s560 + $0x19] sm:$0xff]
      %v596 = vld [vmem:[%s560 + $0x21] sm:$0xff]
      %v597 = vld [vmem:[%s560 + $0x31] sm:$0xff]
      %v598 = vld [vmem:[%s560 + $0x39] sm:$0xff]
      %v599 = vld [vmem:[%s560 + $0x49] sm:$0xff]
      %v600 = vld [vmem:[%s560 + $0x51] sm:$0xff]
      %v601 = vld [vmem:[%s560 + $0x61] sm:$0xff]
      %v602 = vld [vmem:[%s560 + $0x69] sm:$0xff]
      %v603 = vld [vmem:[%s560 + $0x79] sm:$0xff]
      %v604 = vld [vmem:[%s560 + $0x81] sm:$0xff]
      %v605 = vld [vmem:[%s560 + $0x91] sm:$0xff]
      %v606 = vld [vmem:[%s560 + $0x99] sm:$0xff]
      %v607 = vld [vmem:[%s560 + $0xa9] sm:$0xff]
      %v608 = vld [vmem:[%s560 + $0xb1] sm:$0xff]
      %v609 = vld [vmem:[%s560 + $0xc1] sm:$0xff]
      %v610 = vld [vmem:[%s560 + $0xc9] sm:$0xff]
      %v611 = vld [vmem:[%s560 + $0xd9] sm:$0xff]
      %v612 = vld [vmem:[%s560 + $0xe1] sm:$0xff]
      %v613 = vld [vmem:[%s560 + $0xf1] sm:$0xff]
      %v614 = vld [vmem:[%s560 + $0xf9] sm:$0xff]
      %v615 = vld [vmem:[%s560 + $0x109] sm:$0xff]
      %v616 = vld [vmem:[%s560 + $0x111] sm:$0xff]
      %v617 = vld [vmem:[%s560 + $0x121] sm:$0xff]
      %v618 = vld [vmem:[%s560 + $0x129] sm:$0xff]
      %v619 = vld [vmem:[%s560 + $0x139] sm:$0xff]
      %v620 = vld [vmem:[%s560 + $0x141] sm:$0xff]
      %v621 = vld [vmem:[%s560 + $0x151] sm:$0xff]
      %v622 = vld [vmem:[%s560 + $0x159] sm:$0xff]
      %v623 = vld [vmem:[%s560 + $0x169] sm:$0xff]
      %v624 = vld [vmem:[%s560 + $0x171] sm:$0xff]
      %v625 = vld [vmem:[%s560 + $0x2] sm:$0xff]
      %v626 = vld [vmem:[%s560 + $0xa] sm:$0xff]
      %v627 = vld [vmem:[%s560 + $0x1a] sm:$0xff]
      %v628 = vld [vmem:[%s560 + $0x22] sm:$0xff]
      %v629 = vld [vmem:[%s560 + $0x32] sm:$0xff]
      %v630 = vld [vmem:[%s560 + $0x3a] sm:$0xff]
      %v631 = vld [vmem:[%s560 + $0x4a] sm:$0xff]
      %v632 = vld [vmem:[%s560 + $0x52] sm:$0xff]
      %v633 = vld [vmem:[%s560 + $0x62] sm:$0xff]
      %v634 = vld [vmem:[%s560 + $0x6a] sm:$0xff]
      %v635 = vld [vmem:[%s560 + $0x7a] sm:$0xff]
      %v636 = vld [vmem:[%s560 + $0x82] sm:$0xff]
      %v637 = vld [vmem:[%s560 + $0x92] sm:$0xff]
      %v638 = vld [vmem:[%s560 + $0x9a] sm:$0xff]
      %v639 = vld [vmem:[%s560 + $0xaa] sm:$0xff]
      %v640 = vld [vmem:[%s560 + $0xb2] sm:$0xff]
      %v641 = vld [vmem:[%s560 + $0xc2] sm:$0xff]
      %v642 = vld [vmem:[%s560 + $0xca] sm:$0xff]
      %v643 = vld [vmem:[%s560 + $0xda] sm:$0xff]
      %v644 = vld [vmem:[%s560 + $0xe2] sm:$0xff]
      %v645 = vld [vmem:[%s560 + $0xf2] sm:$0xff]
      %v646 = vld [vmem:[%s560 + $0xfa] sm:$0xff]
      %v647 = vld [vmem:[%s560 + $0x10a] sm:$0xff]
      %v648 = vld [vmem:[%s560 + $0x112] sm:$0xff]
      %v649 = vld [vmem:[%s560 + $0x122] sm:$0xff]
      %v650 = vld [vmem:[%s560 + $0x12a] sm:$0xff]
      %v651 = vld [vmem:[%s560 + $0x13a] sm:$0xff]
      %v652 = vld [vmem:[%s560 + $0x142] sm:$0xff]
      %v653 = vld [vmem:[%s560 + $0x152] sm:$0xff]
      %v654 = vld [vmem:[%s560 + $0x15a] sm:$0xff]
      %v655 = vld [vmem:[%s560 + $0x16a] sm:$0xff]
      %v656 = vld [vmem:[%s560 + $0x172] sm:$0xff]
      %v657 = vld [vmem:[%s1] sm:$0xff]
      %v658 = vld [vmem:[%s1 + $0x8] sm:$0xff]
      %v659 = vld [vmem:[%s1 + $0x10] sm:$0xff]
      %v660 = vld [vmem:[%s1 + $0x18] sm:$0xff]
      %v661 = vld [vmem:[%s1 + $0x20] sm:$0xff]
      %v662 = vld [vmem:[%s1 + $0x28] sm:$0xff]
      %v663 = vld [vmem:[%s1 + $0x30] sm:$0xff]
      %v664 = vld [vmem:[%s1 + $0x38] sm:$0xff]
      %v665 = vld [vmem:[%s1 + $0x40] sm:$0xff]
      %v666 = vld [vmem:[%s1 + $0x48] sm:$0xff]
      %v667 = vld [vmem:[%s1 + $0x50] sm:$0xff]
      %v668 = vld [vmem:[%s1 + $0x58] sm:$0xff]
      %v669 = vld [vmem:[%s1 + $0x60] sm:$0xff]
      %v670 = vld [vmem:[%s1 + $0x68] sm:$0xff]
      %v671 = vld [vmem:[%s1 + $0x70] sm:$0xff]
      %v672 = vld [vmem:[%s1 + $0x78] sm:$0xff]
      %v673 = vld [vmem:[%s1 + $0x80] sm:$0xff]
      %v674 = vld [vmem:[%s1 + $0x88] sm:$0xff]
      %v675 = vld [vmem:[%s1 + $0x90] sm:$0xff]
      %v676 = vld [vmem:[%s1 + $0x98] sm:$0xff]
      %v677 = vld [vmem:[%s1 + $0xa0] sm:$0xff]
      %v678 = vld [vmem:[%s1 + $0xa8] sm:$0xff]
      %v679 = vld [vmem:[%s1 + $0xb0] sm:$0xff]
      %v680 = vld [vmem:[%s1 + $0xb8] sm:$0xff]
      %v681 = vld [vmem:[%s1 + $0xc0] sm:$0xff]
      %v682 = vld [vmem:[%s1 + $0xc8] sm:$0xff]
      %v683 = vld [vmem:[%s1 + $0xd0] sm:$0xff]
      %v684 = vld [vmem:[%s1 + $0xd8] sm:$0xff]
      %v685 = vld [vmem:[%s1 + $0xe0] sm:$0xff]
      %v686 = vld [vmem:[%s1 + $0xe8] sm:$0xff]
      %v687 = vld [vmem:[%s1 + $0xf0] sm:$0xff]
      %v688 = vld [vmem:[%s1 + $0xf8] sm:$0xff]
      %v689 = vld [vmem:[%s1 + $0x100] sm:$0xff]
      %v690 = vld [vmem:[%s1 + $0x108] sm:$0xff]
      %v691 = vld [vmem:[%s1 + $0x110] sm:$0xff]
      %v692 = vld [vmem:[%s1 + $0x118] sm:$0xff]
      %v693 = vld [vmem:[%s1 + $0x120] sm:$0xff]
      %v694 = vld [vmem:[%s1 + $0x128] sm:$0xff]
      %v695 = vld [vmem:[%s1 + $0x130] sm:$0xff]
      %v696 = vld [vmem:[%s1 + $0x138] sm:$0xff]
      %v697 = vld [vmem:[%s1 + $0x140] sm:$0xff]
      %v698 = vld [vmem:[%s1 + $0x148] sm:$0xff]
      %v699 = vld [vmem:[%s1 + $0x150] sm:$0xff]
      %v700 = vld [vmem:[%s1 + $0x158] sm:$0xff]
      %v701 = vld [vmem:[%s1 + $0x160] sm:$0xff]
      %v702 = vld [vmem:[%s1 + $0x168] sm:$0xff]
      %v703 = vld [vmem:[%s1 + $0x170] sm:$0xff]
      %v704 = vld [vmem:[%s1 + $0x178] sm:$0xff]
      %v705 = vld [vmem:[%s1 + $0x180] sm:$0xff]
      %v706 = vld [vmem:[%s1 + $0x188] sm:$0xff]
      %v707 = vld [vmem:[%s1 + $0x190] sm:$0xff]
      %v708 = vld [vmem:[%s1 + $0x198] sm:$0xff]
      %v709 = vld [vmem:[%s1 + $0x1a0] sm:$0xff]
      %v710 = vld [vmem:[%s1 + $0x1a8] sm:$0xff]
      %v711 = vld [vmem:[%s1 + $0x1b0] sm:$0xff]
      %v712 = vld [vmem:[%s1 + $0x1b8] sm:$0xff]
      %v713 = vld [vmem:[%s1 + $0x1c0] sm:$0xff]
      %v714 = vld [vmem:[%s1 + $0x1c8] sm:$0xff]
      %v715 = vld [vmem:[%s1 + $0x1d0] sm:$0xff]
      %v716 = vld [vmem:[%s1 + $0x1d8] sm:$0xff]
      %v717 = vld [vmem:[%s1 + $0x1e0] sm:$0xff]
      %v718 = vld [vmem:[%s1 + $0x1e8] sm:$0xff]
      %v719 = vld [vmem:[%s1 + $0x1f0] sm:$0xff]
      %v720 = vld [vmem:[%s1 + $0x1f8] sm:$0xff]
      %v721 = vld [vmem:[%s1 + $0x200] sm:$0xff]
      %v722 = vld [vmem:[%s1 + $0x208] sm:$0xff]
      %v723 = vld [vmem:[%s1 + $0x210] sm:$0xff]
      %v724 = vld [vmem:[%s1 + $0x218] sm:$0xff]
      %v725 = vld [vmem:[%s1 + $0x220] sm:$0xff]
      %v726 = vld [vmem:[%s1 + $0x228] sm:$0xff]
      %v727 = vld [vmem:[%s1 + $0x230] sm:$0xff]
      %v728 = vld [vmem:[%s1 + $0x238] sm:$0xff]
      %v729 = vld [vmem:[%s1 + $0x240] sm:$0xff]
      %v730 = vld [vmem:[%s1 + $0x248] sm:$0xff]
      %v731 = vld [vmem:[%s1 + $0x250] sm:$0xff]
      %v732 = vld [vmem:[%s1 + $0x258] sm:$0xff]
      %v733 = vld [vmem:[%s1 + $0x260] sm:$0xff]
      %v734 = vld [vmem:[%s1 + $0x268] sm:$0xff]
      %v735 = vld [vmem:[%s1 + $0x270] sm:$0xff]
      %v736 = vld [vmem:[%s1 + $0x278] sm:$0xff]
      %v737 = vld [vmem:[%s1 + $0x280] sm:$0xff]
      %v738 = vld [vmem:[%s1 + $0x288] sm:$0xff]
      %v739 = vld [vmem:[%s1 + $0x290] sm:$0xff]
      %v740 = vld [vmem:[%s1 + $0x298] sm:$0xff]
      %v741 = vld [vmem:[%s1 + $0x2a0] sm:$0xff]
      %v742 = vld [vmem:[%s1 + $0x2a8] sm:$0xff]
      %v743 = vld [vmem:[%s1 + $0x2b0] sm:$0xff]
      %v744 = vld [vmem:[%s1 + $0x2b8] sm:$0xff]
      %v745 = vld [vmem:[%s1 + $0x2c0] sm:$0xff]
      %v746 = vld [vmem:[%s1 + $0x2c8] sm:$0xff]
      %v747 = vld [vmem:[%s1 + $0x2d0] sm:$0xff]
      %v748 = vld [vmem:[%s1 + $0x2d8] sm:$0xff]
      %v749 = vld [vmem:[%s1 + $0x2e0] sm:$0xff]
      %v750 = vld [vmem:[%s1 + $0x2e8] sm:$0xff]
      %v751 = vld [vmem:[%s1 + $0x2f0] sm:$0xff]
      %v752 = vld [vmem:[%s1 + $0x2f8] sm:$0xff]
      %v753 = vld [vmem:[%s1 + $0x300] sm:$0xff]
      %v754 = vld [vmem:[%s1 + $0x308] sm:$0xff]
      %v755 = vld [vmem:[%s1 + $0x310] sm:$0xff]
      %v756 = vld [vmem:[%s1 + $0x318] sm:$0xff]
      %v757 = vld [vmem:[%s1 + $0x320] sm:$0xff]
      %v758 = vld [vmem:[%s1 + $0x328] sm:$0xff]
      %v759 = vld [vmem:[%s1 + $0x330] sm:$0xff]
      %v760 = vld [vmem:[%s1 + $0x338] sm:$0xff]
      %v761 = vld [vmem:[%s1 + $0x340] sm:$0xff]
      %v762 = vld [vmem:[%s1 + $0x348] sm:$0xff]
      %v763 = vld [vmem:[%s1 + $0x350] sm:$0xff]
      %v764 = vld [vmem:[%s1 + $0x358] sm:$0xff]
      %v765 = vld [vmem:[%s1 + $0x360] sm:$0xff]
      %v766 = vld [vmem:[%s1 + $0x368] sm:$0xff]
      %v767 = vld [vmem:[%s1 + $0x370] sm:$0xff]
      %v768 = vld [vmem:[%s1 + $0x378] sm:$0xff]
      %v769 = vld [vmem:[%s1 + $0x380] sm:$0xff]
      %v770 = vld [vmem:[%s1 + $0x388] sm:$0xff]
      %v771 = vld [vmem:[%s1 + $0x390] sm:$0xff]
      %v772 = vld [vmem:[%s1 + $0x398] sm:$0xff]
      %v773 = vld [vmem:[%s1 + $0x3a0] sm:$0xff]
      %v774 = vld [vmem:[%s1 + $0x3a8] sm:$0xff]
      %v775 = vld [vmem:[%s1 + $0x3b0] sm:$0xff]
      %v776 = vld [vmem:[%s1 + $0x3b8] sm:$0xff]
      %v777 = vld [vmem:[%s1 + $0x3c0] sm:$0xff]
      %v778 = vld [vmem:[%s1 + $0x3c8] sm:$0xff]
      %v779 = vld [vmem:[%s1 + $0x3d0] sm:$0xff]
      %v780 = vld [vmem:[%s1 + $0x3d8] sm:$0xff]
      %v781 = vld [vmem:[%s1 + $0x3e0] sm:$0xff]
      %v782 = vld [vmem:[%s1 + $0x3e8] sm:$0xff]
      %v783 = vld [vmem:[%s1 + $0x3f0] sm:$0xff]
      %v784 = vld [vmem:[%s1 + $0x3f8] sm:$0xff]
      %v785 = vld [vmem:[%s1 + $0x400] sm:$0xff]
      %v786 = vld [vmem:[%s1 + $0x408] sm:$0xff]
      %v787 = vld [vmem:[%s1 + $0x410] sm:$0xff]
      %v788 = vld [vmem:[%s1 + $0x418] sm:$0xff]
      %v789 = vld [vmem:[%s1 + $0x420] sm:$0xff]
      %v790 = vld [vmem:[%s1 + $0x428] sm:$0xff]
      %v791 = vld [vmem:[%s1 + $0x430] sm:$0xff]
      %v792 = vld [vmem:[%s1 + $0x438] sm:$0xff]
      %v793 = vld [vmem:[%s1 + $0x440] sm:$0xff]
      %v794 = vld [vmem:[%s1 + $0x448] sm:$0xff]
      %v795 = vld [vmem:[%s1 + $0x450] sm:$0xff]
      %v796 = vld [vmem:[%s1 + $0x458] sm:$0xff]
      %v797 = vld [vmem:[%s1 + $0x460] sm:$0xff]
      %v798 = vld [vmem:[%s1 + $0x468] sm:$0xff]
      %v799 = vld [vmem:[%s1 + $0x470] sm:$0xff]
      %v800 = vld [vmem:[%s1 + $0x478] sm:$0xff]
      %801 = vmatpush.msra.mxu0 %v672
      %802 = vmatpush.msra.mxu0 %v671
      %803 = vmatpush.msra.mxu0 %v670
      %804 = vmatpush.msra.mxu0 %v669
      %805 = vmatpush.msra.mxu0 %v668
      %806 = vmatpush.msra.mxu0 %v667
      %807 = vmatpush.msra.mxu0 %v666
      %808 = vmatpush.msra.mxu0 %v665
      %809 = vmatpush.msra.mxu0 %v664
      %810 = vmatpush.msra.mxu0 %v663
      %811 = vmatpush.msra.mxu0 %v662
      %812 = vmatpush.msra.mxu0 %v661
      %813 = vmatpush.msra.mxu0 %v660
      %814 = vmatpush.msra.mxu0 %v659
      %815 = vmatpush.msra.mxu0 %v658
      %816 = vmatpush.msra.mxu0 %v657
      %817 = vmatmul.f32.gmra.mxu0 %v368
      %v818 = vpop.f32.mrf.mxu0
      %v819 = vadd.f32 0.0, %v818
      %820 = vmatmul.f32.gmra.mxu0 %v369
      %v821 = vpop.f32.mrf.mxu0
      %v822 = vadd.f32 0.0, %v821
      %823 = vmatmul.f32.gmra.mxu0 %v370
      %v824 = vpop.f32.mrf.mxu0
      %v825 = vadd.f32 0.0, %v824
      %826 = vmatmul.f32.gmra.mxu0 %v371
      %v827 = vpop.f32.mrf.mxu0
      %v828 = vadd.f32 0.0, %v827
      %829 = vmatmul.f32.gmra.mxu0 %v372
      %v830 = vpop.f32.mrf.mxu0
      %v831 = vadd.f32 0.0, %v830
      %832 = vmatmul.f32.gmra.mxu0 %v373
      %v833 = vpop.f32.mrf.mxu0
      %v834 = vadd.f32 0.0, %v833
      %835 = vmatmul.f32.gmra.mxu0 %v374
      %v836 = vpop.f32.mrf.mxu0
      %v837 = vadd.f32 0.0, %v836
      %838 = vmatmul.f32.gmra.mxu0 %v375
      %v839 = vpop.f32.mrf.mxu0
      %v840 = vadd.f32 0.0, %v839
      %841 = vmatmul.f32.gmra.mxu0 %v376
      %v842 = vpop.f32.mrf.mxu0
      %v843 = vadd.f32 0.0, %v842
      %844 = vmatmul.f32.gmra.mxu0 %v377
      %v845 = vpop.f32.mrf.mxu0
      %v846 = vadd.f32 0.0, %v845
      %847 = vmatmul.f32.gmra.mxu0 %v378
      %v848 = vpop.f32.mrf.mxu0
      %v849 = vadd.f32 0.0, %v848
      %850 = vmatmul.f32.gmra.mxu0 %v379
      %v851 = vpop.f32.mrf.mxu0
      %v852 = vadd.f32 0.0, %v851
      %853 = vmatmul.f32.gmra.mxu0 %v380
      %v854 = vpop.f32.mrf.mxu0
      %v855 = vadd.f32 0.0, %v854
      %856 = vmatmul.f32.gmra.mxu0 %v381
      %v857 = vpop.f32.mrf.mxu0
      %v858 = vadd.f32 0.0, %v857
      %859 = vmatmul.f32.gmra.mxu0 %v382
      %v860 = vpop.f32.mrf.mxu0
      %v861 = vadd.f32 0.0, %v860
      %862 = vmatmul.f32.gmra.mxu0 %v383
      %v863 = vpop.f32.mrf.mxu0
      %v864 = vadd.f32 0.0, %v863
      %865 = vmatmul.f32.gmra.mxu0 %v384
      %v866 = vpop.f32.mrf.mxu0
      %v867 = vadd.f32 0.0, %v866
      %868 = vmatmul.f32.gmra.mxu0 %v385
      %v869 = vpop.f32.mrf.mxu0
      %v870 = vadd.f32 0.0, %v869
      %871 = vmatmul.f32.gmra.mxu0 %v386
      %v872 = vpop.f32.mrf.mxu0
      %v873 = vadd.f32 0.0, %v872
      %874 = vmatmul.f32.gmra.mxu0 %v387
      %v875 = vpop.f32.mrf.mxu0
      %v876 = vadd.f32 0.0, %v875
      %877 = vmatmul.f32.gmra.mxu0 %v388
      %v878 = vpop.f32.mrf.mxu0
      %v879 = vadd.f32 0.0, %v878
      %880 = vmatmul.f32.gmra.mxu0 %v389
      %v881 = vpop.f32.mrf.mxu0
      %v882 = vadd.f32 0.0, %v881
      %883 = vmatmul.f32.gmra.mxu0 %v390
      %v884 = vpop.f32.mrf.mxu0
      %v885 = vadd.f32 0.0, %v884
      %886 = vmatmul.f32.gmra.mxu0 %v391
      %v887 = vpop.f32.mrf.mxu0
      %v888 = vadd.f32 0.0, %v887
      %889 = vmatmul.f32.gmra.mxu0 %v392
      %v890 = vpop.f32.mrf.mxu0
      %v891 = vadd.f32 0.0, %v890
      %892 = vmatmul.f32.gmra.mxu0 %v393
      %v893 = vpop.f32.mrf.mxu0
      %v894 = vadd.f32 0.0, %v893
      %895 = vmatmul.f32.gmra.mxu0 %v394
      %v896 = vpop.f32.mrf.mxu0
      %v897 = vadd.f32 0.0, %v896
      %898 = vmatmul.f32.gmra.mxu0 %v395
      %v899 = vpop.f32.mrf.mxu0
      %v900 = vadd.f32 0.0, %v899
      %901 = vmatmul.f32.gmra.mxu0 %v396
      %v902 = vpop.f32.mrf.mxu0
      %v903 = vadd.f32 0.0, %v902
      %904 = vmatmul.f32.gmra.mxu0 %v397
      %v905 = vpop.f32.mrf.mxu0
      %v906 = vadd.f32 0.0, %v905
      %907 = vmatmul.f32.gmra.mxu0 %v398
      %v908 = vpop.f32.mrf.mxu0
      %v909 = vadd.f32 0.0, %v908
      %910 = vmatmul.f32.gmra.mxu0 %v399
      %v911 = vpop.f32.mrf.mxu0
      %v912 = vadd.f32 0.0, %v911
      %913 = vdwg.mxu0
      %914 = vmatpush.msra.mxu0 %v688
      %915 = vmatpush.msra.mxu0 %v687
      %916 = vmatpush.msra.mxu0 %v686
      %917 = vmatpush.msra.mxu0 %v685
      %918 = vmatpush.msra.mxu0 %v684
      %919 = vmatpush.msra.mxu0 %v683
      %920 = vmatpush.msra.mxu0 %v682
      %921 = vmatpush.msra.mxu0 %v681
      %922 = vmatpush.msra.mxu0 %v680
      %923 = vmatpush.msra.mxu0 %v679
      %924 = vmatpush.msra.mxu0 %v678
      %925 = vmatpush.msra.mxu0 %v677
      %926 = vmatpush.msra.mxu0 %v676
      %927 = vmatpush.msra.mxu0 %v675
      %928 = vmatpush.msra.mxu0 %v674
      %929 = vmatpush.msra.mxu0 %v673
      %930 = vmatmul.f32.gmra.mxu0 %v400
      %v931 = vpop.f32.mrf.mxu0
      %v932 = vadd.f32 %v819, %v931
      %933 = vmatmul.f32.gmra.mxu0 %v401
      %v934 = vpop.f32.mrf.mxu0
      %v935 = vadd.f32 %v822, %v934
      %936 = vmatmul.f32.gmra.mxu0 %v402
      %v937 = vpop.f32.mrf.mxu0
      %v938 = vadd.f32 %v825, %v937
      %939 = vmatmul.f32.gmra.mxu0 %v403
      %v940 = vpop.f32.mrf.mxu0
      %v941 = vadd.f32 %v828, %v940
      %942 = vmatmul.f32.gmra.mxu0 %v404
      %v943 = vpop.f32.mrf.mxu0
      %v944 = vadd.f32 %v831, %v943
      %945 = vmatmul.f32.gmra.mxu0 %v405
      %v946 = vpop.f32.mrf.mxu0
      %v947 = vadd.f32 %v834, %v946
      %948 = vmatmul.f32.gmra.mxu0 %v406
      %v949 = vpop.f32.mrf.mxu0
      %v950 = vadd.f32 %v837, %v949
      %951 = vmatmul.f32.gmra.mxu0 %v407
      %v952 = vpop.f32.mrf.mxu0
      %v953 = vadd.f32 %v840, %v952
      %954 = vmatmul.f32.gmra.mxu0 %v408
      %v955 = vpop.f32.mrf.mxu0
      %v956 = vadd.f32 %v843, %v955
      %957 = vmatmul.f32.gmra.mxu0 %v409
      %v958 = vpop.f32.mrf.mxu0
      %v959 = vadd.f32 %v846, %v958
      %960 = vmatmul.f32.gmra.mxu0 %v410
      %v961 = vpop.f32.mrf.mxu0
      %v962 = vadd.f32 %v849, %v961
      %963 = vmatmul.f32.gmra.mxu0 %v411
      %v964 = vpop.f32.mrf.mxu0
      %v965 = vadd.f32 %v852, %v964
      %966 = vmatmul.f32.gmra.mxu0 %v412
      %v967 = vpop.f32.mrf.mxu0
      %v968 = vadd.f32 %v855, %v967
      %969 = vmatmul.f32.gmra.mxu0 %v413
      %v970 = vpop.f32.mrf.mxu0
      %v971 = vadd.f32 %v858, %v970
      %972 = vmatmul.f32.gmra.mxu0 %v414
      %v973 = vpop.f32.mrf.mxu0
      %v974 = vadd.f32 %v861, %v973
      %975 = vmatmul.f32.gmra.mxu0 %v415
      %v976 = vpop.f32.mrf.mxu0
      %v977 = vadd.f32 %v864, %v976
      %978 = vmatmul.f32.gmra.mxu0 %v416
      %v979 = vpop.f32.mrf.mxu0
      %v980 = vadd.f32 %v867, %v979
      %981 = vmatmul.f32.gmra.mxu0 %v417
      %v982 = vpop.f32.mrf.mxu0
      %v983 = vadd.f32 %v870, %v982
      %984 = vmatmul.f32.gmra.mxu0 %v418
      %v985 = vpop.f32.mrf.mxu0
      %v986 = vadd.f32 %v873, %v985
      %987 = vmatmul.f32.gmra.mxu0 %v419
      %v988 = vpop.f32.mrf.mxu0
      %v989 = vadd.f32 %v876, %v988
      %990 = vmatmul.f32.gmra.mxu0 %v420
      %v991 = vpop.f32.mrf.mxu0
      %v992 = vadd.f32 %v879, %v991
      %993 = vmatmul.f32.gmra.mxu0 %v421
      %v994 = vpop.f32.mrf.mxu0
      %v995 = vadd.f32 %v882, %v994
      %996 = vmatmul.f32.gmra.mxu0 %v422
      %v997 = vpop.f32.mrf.mxu0
      %v998 = vadd.f32 %v885, %v997
      %999 = vmatmul.f32.gmra.mxu0 %v423
      %v1000 = vpop.f32.mrf.mxu0
      %v1001 = vadd.f32 %v888, %v1000
      %1002 = vmatmul.f32.gmra.mxu0 %v424
      %v1003 = vpop.f32.mrf.mxu0
      %v1004 = vadd.f32 %v891, %v1003
      %1005 = vmatmul.f32.gmra.mxu0 %v425
      %v1006 = vpop.f32.mrf.mxu0
      %v1007 = vadd.f32 %v894, %v1006
      %1008 = vmatmul.f32.gmra.mxu0 %v426
      %v1009 = vpop.f32.mrf.mxu0
      %v1010 = vadd.f32 %v897, %v1009
      %1011 = vmatmul.f32.gmra.mxu0 %v427
      %v1012 = vpop.f32.mrf.mxu0
      %v1013 = vadd.f32 %v900, %v1012
      %1014 = vmatmul.f32.gmra.mxu0 %v428
      %v1015 = vpop.f32.mrf.mxu0
      %v1016 = vadd.f32 %v903, %v1015
      %1017 = vmatmul.f32.gmra.mxu0 %v429
      %v1018 = vpop.f32.mrf.mxu0
      %v1019 = vadd.f32 %v906, %v1018
      %1020 = vmatmul.f32.gmra.mxu0 %v430
      %v1021 = vpop.f32.mrf.mxu0
      %v1022 = vadd.f32 %v909, %v1021
      %1023 = vmatmul.f32.gmra.mxu0 %v431
      %v1024 = vpop.f32.mrf.mxu0
      %v1025 = vadd.f32 %v912, %v1024
      %1026 = vdwg.mxu0
      %1027 = vmatpush.msra.mxu0 %v704
      %1028 = vmatpush.msra.mxu0 %v703
      %1029 = vmatpush.msra.mxu0 %v702
      %1030 = vmatpush.msra.mxu0 %v701
      %1031 = vmatpush.msra.mxu0 %v700
      %1032 = vmatpush.msra.mxu0 %v699
      %1033 = vmatpush.msra.mxu0 %v698
      %1034 = vmatpush.msra.mxu0 %v697
      %1035 = vmatpush.msra.mxu0 %v696
      %1036 = vmatpush.msra.mxu0 %v695
      %1037 = vmatpush.msra.mxu0 %v694
      %1038 = vmatpush.msra.mxu0 %v693
      %1039 = vmatpush.msra.mxu0 %v692
      %1040 = vmatpush.msra.mxu0 %v691
      %1041 = vmatpush.msra.mxu0 %v690
      %1042 = vmatpush.msra.mxu0 %v689
      %1043 = vmatmul.f32.gmra.mxu0 %v432
      %v1044 = vpop.f32.mrf.mxu0
      %v1045 = vadd.f32 %v932, %v1044
      %1046 = vmatmul.f32.gmra.mxu0 %v433
      %v1047 = vpop.f32.mrf.mxu0
      %v1048 = vadd.f32 %v935, %v1047
      %1049 = vmatmul.f32.gmra.mxu0 %v434
      %v1050 = vpop.f32.mrf.mxu0
      %v1051 = vadd.f32 %v938, %v1050
      %1052 = vmatmul.f32.gmra.mxu0 %v435
      %v1053 = vpop.f32.mrf.mxu0
      %v1054 = vadd.f32 %v941, %v1053
      %1055 = vmatmul.f32.gmra.mxu0 %v436
      %v1056 = vpop.f32.mrf.mxu0
      %v1057 = vadd.f32 %v944, %v1056
      %1058 = vmatmul.f32.gmra.mxu0 %v437
      %v1059 = vpop.f32.mrf.mxu0
      %v1060 = vadd.f32 %v947, %v1059
      %1061 = vmatmul.f32.gmra.mxu0 %v438
      %v1062 = vpop.f32.mrf.mxu0
      %v1063 = vadd.f32 %v950, %v1062
      %1064 = vmatmul.f32.gmra.mxu0 %v439
      %v1065 = vpop.f32.mrf.mxu0
      %v1066 = vadd.f32 %v953, %v1065
      %1067 = vmatmul.f32.gmra.mxu0 %v440
      %v1068 = vpop.f32.mrf.mxu0
      %v1069 = vadd.f32 %v956, %v1068
      %1070 = vmatmul.f32.gmra.mxu0 %v441
      %v1071 = vpop.f32.mrf.mxu0
      %v1072 = vadd.f32 %v959, %v1071
      %1073 = vmatmul.f32.gmra.mxu0 %v442
      %v1074 = vpop.f32.mrf.mxu0
      %v1075 = vadd.f32 %v962, %v1074
      %1076 = vmatmul.f32.gmra.mxu0 %v443
      %v1077 = vpop.f32.mrf.mxu0
      %v1078 = vadd.f32 %v965, %v1077
      %1079 = vmatmul.f32.gmra.mxu0 %v444
      %v1080 = vpop.f32.mrf.mxu0
      %v1081 = vadd.f32 %v968, %v1080
      %1082 = vmatmul.f32.gmra.mxu0 %v445
      %v1083 = vpop.f32.mrf.mxu0
      %v1084 = vadd.f32 %v971, %v1083
      %1085 = vmatmul.f32.gmra.mxu0 %v446
      %v1086 = vpop.f32.mrf.mxu0
      %v1087 = vadd.f32 %v974, %v1086
      %1088 = vmatmul.f32.gmra.mxu0 %v447
      %v1089 = vpop.f32.mrf.mxu0
      %v1090 = vadd.f32 %v977, %v1089
      %1091 = vmatmul.f32.gmra.mxu0 %v448
      %v1092 = vpop.f32.mrf.mxu0
      %v1093 = vadd.f32 %v980, %v1092
      %1094 = vmatmul.f32.gmra.mxu0 %v449
      %v1095 = vpop.f32.mrf.mxu0
      %v1096 = vadd.f32 %v983, %v1095
      %1097 = vmatmul.f32.gmra.mxu0 %v450
      %v1098 = vpop.f32.mrf.mxu0
      %v1099 = vadd.f32 %v986, %v1098
      %1100 = vmatmul.f32.gmra.mxu0 %v451
      %v1101 = vpop.f32.mrf.mxu0
      %v1102 = vadd.f32 %v989, %v1101
      %1103 = vmatmul.f32.gmra.mxu0 %v452
      %v1104 = vpop.f32.mrf.mxu0
      %v1105 = vadd.f32 %v992, %v1104
      %1106 = vmatmul.f32.gmra.mxu0 %v453
      %v1107 = vpop.f32.mrf.mxu0
      %v1108 = vadd.f32 %v995, %v1107
      %1109 = vmatmul.f32.gmra.mxu0 %v454
      %v1110 = vpop.f32.mrf.mxu0
      %v1111 = vadd.f32 %v998, %v1110
      %1112 = vmatmul.f32.gmra.mxu0 %v455
      %v1113 = vpop.f32.mrf.mxu0
      %v1114 = vadd.f32 %v1001, %v1113
      %1115 = vmatmul.f32.gmra.mxu0 %v456
      %v1116 = vpop.f32.mrf.mxu0
      %v1117 = vadd.f32 %v1004, %v1116
      %1118 = vmatmul.f32.gmra.mxu0 %v457
      %v1119 = vpop.f32.mrf.mxu0
      %v1120 = vadd.f32 %v1007, %v1119
      %1121 = vmatmul.f32.gmra.mxu0 %v458
      %v1122 = vpop.f32.mrf.mxu0
      %v1123 = vadd.f32 %v1010, %v1122
      %1124 = vmatmul.f32.gmra.mxu0 %v459
      %v1125 = vpop.f32.mrf.mxu0
      %v1126 = vadd.f32 %v1013, %v1125
      %1127 = vmatmul.f32.gmra.mxu0 %v460
      %v1128 = vpop.f32.mrf.mxu0
      %v1129 = vadd.f32 %v1016, %v1128
      %1130 = vmatmul.f32.gmra.mxu0 %v461
      %v1131 = vpop.f32.mrf.mxu0
      %v1132 = vadd.f32 %v1019, %v1131
      %1133 = vmatmul.f32.gmra.mxu0 %v462
      %v1134 = vpop.f32.mrf.mxu0
      %v1135 = vadd.f32 %v1022, %v1134
      %1136 = vmatmul.f32.gmra.mxu0 %v463
      %v1137 = vpop.f32.mrf.mxu0
      %v1138 = vadd.f32 %v1025, %v1137
      %1139 = vdwg.mxu0
      %1140 = vmatpush.msra.mxu0 %v720
      %1141 = vmatpush.msra.mxu0 %v719
      %1142 = vmatpush.msra.mxu0 %v718
      %1143 = vmatpush.msra.mxu0 %v717
      %1144 = vmatpush.msra.mxu0 %v716
      %1145 = vmatpush.msra.mxu0 %v715
      %1146 = vmatpush.msra.mxu0 %v714
      %1147 = vmatpush.msra.mxu0 %v713
      %1148 = vmatpush.msra.mxu0 %v712
      %1149 = vmatpush.msra.mxu0 %v711
      %1150 = vmatpush.msra.mxu0 %v710
      %1151 = vmatpush.msra.mxu0 %v709
      %1152 = vmatpush.msra.mxu0 %v708
      %1153 = vmatpush.msra.mxu0 %v707
      %1154 = vmatpush.msra.mxu0 %v706
      %1155 = vmatpush.msra.mxu0 %v705
      %1156 = vmatmul.f32.gmra.mxu0 %v464
      %v1157 = vpop.f32.mrf.mxu0
      %v1158 = vadd.f32 %v1045, %v1157
      %1159 = vmatmul.f32.gmra.mxu0 %v465
      %v1160 = vpop.f32.mrf.mxu0
      %v1161 = vadd.f32 %v1048, %v1160
      %1162 = vmatmul.f32.gmra.mxu0 %v466
      %v1163 = vpop.f32.mrf.mxu0
      %v1164 = vadd.f32 %v1051, %v1163
      %1165 = vmatmul.f32.gmra.mxu0 %v467
      %v1166 = vpop.f32.mrf.mxu0
      %v1167 = vadd.f32 %v1054, %v1166
      %1168 = vmatmul.f32.gmra.mxu0 %v468
      %v1169 = vpop.f32.mrf.mxu0
      %v1170 = vadd.f32 %v1057, %v1169
      %1171 = vmatmul.f32.gmra.mxu0 %v469
      %v1172 = vpop.f32.mrf.mxu0
      %v1173 = vadd.f32 %v1060, %v1172
      %1174 = vmatmul.f32.gmra.mxu0 %v470
      %v1175 = vpop.f32.mrf.mxu0
      %v1176 = vadd.f32 %v1063, %v1175
      %1177 = vmatmul.f32.gmra.mxu0 %v471
      %v1178 = vpop.f32.mrf.mxu0
      %v1179 = vadd.f32 %v1066, %v1178
      %1180 = vmatmul.f32.gmra.mxu0 %v472
      %v1181 = vpop.f32.mrf.mxu0
      %v1182 = vadd.f32 %v1069, %v1181
      %1183 = vmatmul.f32.gmra.mxu0 %v473
      %v1184 = vpop.f32.mrf.mxu0
      %v1185 = vadd.f32 %v1072, %v1184
      %1186 = vmatmul.f32.gmra.mxu0 %v474
      %v1187 = vpop.f32.mrf.mxu0
      %v1188 = vadd.f32 %v1075, %v1187
      %1189 = vmatmul.f32.gmra.mxu0 %v475
      %v1190 = vpop.f32.mrf.mxu0
      %v1191 = vadd.f32 %v1078, %v1190
      %1192 = vmatmul.f32.gmra.mxu0 %v476
      %v1193 = vpop.f32.mrf.mxu0
      %v1194 = vadd.f32 %v1081, %v1193
      %1195 = vmatmul.f32.gmra.mxu0 %v477
      %v1196 = vpop.f32.mrf.mxu0
      %v1197 = vadd.f32 %v1084, %v1196
      %1198 = vmatmul.f32.gmra.mxu0 %v478
      %v1199 = vpop.f32.mrf.mxu0
      %v1200 = vadd.f32 %v1087, %v1199
      %1201 = vmatmul.f32.gmra.mxu0 %v479
      %v1202 = vpop.f32.mrf.mxu0
      %v1203 = vadd.f32 %v1090, %v1202
      %1204 = vmatmul.f32.gmra.mxu0 %v480
      %v1205 = vpop.f32.mrf.mxu0
      %v1206 = vadd.f32 %v1093, %v1205
      %1207 = vmatmul.f32.gmra.mxu0 %v481
      %v1208 = vpop.f32.mrf.mxu0
      %v1209 = vadd.f32 %v1096, %v1208
      %1210 = vmatmul.f32.gmra.mxu0 %v482
      %v1211 = vpop.f32.mrf.mxu0
      %v1212 = vadd.f32 %v1099, %v1211
      %1213 = vmatmul.f32.gmra.mxu0 %v483
      %v1214 = vpop.f32.mrf.mxu0
      %v1215 = vadd.f32 %v1102, %v1214
      %1216 = vmatmul.f32.gmra.mxu0 %v484
      %v1217 = vpop.f32.mrf.mxu0
      %v1218 = vadd.f32 %v1105, %v1217
      %1219 = vmatmul.f32.gmra.mxu0 %v485
      %v1220 = vpop.f32.mrf.mxu0
      %v1221 = vadd.f32 %v1108, %v1220
      %1222 = vmatmul.f32.gmra.mxu0 %v486
      %v1223 = vpop.f32.mrf.mxu0
      %v1224 = vadd.f32 %v1111, %v1223
      %1225 = vmatmul.f32.gmra.mxu0 %v487
      %v1226 = vpop.f32.mrf.mxu0
      %v1227 = vadd.f32 %v1114, %v1226
      %1228 = vmatmul.f32.gmra.mxu0 %v488
      %v1229 = vpop.f32.mrf.mxu0
      %v1230 = vadd.f32 %v1117, %v1229
      %1231 = vmatmul.f32.gmra.mxu0 %v489
      %v1232 = vpop.f32.mrf.mxu0
      %v1233 = vadd.f32 %v1120, %v1232
      %1234 = vmatmul.f32.gmra.mxu0 %v490
      %v1235 = vpop.f32.mrf.mxu0
      %v1236 = vadd.f32 %v1123, %v1235
      %1237 = vmatmul.f32.gmra.mxu0 %v491
      %v1238 = vpop.f32.mrf.mxu0
      %v1239 = vadd.f32 %v1126, %v1238
      %1240 = vmatmul.f32.gmra.mxu0 %v492
      %v1241 = vpop.f32.mrf.mxu0
      %v1242 = vadd.f32 %v1129, %v1241
      %1243 = vmatmul.f32.gmra.mxu0 %v493
      %v1244 = vpop.f32.mrf.mxu0
      %v1245 = vadd.f32 %v1132, %v1244
      %1246 = vmatmul.f32.gmra.mxu0 %v494
      %v1247 = vpop.f32.mrf.mxu0
      %v1248 = vadd.f32 %v1135, %v1247
      %1249 = vmatmul.f32.gmra.mxu0 %v495
      %v1250 = vpop.f32.mrf.mxu0
      %v1251 = vadd.f32 %v1138, %v1250
      %1252 = vdwg.mxu0
      %1253 = vmatpush.msra.mxu0 %v736
      %1254 = vmatpush.msra.mxu0 %v735
      %1255 = vmatpush.msra.mxu0 %v734
      %1256 = vmatpush.msra.mxu0 %v733
      %1257 = vmatpush.msra.mxu0 %v732
      %1258 = vmatpush.msra.mxu0 %v731
      %1259 = vmatpush.msra.mxu0 %v730
      %1260 = vmatpush.msra.mxu0 %v729
      %1261 = vmatpush.msra.mxu0 %v728
      %1262 = vmatpush.msra.mxu0 %v727
      %1263 = vmatpush.msra.mxu0 %v726
      %1264 = vmatpush.msra.mxu0 %v725
      %1265 = vmatpush.msra.mxu0 %v724
      %1266 = vmatpush.msra.mxu0 %v723
      %1267 = vmatpush.msra.mxu0 %v722
      %1268 = vmatpush.msra.mxu0 %v721
      %1269 = vmatmul.f32.gmra.mxu0 %v496
      %v1270 = vpop.f32.mrf.mxu0
      %v1271 = vadd.f32 %v1158, %v1270
      %1272 = vmatmul.f32.gmra.mxu0 %v497
      %v1273 = vpop.f32.mrf.mxu0
      %v1274 = vadd.f32 %v1161, %v1273
      %1275 = vmatmul.f32.gmra.mxu0 %v498
      %v1276 = vpop.f32.mrf.mxu0
      %v1277 = vadd.f32 %v1164, %v1276
      %1278 = vmatmul.f32.gmra.mxu0 %v499
      %v1279 = vpop.f32.mrf.mxu0
      %v1280 = vadd.f32 %v1167, %v1279
      %1281 = vmatmul.f32.gmra.mxu0 %v500
      %v1282 = vpop.f32.mrf.mxu0
      %v1283 = vadd.f32 %v1170, %v1282
      %1284 = vmatmul.f32.gmra.mxu0 %v501
      %v1285 = vpop.f32.mrf.mxu0
      %v1286 = vadd.f32 %v1173, %v1285
      %1287 = vmatmul.f32.gmra.mxu0 %v502
      %v1288 = vpop.f32.mrf.mxu0
      %v1289 = vadd.f32 %v1176, %v1288
      %1290 = vmatmul.f32.gmra.mxu0 %v503
      %v1291 = vpop.f32.mrf.mxu0
      %v1292 = vadd.f32 %v1179, %v1291
      %1293 = vmatmul.f32.gmra.mxu0 %v504
      %v1294 = vpop.f32.mrf.mxu0
      %v1295 = vadd.f32 %v1182, %v1294
      %1296 = vmatmul.f32.gmra.mxu0 %v505
      %v1297 = vpop.f32.mrf.mxu0
      %v1298 = vadd.f32 %v1185, %v1297
      %1299 = vmatmul.f32.gmra.mxu0 %v506
      %v1300 = vpop.f32.mrf.mxu0
      %v1301 = vadd.f32 %v1188, %v1300
      %1302 = vmatmul.f32.gmra.mxu0 %v507
      %v1303 = vpop.f32.mrf.mxu0
      %v1304 = vadd.f32 %v1191, %v1303
      %1305 = vmatmul.f32.gmra.mxu0 %v508
      %v1306 = vpop.f32.mrf.mxu0
      %v1307 = vadd.f32 %v1194, %v1306
      %1308 = vmatmul.f32.gmra.mxu0 %v509
      %v1309 = vpop.f32.mrf.mxu0
      %v1310 = vadd.f32 %v1197, %v1309
      %1311 = vmatmul.f32.gmra.mxu0 %v510
      %v1312 = vpop.f32.mrf.mxu0
      %v1313 = vadd.f32 %v1200, %v1312
      %1314 = vmatmul.f32.gmra.mxu0 %v511
      %v1315 = vpop.f32.mrf.mxu0
      %v1316 = vadd.f32 %v1203, %v1315
      %1317 = vmatmul.f32.gmra.mxu0 %v512
      %v1318 = vpop.f32.mrf.mxu0
      %v1319 = vadd.f32 %v1206, %v1318
      %1320 = vmatmul.f32.gmra.mxu0 %v513
      %v1321 = vpop.f32.mrf.mxu0
      %v1322 = vadd.f32 %v1209, %v1321
      %1323 = vmatmul.f32.gmra.mxu0 %v514
      %v1324 = vpop.f32.mrf.mxu0
      %v1325 = vadd.f32 %v1212, %v1324
      %1326 = vmatmul.f32.gmra.mxu0 %v515
      %v1327 = vpop.f32.mrf.mxu0
      %v1328 = vadd.f32 %v1215, %v1327
      %1329 = vmatmul.f32.gmra.mxu0 %v516
      %v1330 = vpop.f32.mrf.mxu0
      %v1331 = vadd.f32 %v1218, %v1330
      %1332 = vmatmul.f32.gmra.mxu0 %v517
      %v1333 = vpop.f32.mrf.mxu0
      %v1334 = vadd.f32 %v1221, %v1333
      %1335 = vmatmul.f32.gmra.mxu0 %v518
      %v1336 = vpop.f32.mrf.mxu0
      %v1337 = vadd.f32 %v1224, %v1336
      %1338 = vmatmul.f32.gmra.mxu0 %v519
      %v1339 = vpop.f32.mrf.mxu0
      %v1340 = vadd.f32 %v1227, %v1339
      %1341 = vmatmul.f32.gmra.mxu0 %v520
      %v1342 = vpop.f32.mrf.mxu0
      %v1343 = vadd.f32 %v1230, %v1342
      %1344 = vmatmul.f32.gmra.mxu0 %v521
      %v1345 = vpop.f32.mrf.mxu0
      %v1346 = vadd.f32 %v1233, %v1345
      %1347 = vmatmul.f32.gmra.mxu0 %v522
      %v1348 = vpop.f32.mrf.mxu0
      %v1349 = vadd.f32 %v1236, %v1348
      %1350 = vmatmul.f32.gmra.mxu0 %v523
      %v1351 = vpop.f32.mrf.mxu0
      %v1352 = vadd.f32 %v1239, %v1351
      %1353 = vmatmul.f32.gmra.mxu0 %v524
      %v1354 = vpop.f32.mrf.mxu0
      %v1355 = vadd.f32 %v1242, %v1354
      %1356 = vmatmul.f32.gmra.mxu0 %v525
      %v1357 = vpop.f32.mrf.mxu0
      %v1358 = vadd.f32 %v1245, %v1357
      %1359 = vmatmul.f32.gmra.mxu0 %v526
      %v1360 = vpop.f32.mrf.mxu0
      %v1361 = vadd.f32 %v1248, %v1360
      %1362 = vmatmul.f32.gmra.mxu0 %v527
      %v1363 = vpop.f32.mrf.mxu0
      %v1364 = vadd.f32 %v1251, %v1363
      %1365 = vdwg.mxu0
      %1366 = vmatpush.msra.mxu0 %v752
      %1367 = vmatpush.msra.mxu0 %v751
      %1368 = vmatpush.msra.mxu0 %v750
      %1369 = vmatpush.msra.mxu0 %v749
      %1370 = vmatpush.msra.mxu0 %v748
      %1371 = vmatpush.msra.mxu0 %v747
      %1372 = vmatpush.msra.mxu0 %v746
      %1373 = vmatpush.msra.mxu0 %v745
      %1374 = vmatpush.msra.mxu0 %v744
      %1375 = vmatpush.msra.mxu0 %v743
      %1376 = vmatpush.msra.mxu0 %v742
      %1377 = vmatpush.msra.mxu0 %v741
      %1378 = vmatpush.msra.mxu0 %v740
      %1379 = vmatpush.msra.mxu0 %v739
      %1380 = vmatpush.msra.mxu0 %v738
      %1381 = vmatpush.msra.mxu0 %v737
      %1382 = vmatmul.f32.gmra.mxu0 %v528
      %v1383 = vpop.f32.mrf.mxu0
      %v1384 = vadd.f32 %v1271, %v1383
      %1385 = vmatmul.f32.gmra.mxu0 %v529
      %v1386 = vpop.f32.mrf.mxu0
      %v1387 = vadd.f32 %v1274, %v1386
      %1388 = vmatmul.f32.gmra.mxu0 %v530
      %v1389 = vpop.f32.mrf.mxu0
      %v1390 = vadd.f32 %v1277, %v1389
      %1391 = vmatmul.f32.gmra.mxu0 %v531
      %v1392 = vpop.f32.mrf.mxu0
      %v1393 = vadd.f32 %v1280, %v1392
      %1394 = vmatmul.f32.gmra.mxu0 %v532
      %v1395 = vpop.f32.mrf.mxu0
      %v1396 = vadd.f32 %v1283, %v1395
      %1397 = vmatmul.f32.gmra.mxu0 %v533
      %v1398 = vpop.f32.mrf.mxu0
      %v1399 = vadd.f32 %v1286, %v1398
      %1400 = vmatmul.f32.gmra.mxu0 %v534
      %v1401 = vpop.f32.mrf.mxu0
      %v1402 = vadd.f32 %v1289, %v1401
      %1403 = vmatmul.f32.gmra.mxu0 %v535
      %v1404 = vpop.f32.mrf.mxu0
      %v1405 = vadd.f32 %v1292, %v1404
      %1406 = vmatmul.f32.gmra.mxu0 %v536
      %v1407 = vpop.f32.mrf.mxu0
      %v1408 = vadd.f32 %v1295, %v1407
      %1409 = vmatmul.f32.gmra.mxu0 %v537
      %v1410 = vpop.f32.mrf.mxu0
      %v1411 = vadd.f32 %v1298, %v1410
      %1412 = vmatmul.f32.gmra.mxu0 %v538
      %v1413 = vpop.f32.mrf.mxu0
      %v1414 = vadd.f32 %v1301, %v1413
      %1415 = vmatmul.f32.gmra.mxu0 %v539
      %v1416 = vpop.f32.mrf.mxu0
      %v1417 = vadd.f32 %v1304, %v1416
      %1418 = vmatmul.f32.gmra.mxu0 %v540
      %v1419 = vpop.f32.mrf.mxu0
      %v1420 = vadd.f32 %v1307, %v1419
      %1421 = vmatmul.f32.gmra.mxu0 %v541
      %v1422 = vpop.f32.mrf.mxu0
      %v1423 = vadd.f32 %v1310, %v1422
      %1424 = vmatmul.f32.gmra.mxu0 %v542
      %v1425 = vpop.f32.mrf.mxu0
      %v1426 = vadd.f32 %v1313, %v1425
      %1427 = vmatmul.f32.gmra.mxu0 %v543
      %v1428 = vpop.f32.mrf.mxu0
      %v1429 = vadd.f32 %v1316, %v1428
      %1430 = vmatmul.f32.gmra.mxu0 %v544
      %v1431 = vpop.f32.mrf.mxu0
      %v1432 = vadd.f32 %v1319, %v1431
      %1433 = vmatmul.f32.gmra.mxu0 %v545
      %v1434 = vpop.f32.mrf.mxu0
      %v1435 = vadd.f32 %v1322, %v1434
      %1436 = vmatmul.f32.gmra.mxu0 %v546
      %v1437 = vpop.f32.mrf.mxu0
      %v1438 = vadd.f32 %v1325, %v1437
      %1439 = vmatmul.f32.gmra.mxu0 %v547
      %v1440 = vpop.f32.mrf.mxu0
      %v1441 = vadd.f32 %v1328, %v1440
      %1442 = vmatmul.f32.gmra.mxu0 %v548
      %v1443 = vpop.f32.mrf.mxu0
      %v1444 = vadd.f32 %v1331, %v1443
      %1445 = vmatmul.f32.gmra.mxu0 %v549
      %v1446 = vpop.f32.mrf.mxu0
      %v1447 = vadd.f32 %v1334, %v1446
      %1448 = vmatmul.f32.gmra.mxu0 %v550
      %v1449 = vpop.f32.mrf.mxu0
      %v1450 = vadd.f32 %v1337, %v1449
      %1451 = vmatmul.f32.gmra.mxu0 %v551
      %v1452 = vpop.f32.mrf.mxu0
      %v1453 = vadd.f32 %v1340, %v1452
      %1454 = vmatmul.f32.gmra.mxu0 %v552
      %v1455 = vpop.f32.mrf.mxu0
      %v1456 = vadd.f32 %v1343, %v1455
      %1457 = vmatmul.f32.gmra.mxu0 %v553
      %v1458 = vpop.f32.mrf.mxu0
      %v1459 = vadd.f32 %v1346, %v1458
      %1460 = vmatmul.f32.gmra.mxu0 %v554
      %v1461 = vpop.f32.mrf.mxu0
      %v1462 = vadd.f32 %v1349, %v1461
      %1463 = vmatmul.f32.gmra.mxu0 %v555
      %v1464 = vpop.f32.mrf.mxu0
      %v1465 = vadd.f32 %v1352, %v1464
      %1466 = vmatmul.f32.gmra.mxu0 %v556
      %v1467 = vpop.f32.mrf.mxu0
      %v1468 = vadd.f32 %v1355, %v1467
      %1469 = vmatmul.f32.gmra.mxu0 %v557
      %v1470 = vpop.f32.mrf.mxu0
      %v1471 = vadd.f32 %v1358, %v1470
      %1472 = vmatmul.f32.gmra.mxu0 %v558
      %v1473 = vpop.f32.mrf.mxu0
      %v1474 = vadd.f32 %v1361, %v1473
      %1475 = vmatmul.f32.gmra.mxu0 %v559
      %v1476 = vpop.f32.mrf.mxu0
      %v1477 = vadd.f32 %v1364, %v1476
      %1478 = vdwg.mxu0
      %1479 = vmatpush.msra.mxu0 %v768
      %1480 = vmatpush.msra.mxu0 %v767
      %1481 = vmatpush.msra.mxu0 %v766
      %1482 = vmatpush.msra.mxu0 %v765
      %1483 = vmatpush.msra.mxu0 %v764
      %1484 = vmatpush.msra.mxu0 %v763
      %1485 = vmatpush.msra.mxu0 %v762
      %1486 = vmatpush.msra.mxu0 %v761
      %1487 = vmatpush.msra.mxu0 %v760
      %1488 = vmatpush.msra.mxu0 %v759
      %1489 = vmatpush.msra.mxu0 %v758
      %1490 = vmatpush.msra.mxu0 %v757
      %1491 = vmatpush.msra.mxu0 %v756
      %1492 = vmatpush.msra.mxu0 %v755
      %1493 = vmatpush.msra.mxu0 %v754
      %1494 = vmatpush.msra.mxu0 %v753
      %1495 = vmatmul.f32.gmra.mxu0 %v561
      %v1496 = vpop.f32.mrf.mxu0
      %v1497 = vadd.f32 %v1384, %v1496
      %1498 = vmatmul.f32.gmra.mxu0 %v562
      %v1499 = vpop.f32.mrf.mxu0
      %v1500 = vadd.f32 %v1387, %v1499
      %1501 = vmatmul.f32.gmra.mxu0 %v563
      %v1502 = vpop.f32.mrf.mxu0
      %v1503 = vadd.f32 %v1390, %v1502
      %1504 = vmatmul.f32.gmra.mxu0 %v564
      %v1505 = vpop.f32.mrf.mxu0
      %v1506 = vadd.f32 %v1393, %v1505
      %1507 = vmatmul.f32.gmra.mxu0 %v565
      %v1508 = vpop.f32.mrf.mxu0
      %v1509 = vadd.f32 %v1396, %v1508
      %1510 = vmatmul.f32.gmra.mxu0 %v566
      %v1511 = vpop.f32.mrf.mxu0
      %v1512 = vadd.f32 %v1399, %v1511
      %1513 = vmatmul.f32.gmra.mxu0 %v567
      %v1514 = vpop.f32.mrf.mxu0
      %v1515 = vadd.f32 %v1402, %v1514
      %1516 = vmatmul.f32.gmra.mxu0 %v568
      %v1517 = vpop.f32.mrf.mxu0
      %v1518 = vadd.f32 %v1405, %v1517
      %1519 = vmatmul.f32.gmra.mxu0 %v569
      %v1520 = vpop.f32.mrf.mxu0
      %v1521 = vadd.f32 %v1408, %v1520
      %1522 = vmatmul.f32.gmra.mxu0 %v570
      %v1523 = vpop.f32.mrf.mxu0
      %v1524 = vadd.f32 %v1411, %v1523
      %1525 = vmatmul.f32.gmra.mxu0 %v571
      %v1526 = vpop.f32.mrf.mxu0
      %v1527 = vadd.f32 %v1414, %v1526
      %1528 = vmatmul.f32.gmra.mxu0 %v572
      %v1529 = vpop.f32.mrf.mxu0
      %v1530 = vadd.f32 %v1417, %v1529
      %1531 = vmatmul.f32.gmra.mxu0 %v573
      %v1532 = vpop.f32.mrf.mxu0
      %v1533 = vadd.f32 %v1420, %v1532
      %1534 = vmatmul.f32.gmra.mxu0 %v574
      %v1535 = vpop.f32.mrf.mxu0
      %v1536 = vadd.f32 %v1423, %v1535
      %1537 = vmatmul.f32.gmra.mxu0 %v575
      %v1538 = vpop.f32.mrf.mxu0
      %v1539 = vadd.f32 %v1426, %v1538
      %1540 = vmatmul.f32.gmra.mxu0 %v576
      %v1541 = vpop.f32.mrf.mxu0
      %v1542 = vadd.f32 %v1429, %v1541
      %1543 = vmatmul.f32.gmra.mxu0 %v577
      %v1544 = vpop.f32.mrf.mxu0
      %v1545 = vadd.f32 %v1432, %v1544
      %1546 = vmatmul.f32.gmra.mxu0 %v578
      %v1547 = vpop.f32.mrf.mxu0
      %v1548 = vadd.f32 %v1435, %v1547
      %1549 = vmatmul.f32.gmra.mxu0 %v579
      %v1550 = vpop.f32.mrf.mxu0
      %v1551 = vadd.f32 %v1438, %v1550
      %1552 = vmatmul.f32.gmra.mxu0 %v580
      %v1553 = vpop.f32.mrf.mxu0
      %v1554 = vadd.f32 %v1441, %v1553
      %1555 = vmatmul.f32.gmra.mxu0 %v581
      %v1556 = vpop.f32.mrf.mxu0
      %v1557 = vadd.f32 %v1444, %v1556
      %1558 = vmatmul.f32.gmra.mxu0 %v582
      %v1559 = vpop.f32.mrf.mxu0
      %v1560 = vadd.f32 %v1447, %v1559
      %1561 = vmatmul.f32.gmra.mxu0 %v583
      %v1562 = vpop.f32.mrf.mxu0
      %v1563 = vadd.f32 %v1450, %v1562
      %1564 = vmatmul.f32.gmra.mxu0 %v584
      %v1565 = vpop.f32.mrf.mxu0
      %v1566 = vadd.f32 %v1453, %v1565
      %1567 = vmatmul.f32.gmra.mxu0 %v585
      %v1568 = vpop.f32.mrf.mxu0
      %v1569 = vadd.f32 %v1456, %v1568
      %1570 = vmatmul.f32.gmra.mxu0 %v586
      %v1571 = vpop.f32.mrf.mxu0
      %v1572 = vadd.f32 %v1459, %v1571
      %1573 = vmatmul.f32.gmra.mxu0 %v587
      %v1574 = vpop.f32.mrf.mxu0
      %v1575 = vadd.f32 %v1462, %v1574
      %1576 = vmatmul.f32.gmra.mxu0 %v588
      %v1577 = vpop.f32.mrf.mxu0
      %v1578 = vadd.f32 %v1465, %v1577
      %1579 = vmatmul.f32.gmra.mxu0 %v589
      %v1580 = vpop.f32.mrf.mxu0
      %v1581 = vadd.f32 %v1468, %v1580
      %1582 = vmatmul.f32.gmra.mxu0 %v590
      %v1583 = vpop.f32.mrf.mxu0
      %v1584 = vadd.f32 %v1471, %v1583
      %1585 = vmatmul.f32.gmra.mxu0 %v591
      %v1586 = vpop.f32.mrf.mxu0
      %v1587 = vadd.f32 %v1474, %v1586
      %1588 = vmatmul.f32.gmra.mxu0 %v592
      %v1589 = vpop.f32.mrf.mxu0
      %v1590 = vadd.f32 %v1477, %v1589
      %1591 = vdwg.mxu0
      %1592 = vmatpush.msra.mxu0 %v784
      %1593 = vmatpush.msra.mxu0 %v783
      %1594 = vmatpush.msra.mxu0 %v782
      %1595 = vmatpush.msra.mxu0 %v781
      %1596 = vmatpush.msra.mxu0 %v780
      %1597 = vmatpush.msra.mxu0 %v779
      %1598 = vmatpush.msra.mxu0 %v778
      %1599 = vmatpush.msra.mxu0 %v777
      %1600 = vmatpush.msra.mxu0 %v776
      %1601 = vmatpush.msra.mxu0 %v775
      %1602 = vmatpush.msra.mxu0 %v774
      %1603 = vmatpush.msra.mxu0 %v773
      %1604 = vmatpush.msra.mxu0 %v772
      %1605 = vmatpush.msra.mxu0 %v771
      %1606 = vmatpush.msra.mxu0 %v770
      %1607 = vmatpush.msra.mxu0 %v769
      %1608 = vmatmul.f32.gmra.mxu0 %v593
      %v1609 = vpop.f32.mrf.mxu0
      %v1610 = vadd.f32 %v1497, %v1609
      %1611 = vmatmul.f32.gmra.mxu0 %v594
      %v1612 = vpop.f32.mrf.mxu0
      %v1613 = vadd.f32 %v1500, %v1612
      %1614 = vmatmul.f32.gmra.mxu0 %v595
      %v1615 = vpop.f32.mrf.mxu0
      %v1616 = vadd.f32 %v1503, %v1615
      %1617 = vmatmul.f32.gmra.mxu0 %v596
      %v1618 = vpop.f32.mrf.mxu0
      %v1619 = vadd.f32 %v1506, %v1618
      %1620 = vmatmul.f32.gmra.mxu0 %v597
      %v1621 = vpop.f32.mrf.mxu0
      %v1622 = vadd.f32 %v1509, %v1621
      %1623 = vmatmul.f32.gmra.mxu0 %v598
      %v1624 = vpop.f32.mrf.mxu0
      %v1625 = vadd.f32 %v1512, %v1624
      %1626 = vmatmul.f32.gmra.mxu0 %v599
      %v1627 = vpop.f32.mrf.mxu0
      %v1628 = vadd.f32 %v1515, %v1627
      %1629 = vmatmul.f32.gmra.mxu0 %v600
      %v1630 = vpop.f32.mrf.mxu0
      %v1631 = vadd.f32 %v1518, %v1630
      %1632 = vmatmul.f32.gmra.mxu0 %v601
      %v1633 = vpop.f32.mrf.mxu0
      %v1634 = vadd.f32 %v1521, %v1633
      %1635 = vmatmul.f32.gmra.mxu0 %v602
      %v1636 = vpop.f32.mrf.mxu0
      %v1637 = vadd.f32 %v1524, %v1636
      %1638 = vmatmul.f32.gmra.mxu0 %v603
      %v1639 = vpop.f32.mrf.mxu0
      %v1640 = vadd.f32 %v1527, %v1639
      %1641 = vmatmul.f32.gmra.mxu0 %v604
      %v1642 = vpop.f32.mrf.mxu0
      %v1643 = vadd.f32 %v1530, %v1642
      %1644 = vmatmul.f32.gmra.mxu0 %v605
      %v1645 = vpop.f32.mrf.mxu0
      %v1646 = vadd.f32 %v1533, %v1645
      %1647 = vmatmul.f32.gmra.mxu0 %v606
      %v1648 = vpop.f32.mrf.mxu0
      %v1649 = vadd.f32 %v1536, %v1648
      %1650 = vmatmul.f32.gmra.mxu0 %v607
      %v1651 = vpop.f32.mrf.mxu0
      %v1652 = vadd.f32 %v1539, %v1651
      %1653 = vmatmul.f32.gmra.mxu0 %v608
      %v1654 = vpop.f32.mrf.mxu0
      %v1655 = vadd.f32 %v1542, %v1654
      %1656 = vmatmul.f32.gmra.mxu0 %v609
      %v1657 = vpop.f32.mrf.mxu0
      %v1658 = vadd.f32 %v1545, %v1657
      %1659 = vmatmul.f32.gmra.mxu0 %v610
      %v1660 = vpop.f32.mrf.mxu0
      %v1661 = vadd.f32 %v1548, %v1660
      %1662 = vmatmul.f32.gmra.mxu0 %v611
      %v1663 = vpop.f32.mrf.mxu0
      %v1664 = vadd.f32 %v1551, %v1663
      %1665 = vmatmul.f32.gmra.mxu0 %v612
      %v1666 = vpop.f32.mrf.mxu0
      %v1667 = vadd.f32 %v1554, %v1666
      %1668 = vmatmul.f32.gmra.mxu0 %v613
      %v1669 = vpop.f32.mrf.mxu0
      %v1670 = vadd.f32 %v1557, %v1669
      %1671 = vmatmul.f32.gmra.mxu0 %v614
      %v1672 = vpop.f32.mrf.mxu0
      %v1673 = vadd.f32 %v1560, %v1672
      %1674 = vmatmul.f32.gmra.mxu0 %v615
      %v1675 = vpop.f32.mrf.mxu0
      %v1676 = vadd.f32 %v1563, %v1675
      %1677 = vmatmul.f32.gmra.mxu0 %v616
      %v1678 = vpop.f32.mrf.mxu0
      %v1679 = vadd.f32 %v1566, %v1678
      %1680 = vmatmul.f32.gmra.mxu0 %v617
      %v1681 = vpop.f32.mrf.mxu0
      %v1682 = vadd.f32 %v1569, %v1681
      %1683 = vmatmul.f32.gmra.mxu0 %v618
      %v1684 = vpop.f32.mrf.mxu0
      %v1685 = vadd.f32 %v1572, %v1684
      %1686 = vmatmul.f32.gmra.mxu0 %v619
      %v1687 = vpop.f32.mrf.mxu0
      %v1688 = vadd.f32 %v1575, %v1687
      %1689 = vmatmul.f32.gmra.mxu0 %v620
      %v1690 = vpop.f32.mrf.mxu0
      %v1691 = vadd.f32 %v1578, %v1690
      %1692 = vmatmul.f32.gmra.mxu0 %v621
      %v1693 = vpop.f32.mrf.mxu0
      %v1694 = vadd.f32 %v1581, %v1693
      %1695 = vmatmul.f32.gmra.mxu0 %v622
      %v1696 = vpop.f32.mrf.mxu0
      %v1697 = vadd.f32 %v1584, %v1696
      %1698 = vmatmul.f32.gmra.mxu0 %v623
      %v1699 = vpop.f32.mrf.mxu0
      %v1700 = vadd.f32 %v1587, %v1699
      %1701 = vmatmul.f32.gmra.mxu0 %v624
      %v1702 = vpop.f32.mrf.mxu0
      %v1703 = vadd.f32 %v1590, %v1702
      %1704 = vdwg.mxu0
      %1705 = vmatpush.msra.mxu0 %v800
      %1706 = vmatpush.msra.mxu0 %v799
      %1707 = vmatpush.msra.mxu0 %v798
      %1708 = vmatpush.msra.mxu0 %v797
      %1709 = vmatpush.msra.mxu0 %v796
      %1710 = vmatpush.msra.mxu0 %v795
      %1711 = vmatpush.msra.mxu0 %v794
      %1712 = vmatpush.msra.mxu0 %v793
      %1713 = vmatpush.msra.mxu0 %v792
      %1714 = vmatpush.msra.mxu0 %v791
      %1715 = vmatpush.msra.mxu0 %v790
      %1716 = vmatpush.msra.mxu0 %v789
      %1717 = vmatpush.msra.mxu0 %v788
      %1718 = vmatpush.msra.mxu0 %v787
      %1719 = vmatpush.msra.mxu0 %v786
      %1720 = vmatpush.msra.mxu0 %v785
      %1721 = vmatmul.f32.gmra.mxu0 %v625
      %v1722 = vpop.f32.mrf.mxu0
      %v1723 = vadd.f32 %v1610, %v1722
      %1724 = vmatmul.f32.gmra.mxu0 %v626
      %v1725 = vpop.f32.mrf.mxu0
      %v1726 = vadd.f32 %v1613, %v1725
      %1727 = vmatmul.f32.gmra.mxu0 %v627
      %v1728 = vpop.f32.mrf.mxu0
      %v1729 = vadd.f32 %v1616, %v1728
      %1730 = vmatmul.f32.gmra.mxu0 %v628
      %v1731 = vpop.f32.mrf.mxu0
      %v1732 = vadd.f32 %v1619, %v1731
      %1733 = vmatmul.f32.gmra.mxu0 %v629
      %v1734 = vpop.f32.mrf.mxu0
      %v1735 = vadd.f32 %v1622, %v1734
      %1736 = vmatmul.f32.gmra.mxu0 %v630
      %v1737 = vpop.f32.mrf.mxu0
      %v1738 = vadd.f32 %v1625, %v1737
      %1739 = vmatmul.f32.gmra.mxu0 %v631
      %v1740 = vpop.f32.mrf.mxu0
      %v1741 = vadd.f32 %v1628, %v1740
      %1742 = vmatmul.f32.gmra.mxu0 %v632
      %v1743 = vpop.f32.mrf.mxu0
      %v1744 = vadd.f32 %v1631, %v1743
      %1745 = vmatmul.f32.gmra.mxu0 %v633
      %v1746 = vpop.f32.mrf.mxu0
      %v1747 = vadd.f32 %v1634, %v1746
      %1748 = vmatmul.f32.gmra.mxu0 %v634
      %v1749 = vpop.f32.mrf.mxu0
      %v1750 = vadd.f32 %v1637, %v1749
      %1751 = vmatmul.f32.gmra.mxu0 %v635
      %v1752 = vpop.f32.mrf.mxu0
      %v1753 = vadd.f32 %v1640, %v1752
      %1754 = vmatmul.f32.gmra.mxu0 %v636
      %v1755 = vpop.f32.mrf.mxu0
      %v1756 = vadd.f32 %v1643, %v1755
      %1757 = vmatmul.f32.gmra.mxu0 %v637
      %v1758 = vpop.f32.mrf.mxu0
      %v1759 = vadd.f32 %v1646, %v1758
      %1760 = vmatmul.f32.gmra.mxu0 %v638
      %v1761 = vpop.f32.mrf.mxu0
      %v1762 = vadd.f32 %v1649, %v1761
      %1763 = vmatmul.f32.gmra.mxu0 %v639
      %v1764 = vpop.f32.mrf.mxu0
      %v1765 = vadd.f32 %v1652, %v1764
      %1766 = vmatmul.f32.gmra.mxu0 %v640
      %v1767 = vpop.f32.mrf.mxu0
      %v1768 = vadd.f32 %v1655, %v1767
      %1769 = vmatmul.f32.gmra.mxu0 %v641
      %v1770 = vpop.f32.mrf.mxu0
      %v1771 = vadd.f32 %v1658, %v1770
      %1772 = vmatmul.f32.gmra.mxu0 %v642
      %v1773 = vpop.f32.mrf.mxu0
      %v1774 = vadd.f32 %v1661, %v1773
      %1775 = vmatmul.f32.gmra.mxu0 %v643
      %v1776 = vpop.f32.mrf.mxu0
      %v1777 = vadd.f32 %v1664, %v1776
      %1778 = vmatmul.f32.gmra.mxu0 %v644
      %v1779 = vpop.f32.mrf.mxu0
      %v1780 = vadd.f32 %v1667, %v1779
      %1781 = vmatmul.f32.gmra.mxu0 %v645
      %v1782 = vpop.f32.mrf.mxu0
      %v1783 = vadd.f32 %v1670, %v1782
      %1784 = vmatmul.f32.gmra.mxu0 %v646
      %v1785 = vpop.f32.mrf.mxu0
      %v1786 = vadd.f32 %v1673, %v1785
      %1787 = vmatmul.f32.gmra.mxu0 %v647
      %v1788 = vpop.f32.mrf.mxu0
      %v1789 = vadd.f32 %v1676, %v1788
      %1790 = vmatmul.f32.gmra.mxu0 %v648
      %v1791 = vpop.f32.mrf.mxu0
      %v1792 = vadd.f32 %v1679, %v1791
      %1793 = vmatmul.f32.gmra.mxu0 %v649
      %v1794 = vpop.f32.mrf.mxu0
      %v1795 = vadd.f32 %v1682, %v1794
      %1796 = vmatmul.f32.gmra.mxu0 %v650
      %v1797 = vpop.f32.mrf.mxu0
      %v1798 = vadd.f32 %v1685, %v1797
      %1799 = vmatmul.f32.gmra.mxu0 %v651
      %v1800 = vpop.f32.mrf.mxu0
      %v1801 = vadd.f32 %v1688, %v1800
      %1802 = vmatmul.f32.gmra.mxu0 %v652
      %v1803 = vpop.f32.mrf.mxu0
      %v1804 = vadd.f32 %v1691, %v1803
      %1805 = vmatmul.f32.gmra.mxu0 %v653
      %v1806 = vpop.f32.mrf.mxu0
      %v1807 = vadd.f32 %v1694, %v1806
      %1808 = vmatmul.f32.gmra.mxu0 %v654
      %v1809 = vpop.f32.mrf.mxu0
      %v1810 = vadd.f32 %v1697, %v1809
      %1811 = vmatmul.f32.gmra.mxu0 %v655
      %v1812 = vpop.f32.mrf.mxu0
      %v1813 = vadd.f32 %v1700, %v1812
      %1814 = vmatmul.f32.gmra.mxu0 %v656
      %v1815 = vpop.f32.mrf.mxu0
      %v1816 = vadd.f32 %v1703, %v1815
      %1817 = vdwg.mxu0
      %v1818 = vld [vmem:[%s2] sm:$0xff]
      %v1819 = vld [vmem:[%s2 + $0x8] sm:$0xff]
      %v1820 = vld [vmem:[%s2 + $0x10] sm:$0xff]
      %v1821 = vld [vmem:[%s2 + $0x18] sm:$0xff]
      %v1822 = vld [vmem:[%s2 + $0x20] sm:$0xff]
      %v1823 = vld [vmem:[%s2 + $0x28] sm:$0xff]
      %v1824 = vld [vmem:[%s2 + $0x30] sm:$0xff]
      %v1825 = vld [vmem:[%s2 + $0x38] sm:$0xff]
      %v1826 = vld [vmem:[%s2 + $0x40] sm:$0xff]
      %v1827 = vld [vmem:[%s2 + $0x48] sm:$0xff]
      %v1828 = vld [vmem:[%s2 + $0x50] sm:$0xff]
      %v1829 = vld [vmem:[%s2 + $0x58] sm:$0xff]
      %v1830 = vld [vmem:[%s2 + $0x60] sm:$0xff]
      %v1831 = vld [vmem:[%s2 + $0x68] sm:$0xff]
      %v1832 = vld [vmem:[%s2 + $0x70] sm:$0xff]
      %v1833 = vld [vmem:[%s2 + $0x78] sm:$0xff]
      %v1834 = vld [vmem:[%s2 + $0x80] sm:$0xff]
      %v1835 = vld [vmem:[%s2 + $0x88] sm:$0xff]
      %v1836 = vld [vmem:[%s2 + $0x90] sm:$0xff]
      %v1837 = vld [vmem:[%s2 + $0x98] sm:$0xff]
      %v1838 = vld [vmem:[%s2 + $0xa0] sm:$0xff]
      %v1839 = vld [vmem:[%s2 + $0xa8] sm:$0xff]
      %v1840 = vld [vmem:[%s2 + $0xb0] sm:$0xff]
      %v1841 = vld [vmem:[%s2 + $0xb8] sm:$0xff]
      %v1842 = vld [vmem:[%s2 + $0xc0] sm:$0xff]
      %v1843 = vld [vmem:[%s2 + $0xc8] sm:$0xff]
      %v1844 = vld [vmem:[%s2 + $0xd0] sm:$0xff]
      %v1845 = vld [vmem:[%s2 + $0xd8] sm:$0xff]
      %v1846 = vld [vmem:[%s2 + $0xe0] sm:$0xff]
      %v1847 = vld [vmem:[%s2 + $0xe8] sm:$0xff]
      %v1848 = vld [vmem:[%s2 + $0xf0] sm:$0xff]
      %v1849 = vld [vmem:[%s2 + $0xf8] sm:$0xff]
      %v1850 = vld [vmem:[%s2 + $0x100] sm:$0xff]
      %v1851 = vld [vmem:[%s2 + $0x108] sm:$0xff]
      %v1852 = vld [vmem:[%s2 + $0x110] sm:$0xff]
      %v1853 = vld [vmem:[%s2 + $0x118] sm:$0xff]
      %v1854 = vld [vmem:[%s2 + $0x120] sm:$0xff]
      %v1855 = vld [vmem:[%s2 + $0x128] sm:$0xff]
      %v1856 = vld [vmem:[%s2 + $0x130] sm:$0xff]
      %v1857 = vld [vmem:[%s2 + $0x138] sm:$0xff]
      %v1858 = vld [vmem:[%s2 + $0x140] sm:$0xff]
      %v1859 = vld [vmem:[%s2 + $0x148] sm:$0xff]
      %v1860 = vld [vmem:[%s2 + $0x150] sm:$0xff]
      %v1861 = vld [vmem:[%s2 + $0x158] sm:$0xff]
      %v1862 = vld [vmem:[%s2 + $0x160] sm:$0xff]
      %v1863 = vld [vmem:[%s2 + $0x168] sm:$0xff]
      %v1864 = vld [vmem:[%s2 + $0x170] sm:$0xff]
      %v1865 = vld [vmem:[%s2 + $0x178] sm:$0xff]
      %v1866 = vld [vmem:[%s2 + $0x180] sm:$0xff]
      %v1867 = vld [vmem:[%s2 + $0x188] sm:$0xff]
      %v1868 = vld [vmem:[%s2 + $0x190] sm:$0xff]
      %v1869 = vld [vmem:[%s2 + $0x198] sm:$0xff]
      %v1870 = vld [vmem:[%s2 + $0x1a0] sm:$0xff]
      %v1871 = vld [vmem:[%s2 + $0x1a8] sm:$0xff]
      %v1872 = vld [vmem:[%s2 + $0x1b0] sm:$0xff]
      %v1873 = vld [vmem:[%s2 + $0x1b8] sm:$0xff]
      %v1874 = vld [vmem:[%s2 + $0x1c0] sm:$0xff]
      %v1875 = vld [vmem:[%s2 + $0x1c8] sm:$0xff]
      %v1876 = vld [vmem:[%s2 + $0x1d0] sm:$0xff]
      %v1877 = vld [vmem:[%s2 + $0x1d8] sm:$0xff]
      %v1878 = vld [vmem:[%s2 + $0x1e0] sm:$0xff]
      %v1879 = vld [vmem:[%s2 + $0x1e8] sm:$0xff]
      %v1880 = vld [vmem:[%s2 + $0x1f0] sm:$0xff]
      %v1881 = vld [vmem:[%s2 + $0x1f8] sm:$0xff]
      %v1882 = vld [vmem:[%s2 + $0x200] sm:$0xff]
      %v1883 = vld [vmem:[%s2 + $0x208] sm:$0xff]
      %v1884 = vld [vmem:[%s2 + $0x210] sm:$0xff]
      %v1885 = vld [vmem:[%s2 + $0x218] sm:$0xff]
      %v1886 = vld [vmem:[%s2 + $0x220] sm:$0xff]
      %v1887 = vld [vmem:[%s2 + $0x228] sm:$0xff]
      %v1888 = vld [vmem:[%s2 + $0x230] sm:$0xff]
      %v1889 = vld [vmem:[%s2 + $0x238] sm:$0xff]
      %v1890 = vld [vmem:[%s2 + $0x240] sm:$0xff]
      %v1891 = vld [vmem:[%s2 + $0x248] sm:$0xff]
      %v1892 = vld [vmem:[%s2 + $0x250] sm:$0xff]
      %v1893 = vld [vmem:[%s2 + $0x258] sm:$0xff]
      %v1894 = vld [vmem:[%s2 + $0x260] sm:$0xff]
      %v1895 = vld [vmem:[%s2 + $0x268] sm:$0xff]
      %v1896 = vld [vmem:[%s2 + $0x270] sm:$0xff]
      %v1897 = vld [vmem:[%s2 + $0x278] sm:$0xff]
      %v1898 = vld [vmem:[%s2 + $0x280] sm:$0xff]
      %v1899 = vld [vmem:[%s2 + $0x288] sm:$0xff]
      %v1900 = vld [vmem:[%s2 + $0x290] sm:$0xff]
      %v1901 = vld [vmem:[%s2 + $0x298] sm:$0xff]
      %v1902 = vld [vmem:[%s2 + $0x2a0] sm:$0xff]
      %v1903 = vld [vmem:[%s2 + $0x2a8] sm:$0xff]
      %v1904 = vld [vmem:[%s2 + $0x2b0] sm:$0xff]
      %v1905 = vld [vmem:[%s2 + $0x2b8] sm:$0xff]
      %v1906 = vld [vmem:[%s2 + $0x2c0] sm:$0xff]
      %v1907 = vld [vmem:[%s2 + $0x2c8] sm:$0xff]
      %v1908 = vld [vmem:[%s2 + $0x2d0] sm:$0xff]
      %v1909 = vld [vmem:[%s2 + $0x2d8] sm:$0xff]
      %v1910 = vld [vmem:[%s2 + $0x2e0] sm:$0xff]
      %v1911 = vld [vmem:[%s2 + $0x2e8] sm:$0xff]
      %v1912 = vld [vmem:[%s2 + $0x2f0] sm:$0xff]
      %v1913 = vld [vmem:[%s2 + $0x2f8] sm:$0xff]
      %v1914 = vld [vmem:[%s2 + $0x300] sm:$0xff]
      %v1915 = vld [vmem:[%s2 + $0x308] sm:$0xff]
      %v1916 = vld [vmem:[%s2 + $0x310] sm:$0xff]
      %v1917 = vld [vmem:[%s2 + $0x318] sm:$0xff]
      %v1918 = vld [vmem:[%s2 + $0x320] sm:$0xff]
      %v1919 = vld [vmem:[%s2 + $0x328] sm:$0xff]
      %v1920 = vld [vmem:[%s2 + $0x330] sm:$0xff]
      %v1921 = vld [vmem:[%s2 + $0x338] sm:$0xff]
      %v1922 = vld [vmem:[%s2 + $0x340] sm:$0xff]
      %v1923 = vld [vmem:[%s2 + $0x348] sm:$0xff]
      %v1924 = vld [vmem:[%s2 + $0x350] sm:$0xff]
      %v1925 = vld [vmem:[%s2 + $0x358] sm:$0xff]
      %v1926 = vld [vmem:[%s2 + $0x360] sm:$0xff]
      %v1927 = vld [vmem:[%s2 + $0x368] sm:$0xff]
      %v1928 = vld [vmem:[%s2 + $0x370] sm:$0xff]
      %v1929 = vld [vmem:[%s2 + $0x378] sm:$0xff]
      %v1930 = vld [vmem:[%s2 + $0x380] sm:$0xff]
      %v1931 = vld [vmem:[%s2 + $0x388] sm:$0xff]
      %v1932 = vld [vmem:[%s2 + $0x390] sm:$0xff]
      %v1933 = vld [vmem:[%s2 + $0x398] sm:$0xff]
      %v1934 = vld [vmem:[%s2 + $0x3a0] sm:$0xff]
      %v1935 = vld [vmem:[%s2 + $0x3a8] sm:$0xff]
      %v1936 = vld [vmem:[%s2 + $0x3b0] sm:$0xff]
      %v1937 = vld [vmem:[%s2 + $0x3b8] sm:$0xff]
      %v1938 = vld [vmem:[%s2 + $0x3c0] sm:$0xff]
      %v1939 = vld [vmem:[%s2 + $0x3c8] sm:$0xff]
      %v1940 = vld [vmem:[%s2 + $0x3d0] sm:$0xff]
      %v1941 = vld [vmem:[%s2 + $0x3d8] sm:$0xff]
      %v1942 = vld [vmem:[%s2 + $0x3e0] sm:$0xff]
      %v1943 = vld [vmem:[%s2 + $0x3e8] sm:$0xff]
      %v1944 = vld [vmem:[%s2 + $0x3f0] sm:$0xff]
      %v1945 = vld [vmem:[%s2 + $0x3f8] sm:$0xff]
      %v1946 = vld [vmem:[%s2 + $0x400] sm:$0xff]
      %v1947 = vld [vmem:[%s2 + $0x408] sm:$0xff]
      %v1948 = vld [vmem:[%s2 + $0x410] sm:$0xff]
      %v1949 = vld [vmem:[%s2 + $0x418] sm:$0xff]
      %v1950 = vld [vmem:[%s2 + $0x420] sm:$0xff]
      %v1951 = vld [vmem:[%s2 + $0x428] sm:$0xff]
      %v1952 = vld [vmem:[%s2 + $0x430] sm:$0xff]
      %v1953 = vld [vmem:[%s2 + $0x438] sm:$0xff]
      %v1954 = vld [vmem:[%s2 + $0x440] sm:$0xff]
      %v1955 = vld [vmem:[%s2 + $0x448] sm:$0xff]
      %v1956 = vld [vmem:[%s2 + $0x450] sm:$0xff]
      %v1957 = vld [vmem:[%s2 + $0x458] sm:$0xff]
      %v1958 = vld [vmem:[%s2 + $0x460] sm:$0xff]
      %v1959 = vld [vmem:[%s2 + $0x468] sm:$0xff]
      %v1960 = vld [vmem:[%s2 + $0x470] sm:$0xff]
      %v1961 = vld [vmem:[%s2 + $0x478] sm:$0xff]
      %1962 = vmatpush.msra.mxu0 %v1833
      %1963 = vmatpush.msra.mxu0 %v1832
      %1964 = vmatpush.msra.mxu0 %v1831
      %1965 = vmatpush.msra.mxu0 %v1830
      %1966 = vmatpush.msra.mxu0 %v1829
      %1967 = vmatpush.msra.mxu0 %v1828
      %1968 = vmatpush.msra.mxu0 %v1827
      %1969 = vmatpush.msra.mxu0 %v1826
      %1970 = vmatpush.msra.mxu0 %v1825
      %1971 = vmatpush.msra.mxu0 %v1824
      %1972 = vmatpush.msra.mxu0 %v1823
      %1973 = vmatpush.msra.mxu0 %v1822
      %1974 = vmatpush.msra.mxu0 %v1821
      %1975 = vmatpush.msra.mxu0 %v1820
      %1976 = vmatpush.msra.mxu0 %v1819
      %1977 = vmatpush.msra.mxu0 %v1818
      %1978 = vmatmul.f32.gmra.mxu0 %v368
      %v1979 = vpop.f32.mrf.mxu0
      %v1980 = vadd.f32 0.0, %v1979
      %1981 = vmatmul.f32.gmra.mxu0 %v369
      %v1982 = vpop.f32.mrf.mxu0
      %v1983 = vadd.f32 0.0, %v1982
      %1984 = vmatmul.f32.gmra.mxu0 %v370
      %v1985 = vpop.f32.mrf.mxu0
      %v1986 = vadd.f32 0.0, %v1985
      %1987 = vmatmul.f32.gmra.mxu0 %v371
      %v1988 = vpop.f32.mrf.mxu0
      %v1989 = vadd.f32 0.0, %v1988
      %1990 = vmatmul.f32.gmra.mxu0 %v372
      %v1991 = vpop.f32.mrf.mxu0
      %v1992 = vadd.f32 0.0, %v1991
      %1993 = vmatmul.f32.gmra.mxu0 %v373
      %v1994 = vpop.f32.mrf.mxu0
      %v1995 = vadd.f32 0.0, %v1994
      %1996 = vmatmul.f32.gmra.mxu0 %v374
      %v1997 = vpop.f32.mrf.mxu0
      %v1998 = vadd.f32 0.0, %v1997
      %1999 = vmatmul.f32.gmra.mxu0 %v375
      %v2000 = vpop.f32.mrf.mxu0
      %v2001 = vadd.f32 0.0, %v2000
      %2002 = vmatmul.f32.gmra.mxu0 %v376
      %v2003 = vpop.f32.mrf.mxu0
      %v2004 = vadd.f32 0.0, %v2003
      %2005 = vmatmul.f32.gmra.mxu0 %v377
      %v2006 = vpop.f32.mrf.mxu0
      %v2007 = vadd.f32 0.0, %v2006
      %2008 = vmatmul.f32.gmra.mxu0 %v378
      %v2009 = vpop.f32.mrf.mxu0
      %v2010 = vadd.f32 0.0, %v2009
      %2011 = vmatmul.f32.gmra.mxu0 %v379
      %v2012 = vpop.f32.mrf.mxu0
      %v2013 = vadd.f32 0.0, %v2012
      %2014 = vmatmul.f32.gmra.mxu0 %v380
      %v2015 = vpop.f32.mrf.mxu0
      %v2016 = vadd.f32 0.0, %v2015
      %2017 = vmatmul.f32.gmra.mxu0 %v381
      %v2018 = vpop.f32.mrf.mxu0
      %v2019 = vadd.f32 0.0, %v2018
      %2020 = vmatmul.f32.gmra.mxu0 %v382
      %v2021 = vpop.f32.mrf.mxu0
      %v2022 = vadd.f32 0.0, %v2021
      %2023 = vmatmul.f32.gmra.mxu0 %v383
      %v2024 = vpop.f32.mrf.mxu0
      %v2025 = vadd.f32 0.0, %v2024
      %2026 = vmatmul.f32.gmra.mxu0 %v384
      %v2027 = vpop.f32.mrf.mxu0
      %v2028 = vadd.f32 0.0, %v2027
      %2029 = vmatmul.f32.gmra.mxu0 %v385
      %v2030 = vpop.f32.mrf.mxu0
      %v2031 = vadd.f32 0.0, %v2030
      %2032 = vmatmul.f32.gmra.mxu0 %v386
      %v2033 = vpop.f32.mrf.mxu0
      %v2034 = vadd.f32 0.0, %v2033
      %2035 = vmatmul.f32.gmra.mxu0 %v387
      %v2036 = vpop.f32.mrf.mxu0
      %v2037 = vadd.f32 0.0, %v2036
      %2038 = vmatmul.f32.gmra.mxu0 %v388
      %v2039 = vpop.f32.mrf.mxu0
      %v2040 = vadd.f32 0.0, %v2039
      %2041 = vmatmul.f32.gmra.mxu0 %v389
      %v2042 = vpop.f32.mrf.mxu0
      %v2043 = vadd.f32 0.0, %v2042
      %2044 = vmatmul.f32.gmra.mxu0 %v390
      %v2045 = vpop.f32.mrf.mxu0
      %v2046 = vadd.f32 0.0, %v2045
      %2047 = vmatmul.f32.gmra.mxu0 %v391
      %v2048 = vpop.f32.mrf.mxu0
      %v2049 = vadd.f32 0.0, %v2048
      %2050 = vmatmul.f32.gmra.mxu0 %v392
      %v2051 = vpop.f32.mrf.mxu0
      %v2052 = vadd.f32 0.0, %v2051
      %2053 = vmatmul.f32.gmra.mxu0 %v393
      %v2054 = vpop.f32.mrf.mxu0
      %v2055 = vadd.f32 0.0, %v2054
      %2056 = vmatmul.f32.gmra.mxu0 %v394
      %v2057 = vpop.f32.mrf.mxu0
      %v2058 = vadd.f32 0.0, %v2057
      %2059 = vmatmul.f32.gmra.mxu0 %v395
      %v2060 = vpop.f32.mrf.mxu0
      %v2061 = vadd.f32 0.0, %v2060
      %2062 = vmatmul.f32.gmra.mxu0 %v396
      %v2063 = vpop.f32.mrf.mxu0
      %v2064 = vadd.f32 0.0, %v2063
      %2065 = vmatmul.f32.gmra.mxu0 %v397
      %v2066 = vpop.f32.mrf.mxu0
      %v2067 = vadd.f32 0.0, %v2066
      %2068 = vmatmul.f32.gmra.mxu0 %v398
      %v2069 = vpop.f32.mrf.mxu0
      %v2070 = vadd.f32 0.0, %v2069
      %2071 = vmatmul.f32.gmra.mxu0 %v399
      %v2072 = vpop.f32.mrf.mxu0
      %v2073 = vadd.f32 0.0, %v2072
      %2074 = vdwg.mxu0
      %2075 = vmatpush.msra.mxu0 %v1849
      %2076 = vmatpush.msra.mxu0 %v1848
      %2077 = vmatpush.msra.mxu0 %v1847
      %2078 = vmatpush.msra.mxu0 %v1846
      %2079 = vmatpush.msra.mxu0 %v1845
      %2080 = vmatpush.msra.mxu0 %v1844
      %2081 = vmatpush.msra.mxu0 %v1843
      %2082 = vmatpush.msra.mxu0 %v1842
      %2083 = vmatpush.msra.mxu0 %v1841
      %2084 = vmatpush.msra.mxu0 %v1840
      %2085 = vmatpush.msra.mxu0 %v1839
      %2086 = vmatpush.msra.mxu0 %v1838
      %2087 = vmatpush.msra.mxu0 %v1837
      %2088 = vmatpush.msra.mxu0 %v1836
      %2089 = vmatpush.msra.mxu0 %v1835
      %2090 = vmatpush.msra.mxu0 %v1834
      %2091 = vmatmul.f32.gmra.mxu0 %v400
      %v2092 = vpop.f32.mrf.mxu0
      %v2093 = vadd.f32 %v1980, %v2092
      %2094 = vmatmul.f32.gmra.mxu0 %v401
      %v2095 = vpop.f32.mrf.mxu0
      %v2096 = vadd.f32 %v1983, %v2095
      %2097 = vmatmul.f32.gmra.mxu0 %v402
      %v2098 = vpop.f32.mrf.mxu0
      %v2099 = vadd.f32 %v1986, %v2098
      %2100 = vmatmul.f32.gmra.mxu0 %v403
      %v2101 = vpop.f32.mrf.mxu0
      %v2102 = vadd.f32 %v1989, %v2101
      %2103 = vmatmul.f32.gmra.mxu0 %v404
      %v2104 = vpop.f32.mrf.mxu0
      %v2105 = vadd.f32 %v1992, %v2104
      %2106 = vmatmul.f32.gmra.mxu0 %v405
      %v2107 = vpop.f32.mrf.mxu0
      %v2108 = vadd.f32 %v1995, %v2107
      %2109 = vmatmul.f32.gmra.mxu0 %v406
      %v2110 = vpop.f32.mrf.mxu0
      %v2111 = vadd.f32 %v1998, %v2110
      %2112 = vmatmul.f32.gmra.mxu0 %v407
      %v2113 = vpop.f32.mrf.mxu0
      %v2114 = vadd.f32 %v2001, %v2113
      %2115 = vmatmul.f32.gmra.mxu0 %v408
      %v2116 = vpop.f32.mrf.mxu0
      %v2117 = vadd.f32 %v2004, %v2116
      %2118 = vmatmul.f32.gmra.mxu0 %v409
      %v2119 = vpop.f32.mrf.mxu0
      %v2120 = vadd.f32 %v2007, %v2119
      %2121 = vmatmul.f32.gmra.mxu0 %v410
      %v2122 = vpop.f32.mrf.mxu0
      %v2123 = vadd.f32 %v2010, %v2122
      %2124 = vmatmul.f32.gmra.mxu0 %v411
      %v2125 = vpop.f32.mrf.mxu0
      %v2126 = vadd.f32 %v2013, %v2125
      %2127 = vmatmul.f32.gmra.mxu0 %v412
      %v2128 = vpop.f32.mrf.mxu0
      %v2129 = vadd.f32 %v2016, %v2128
      %2130 = vmatmul.f32.gmra.mxu0 %v413
      %v2131 = vpop.f32.mrf.mxu0
      %v2132 = vadd.f32 %v2019, %v2131
      %2133 = vmatmul.f32.gmra.mxu0 %v414
      %v2134 = vpop.f32.mrf.mxu0
      %v2135 = vadd.f32 %v2022, %v2134
      %2136 = vmatmul.f32.gmra.mxu0 %v415
      %v2137 = vpop.f32.mrf.mxu0
      %v2138 = vadd.f32 %v2025, %v2137
      %2139 = vmatmul.f32.gmra.mxu0 %v416
      %v2140 = vpop.f32.mrf.mxu0
      %v2141 = vadd.f32 %v2028, %v2140
      %2142 = vmatmul.f32.gmra.mxu0 %v417
      %v2143 = vpop.f32.mrf.mxu0
      %v2144 = vadd.f32 %v2031, %v2143
      %2145 = vmatmul.f32.gmra.mxu0 %v418
      %v2146 = vpop.f32.mrf.mxu0
      %v2147 = vadd.f32 %v2034, %v2146
      %2148 = vmatmul.f32.gmra.mxu0 %v419
      %v2149 = vpop.f32.mrf.mxu0
      %v2150 = vadd.f32 %v2037, %v2149
      %2151 = vmatmul.f32.gmra.mxu0 %v420
      %v2152 = vpop.f32.mrf.mxu0
      %v2153 = vadd.f32 %v2040, %v2152
      %2154 = vmatmul.f32.gmra.mxu0 %v421
      %v2155 = vpop.f32.mrf.mxu0
      %v2156 = vadd.f32 %v2043, %v2155
      %2157 = vmatmul.f32.gmra.mxu0 %v422
      %v2158 = vpop.f32.mrf.mxu0
      %v2159 = vadd.f32 %v2046, %v2158
      %2160 = vmatmul.f32.gmra.mxu0 %v423
      %v2161 = vpop.f32.mrf.mxu0
      %v2162 = vadd.f32 %v2049, %v2161
      %2163 = vmatmul.f32.gmra.mxu0 %v424
      %v2164 = vpop.f32.mrf.mxu0
      %v2165 = vadd.f32 %v2052, %v2164
      %2166 = vmatmul.f32.gmra.mxu0 %v425
      %v2167 = vpop.f32.mrf.mxu0
      %v2168 = vadd.f32 %v2055, %v2167
      %2169 = vmatmul.f32.gmra.mxu0 %v426
      %v2170 = vpop.f32.mrf.mxu0
      %v2171 = vadd.f32 %v2058, %v2170
      %2172 = vmatmul.f32.gmra.mxu0 %v427
      %v2173 = vpop.f32.mrf.mxu0
      %v2174 = vadd.f32 %v2061, %v2173
      %2175 = vmatmul.f32.gmra.mxu0 %v428
      %v2176 = vpop.f32.mrf.mxu0
      %v2177 = vadd.f32 %v2064, %v2176
      %2178 = vmatmul.f32.gmra.mxu0 %v429
      %v2179 = vpop.f32.mrf.mxu0
      %v2180 = vadd.f32 %v2067, %v2179
      %2181 = vmatmul.f32.gmra.mxu0 %v430
      %v2182 = vpop.f32.mrf.mxu0
      %v2183 = vadd.f32 %v2070, %v2182
      %2184 = vmatmul.f32.gmra.mxu0 %v431
      %v2185 = vpop.f32.mrf.mxu0
      %v2186 = vadd.f32 %v2073, %v2185
      %2187 = vdwg.mxu0
      %2188 = vmatpush.msra.mxu0 %v1865
      %2189 = vmatpush.msra.mxu0 %v1864
      %2190 = vmatpush.msra.mxu0 %v1863
      %2191 = vmatpush.msra.mxu0 %v1862
      %2192 = vmatpush.msra.mxu0 %v1861
      %2193 = vmatpush.msra.mxu0 %v1860
      %2194 = vmatpush.msra.mxu0 %v1859
      %2195 = vmatpush.msra.mxu0 %v1858
      %2196 = vmatpush.msra.mxu0 %v1857
      %2197 = vmatpush.msra.mxu0 %v1856
      %2198 = vmatpush.msra.mxu0 %v1855
      %2199 = vmatpush.msra.mxu0 %v1854
      %2200 = vmatpush.msra.mxu0 %v1853
      %2201 = vmatpush.msra.mxu0 %v1852
      %2202 = vmatpush.msra.mxu0 %v1851
      %2203 = vmatpush.msra.mxu0 %v1850
      %2204 = vmatmul.f32.gmra.mxu0 %v432
      %v2205 = vpop.f32.mrf.mxu0
      %v2206 = vadd.f32 %v2093, %v2205
      %2207 = vmatmul.f32.gmra.mxu0 %v433
      %v2208 = vpop.f32.mrf.mxu0
      %v2209 = vadd.f32 %v2096, %v2208
      %2210 = vmatmul.f32.gmra.mxu0 %v434
      %v2211 = vpop.f32.mrf.mxu0
      %v2212 = vadd.f32 %v2099, %v2211
      %2213 = vmatmul.f32.gmra.mxu0 %v435
      %v2214 = vpop.f32.mrf.mxu0
      %v2215 = vadd.f32 %v2102, %v2214
      %2216 = vmatmul.f32.gmra.mxu0 %v436
      %v2217 = vpop.f32.mrf.mxu0
      %v2218 = vadd.f32 %v2105, %v2217
      %2219 = vmatmul.f32.gmra.mxu0 %v437
      %v2220 = vpop.f32.mrf.mxu0
      %v2221 = vadd.f32 %v2108, %v2220
      %2222 = vmatmul.f32.gmra.mxu0 %v438
      %v2223 = vpop.f32.mrf.mxu0
      %v2224 = vadd.f32 %v2111, %v2223
      %2225 = vmatmul.f32.gmra.mxu0 %v439
      %v2226 = vpop.f32.mrf.mxu0
      %v2227 = vadd.f32 %v2114, %v2226
      %2228 = vmatmul.f32.gmra.mxu0 %v440
      %v2229 = vpop.f32.mrf.mxu0
      %v2230 = vadd.f32 %v2117, %v2229
      %2231 = vmatmul.f32.gmra.mxu0 %v441
      %v2232 = vpop.f32.mrf.mxu0
      %v2233 = vadd.f32 %v2120, %v2232
      %2234 = vmatmul.f32.gmra.mxu0 %v442
      %v2235 = vpop.f32.mrf.mxu0
      %v2236 = vadd.f32 %v2123, %v2235
      %2237 = vmatmul.f32.gmra.mxu0 %v443
      %v2238 = vpop.f32.mrf.mxu0
      %v2239 = vadd.f32 %v2126, %v2238
      %2240 = vmatmul.f32.gmra.mxu0 %v444
      %v2241 = vpop.f32.mrf.mxu0
      %v2242 = vadd.f32 %v2129, %v2241
      %2243 = vmatmul.f32.gmra.mxu0 %v445
      %v2244 = vpop.f32.mrf.mxu0
      %v2245 = vadd.f32 %v2132, %v2244
      %2246 = vmatmul.f32.gmra.mxu0 %v446
      %v2247 = vpop.f32.mrf.mxu0
      %v2248 = vadd.f32 %v2135, %v2247
      %2249 = vmatmul.f32.gmra.mxu0 %v447
      %v2250 = vpop.f32.mrf.mxu0
      %v2251 = vadd.f32 %v2138, %v2250
      %2252 = vmatmul.f32.gmra.mxu0 %v448
      %v2253 = vpop.f32.mrf.mxu0
      %v2254 = vadd.f32 %v2141, %v2253
      %2255 = vmatmul.f32.gmra.mxu0 %v449
      %v2256 = vpop.f32.mrf.mxu0
      %v2257 = vadd.f32 %v2144, %v2256
      %2258 = vmatmul.f32.gmra.mxu0 %v450
      %v2259 = vpop.f32.mrf.mxu0
      %v2260 = vadd.f32 %v2147, %v2259
      %2261 = vmatmul.f32.gmra.mxu0 %v451
      %v2262 = vpop.f32.mrf.mxu0
      %v2263 = vadd.f32 %v2150, %v2262
      %2264 = vmatmul.f32.gmra.mxu0 %v452
      %v2265 = vpop.f32.mrf.mxu0
      %v2266 = vadd.f32 %v2153, %v2265
      %2267 = vmatmul.f32.gmra.mxu0 %v453
      %v2268 = vpop.f32.mrf.mxu0
      %v2269 = vadd.f32 %v2156, %v2268
      %2270 = vmatmul.f32.gmra.mxu0 %v454
      %v2271 = vpop.f32.mrf.mxu0
      %v2272 = vadd.f32 %v2159, %v2271
      %2273 = vmatmul.f32.gmra.mxu0 %v455
      %v2274 = vpop.f32.mrf.mxu0
      %v2275 = vadd.f32 %v2162, %v2274
      %2276 = vmatmul.f32.gmra.mxu0 %v456
      %v2277 = vpop.f32.mrf.mxu0
      %v2278 = vadd.f32 %v2165, %v2277
      %2279 = vmatmul.f32.gmra.mxu0 %v457
      %v2280 = vpop.f32.mrf.mxu0
      %v2281 = vadd.f32 %v2168, %v2280
      %2282 = vmatmul.f32.gmra.mxu0 %v458
      %v2283 = vpop.f32.mrf.mxu0
      %v2284 = vadd.f32 %v2171, %v2283
      %2285 = vmatmul.f32.gmra.mxu0 %v459
      %v2286 = vpop.f32.mrf.mxu0
      %v2287 = vadd.f32 %v2174, %v2286
      %2288 = vmatmul.f32.gmra.mxu0 %v460
      %v2289 = vpop.f32.mrf.mxu0
      %v2290 = vadd.f32 %v2177, %v2289
      %2291 = vmatmul.f32.gmra.mxu0 %v461
      %v2292 = vpop.f32.mrf.mxu0
      %v2293 = vadd.f32 %v2180, %v2292
      %2294 = vmatmul.f32.gmra.mxu0 %v462
      %v2295 = vpop.f32.mrf.mxu0
      %v2296 = vadd.f32 %v2183, %v2295
      %2297 = vmatmul.f32.gmra.mxu0 %v463
      %v2298 = vpop.f32.mrf.mxu0
      %v2299 = vadd.f32 %v2186, %v2298
      %2300 = vdwg.mxu0
      %2301 = vmatpush.msra.mxu0 %v1881
      %2302 = vmatpush.msra.mxu0 %v1880
      %2303 = vmatpush.msra.mxu0 %v1879
      %2304 = vmatpush.msra.mxu0 %v1878
      %2305 = vmatpush.msra.mxu0 %v1877
      %2306 = vmatpush.msra.mxu0 %v1876
      %2307 = vmatpush.msra.mxu0 %v1875
      %2308 = vmatpush.msra.mxu0 %v1874
      %2309 = vmatpush.msra.mxu0 %v1873
      %2310 = vmatpush.msra.mxu0 %v1872
      %2311 = vmatpush.msra.mxu0 %v1871
      %2312 = vmatpush.msra.mxu0 %v1870
      %2313 = vmatpush.msra.mxu0 %v1869
      %2314 = vmatpush.msra.mxu0 %v1868
      %2315 = vmatpush.msra.mxu0 %v1867
      %2316 = vmatpush.msra.mxu0 %v1866
      %2317 = vmatmul.f32.gmra.mxu0 %v464
      %v2318 = vpop.f32.mrf.mxu0
      %v2319 = vadd.f32 %v2206, %v2318
      %2320 = vmatmul.f32.gmra.mxu0 %v465
      %v2321 = vpop.f32.mrf.mxu0
      %v2322 = vadd.f32 %v2209, %v2321
      %2323 = vmatmul.f32.gmra.mxu0 %v466
      %v2324 = vpop.f32.mrf.mxu0
      %v2325 = vadd.f32 %v2212, %v2324
      %2326 = vmatmul.f32.gmra.mxu0 %v467
      %v2327 = vpop.f32.mrf.mxu0
      %v2328 = vadd.f32 %v2215, %v2327
      %2329 = vmatmul.f32.gmra.mxu0 %v468
      %v2330 = vpop.f32.mrf.mxu0
      %v2331 = vadd.f32 %v2218, %v2330
      %2332 = vmatmul.f32.gmra.mxu0 %v469
      %v2333 = vpop.f32.mrf.mxu0
      %v2334 = vadd.f32 %v2221, %v2333
      %2335 = vmatmul.f32.gmra.mxu0 %v470
      %v2336 = vpop.f32.mrf.mxu0
      %v2337 = vadd.f32 %v2224, %v2336
      %2338 = vmatmul.f32.gmra.mxu0 %v471
      %v2339 = vpop.f32.mrf.mxu0
      %v2340 = vadd.f32 %v2227, %v2339
      %2341 = vmatmul.f32.gmra.mxu0 %v472
      %v2342 = vpop.f32.mrf.mxu0
      %v2343 = vadd.f32 %v2230, %v2342
      %2344 = vmatmul.f32.gmra.mxu0 %v473
      %v2345 = vpop.f32.mrf.mxu0
      %v2346 = vadd.f32 %v2233, %v2345
      %2347 = vmatmul.f32.gmra.mxu0 %v474
      %v2348 = vpop.f32.mrf.mxu0
      %v2349 = vadd.f32 %v2236, %v2348
      %2350 = vmatmul.f32.gmra.mxu0 %v475
      %v2351 = vpop.f32.mrf.mxu0
      %v2352 = vadd.f32 %v2239, %v2351
      %2353 = vmatmul.f32.gmra.mxu0 %v476
      %v2354 = vpop.f32.mrf.mxu0
      %v2355 = vadd.f32 %v2242, %v2354
      %2356 = vmatmul.f32.gmra.mxu0 %v477
      %v2357 = vpop.f32.mrf.mxu0
      %v2358 = vadd.f32 %v2245, %v2357
      %2359 = vmatmul.f32.gmra.mxu0 %v478
      %v2360 = vpop.f32.mrf.mxu0
      %v2361 = vadd.f32 %v2248, %v2360
      %2362 = vmatmul.f32.gmra.mxu0 %v479
      %v2363 = vpop.f32.mrf.mxu0
      %v2364 = vadd.f32 %v2251, %v2363
      %2365 = vmatmul.f32.gmra.mxu0 %v480
      %v2366 = vpop.f32.mrf.mxu0
      %v2367 = vadd.f32 %v2254, %v2366
      %2368 = vmatmul.f32.gmra.mxu0 %v481
      %v2369 = vpop.f32.mrf.mxu0
      %v2370 = vadd.f32 %v2257, %v2369
      %2371 = vmatmul.f32.gmra.mxu0 %v482
      %v2372 = vpop.f32.mrf.mxu0
      %v2373 = vadd.f32 %v2260, %v2372
      %2374 = vmatmul.f32.gmra.mxu0 %v483
      %v2375 = vpop.f32.mrf.mxu0
      %v2376 = vadd.f32 %v2263, %v2375
      %2377 = vmatmul.f32.gmra.mxu0 %v484
      %v2378 = vpop.f32.mrf.mxu0
      %v2379 = vadd.f32 %v2266, %v2378
      %2380 = vmatmul.f32.gmra.mxu0 %v485
      %v2381 = vpop.f32.mrf.mxu0
      %v2382 = vadd.f32 %v2269, %v2381
      %2383 = vmatmul.f32.gmra.mxu0 %v486
      %v2384 = vpop.f32.mrf.mxu0
      %v2385 = vadd.f32 %v2272, %v2384
      %2386 = vmatmul.f32.gmra.mxu0 %v487
      %v2387 = vpop.f32.mrf.mxu0
      %v2388 = vadd.f32 %v2275, %v2387
      %2389 = vmatmul.f32.gmra.mxu0 %v488
      %v2390 = vpop.f32.mrf.mxu0
      %v2391 = vadd.f32 %v2278, %v2390
      %2392 = vmatmul.f32.gmra.mxu0 %v489
      %v2393 = vpop.f32.mrf.mxu0
      %v2394 = vadd.f32 %v2281, %v2393
      %2395 = vmatmul.f32.gmra.mxu0 %v490
      %v2396 = vpop.f32.mrf.mxu0
      %v2397 = vadd.f32 %v2284, %v2396
      %2398 = vmatmul.f32.gmra.mxu0 %v491
      %v2399 = vpop.f32.mrf.mxu0
      %v2400 = vadd.f32 %v2287, %v2399
      %2401 = vmatmul.f32.gmra.mxu0 %v492
      %v2402 = vpop.f32.mrf.mxu0
      %v2403 = vadd.f32 %v2290, %v2402
      %2404 = vmatmul.f32.gmra.mxu0 %v493
      %v2405 = vpop.f32.mrf.mxu0
      %v2406 = vadd.f32 %v2293, %v2405
      %2407 = vmatmul.f32.gmra.mxu0 %v494
      %v2408 = vpop.f32.mrf.mxu0
      %v2409 = vadd.f32 %v2296, %v2408
      %2410 = vmatmul.f32.gmra.mxu0 %v495
      %v2411 = vpop.f32.mrf.mxu0
      %v2412 = vadd.f32 %v2299, %v2411
      %2413 = vdwg.mxu0
      %2414 = vmatpush.msra.mxu0 %v1897
      %2415 = vmatpush.msra.mxu0 %v1896
      %2416 = vmatpush.msra.mxu0 %v1895
      %2417 = vmatpush.msra.mxu0 %v1894
      %2418 = vmatpush.msra.mxu0 %v1893
      %2419 = vmatpush.msra.mxu0 %v1892
      %2420 = vmatpush.msra.mxu0 %v1891
      %2421 = vmatpush.msra.mxu0 %v1890
      %2422 = vmatpush.msra.mxu0 %v1889
      %2423 = vmatpush.msra.mxu0 %v1888
      %2424 = vmatpush.msra.mxu0 %v1887
      %2425 = vmatpush.msra.mxu0 %v1886
      %2426 = vmatpush.msra.mxu0 %v1885
      %2427 = vmatpush.msra.mxu0 %v1884
      %2428 = vmatpush.msra.mxu0 %v1883
      %2429 = vmatpush.msra.mxu0 %v1882
      %2430 = vmatmul.f32.gmra.mxu0 %v496
      %v2431 = vpop.f32.mrf.mxu0
      %v2432 = vadd.f32 %v2319, %v2431
      %2433 = vmatmul.f32.gmra.mxu0 %v497
      %v2434 = vpop.f32.mrf.mxu0
      %v2435 = vadd.f32 %v2322, %v2434
      %2436 = vmatmul.f32.gmra.mxu0 %v498
      %v2437 = vpop.f32.mrf.mxu0
      %v2438 = vadd.f32 %v2325, %v2437
      %2439 = vmatmul.f32.gmra.mxu0 %v499
      %v2440 = vpop.f32.mrf.mxu0
      %v2441 = vadd.f32 %v2328, %v2440
      %2442 = vmatmul.f32.gmra.mxu0 %v500
      %v2443 = vpop.f32.mrf.mxu0
      %v2444 = vadd.f32 %v2331, %v2443
      %2445 = vmatmul.f32.gmra.mxu0 %v501
      %v2446 = vpop.f32.mrf.mxu0
      %v2447 = vadd.f32 %v2334, %v2446
      %2448 = vmatmul.f32.gmra.mxu0 %v502
      %v2449 = vpop.f32.mrf.mxu0
      %v2450 = vadd.f32 %v2337, %v2449
      %2451 = vmatmul.f32.gmra.mxu0 %v503
      %v2452 = vpop.f32.mrf.mxu0
      %v2453 = vadd.f32 %v2340, %v2452
      %2454 = vmatmul.f32.gmra.mxu0 %v504
      %v2455 = vpop.f32.mrf.mxu0
      %v2456 = vadd.f32 %v2343, %v2455
      %2457 = vmatmul.f32.gmra.mxu0 %v505
      %v2458 = vpop.f32.mrf.mxu0
      %v2459 = vadd.f32 %v2346, %v2458
      %2460 = vmatmul.f32.gmra.mxu0 %v506
      %v2461 = vpop.f32.mrf.mxu0
      %v2462 = vadd.f32 %v2349, %v2461
      %2463 = vmatmul.f32.gmra.mxu0 %v507
      %v2464 = vpop.f32.mrf.mxu0
      %v2465 = vadd.f32 %v2352, %v2464
      %2466 = vmatmul.f32.gmra.mxu0 %v508
      %v2467 = vpop.f32.mrf.mxu0
      %v2468 = vadd.f32 %v2355, %v2467
      %2469 = vmatmul.f32.gmra.mxu0 %v509
      %v2470 = vpop.f32.mrf.mxu0
      %v2471 = vadd.f32 %v2358, %v2470
      %2472 = vmatmul.f32.gmra.mxu0 %v510
      %v2473 = vpop.f32.mrf.mxu0
      %v2474 = vadd.f32 %v2361, %v2473
      %2475 = vmatmul.f32.gmra.mxu0 %v511
      %v2476 = vpop.f32.mrf.mxu0
      %v2477 = vadd.f32 %v2364, %v2476
      %2478 = vmatmul.f32.gmra.mxu0 %v512
      %v2479 = vpop.f32.mrf.mxu0
      %v2480 = vadd.f32 %v2367, %v2479
      %2481 = vmatmul.f32.gmra.mxu0 %v513
      %v2482 = vpop.f32.mrf.mxu0
      %v2483 = vadd.f32 %v2370, %v2482
      %2484 = vmatmul.f32.gmra.mxu0 %v514
      %v2485 = vpop.f32.mrf.mxu0
      %v2486 = vadd.f32 %v2373, %v2485
      %2487 = vmatmul.f32.gmra.mxu0 %v515
      %v2488 = vpop.f32.mrf.mxu0
      %v2489 = vadd.f32 %v2376, %v2488
      %2490 = vmatmul.f32.gmra.mxu0 %v516
      %v2491 = vpop.f32.mrf.mxu0
      %v2492 = vadd.f32 %v2379, %v2491
      %2493 = vmatmul.f32.gmra.mxu0 %v517
      %v2494 = vpop.f32.mrf.mxu0
      %v2495 = vadd.f32 %v2382, %v2494
      %2496 = vmatmul.f32.gmra.mxu0 %v518
      %v2497 = vpop.f32.mrf.mxu0
      %v2498 = vadd.f32 %v2385, %v2497
      %2499 = vmatmul.f32.gmra.mxu0 %v519
      %v2500 = vpop.f32.mrf.mxu0
      %v2501 = vadd.f32 %v2388, %v2500
      %2502 = vmatmul.f32.gmra.mxu0 %v520
      %v2503 = vpop.f32.mrf.mxu0
      %v2504 = vadd.f32 %v2391, %v2503
      %2505 = vmatmul.f32.gmra.mxu0 %v521
      %v2506 = vpop.f32.mrf.mxu0
      %v2507 = vadd.f32 %v2394, %v2506
      %2508 = vmatmul.f32.gmra.mxu0 %v522
      %v2509 = vpop.f32.mrf.mxu0
      %v2510 = vadd.f32 %v2397, %v2509
      %2511 = vmatmul.f32.gmra.mxu0 %v523
      %v2512 = vpop.f32.mrf.mxu0
      %v2513 = vadd.f32 %v2400, %v2512
      %2514 = vmatmul.f32.gmra.mxu0 %v524
      %v2515 = vpop.f32.mrf.mxu0
      %v2516 = vadd.f32 %v2403, %v2515
      %2517 = vmatmul.f32.gmra.mxu0 %v525
      %v2518 = vpop.f32.mrf.mxu0
      %v2519 = vadd.f32 %v2406, %v2518
      %2520 = vmatmul.f32.gmra.mxu0 %v526
      %v2521 = vpop.f32.mrf.mxu0
      %v2522 = vadd.f32 %v2409, %v2521
      %2523 = vmatmul.f32.gmra.mxu0 %v527
      %v2524 = vpop.f32.mrf.mxu0
      %v2525 = vadd.f32 %v2412, %v2524
      %2526 = vdwg.mxu0
      %2527 = vmatpush.msra.mxu0 %v1913
      %2528 = vmatpush.msra.mxu0 %v1912
      %2529 = vmatpush.msra.mxu0 %v1911
      %2530 = vmatpush.msra.mxu0 %v1910
      %2531 = vmatpush.msra.mxu0 %v1909
      %2532 = vmatpush.msra.mxu0 %v1908
      %2533 = vmatpush.msra.mxu0 %v1907
      %2534 = vmatpush.msra.mxu0 %v1906
      %2535 = vmatpush.msra.mxu0 %v1905
      %2536 = vmatpush.msra.mxu0 %v1904
      %2537 = vmatpush.msra.mxu0 %v1903
      %2538 = vmatpush.msra.mxu0 %v1902
      %2539 = vmatpush.msra.mxu0 %v1901
      %2540 = vmatpush.msra.mxu0 %v1900
      %2541 = vmatpush.msra.mxu0 %v1899
      %2542 = vmatpush.msra.mxu0 %v1898
      %2543 = vmatmul.f32.gmra.mxu0 %v528
      %v2544 = vpop.f32.mrf.mxu0
      %v2545 = vadd.f32 %v2432, %v2544
      %2546 = vmatmul.f32.gmra.mxu0 %v529
      %v2547 = vpop.f32.mrf.mxu0
      %v2548 = vadd.f32 %v2435, %v2547
      %2549 = vmatmul.f32.gmra.mxu0 %v530
      %v2550 = vpop.f32.mrf.mxu0
      %v2551 = vadd.f32 %v2438, %v2550
      %2552 = vmatmul.f32.gmra.mxu0 %v531
      %v2553 = vpop.f32.mrf.mxu0
      %v2554 = vadd.f32 %v2441, %v2553
      %2555 = vmatmul.f32.gmra.mxu0 %v532
      %v2556 = vpop.f32.mrf.mxu0
      %v2557 = vadd.f32 %v2444, %v2556
      %2558 = vmatmul.f32.gmra.mxu0 %v533
      %v2559 = vpop.f32.mrf.mxu0
      %v2560 = vadd.f32 %v2447, %v2559
      %2561 = vmatmul.f32.gmra.mxu0 %v534
      %v2562 = vpop.f32.mrf.mxu0
      %v2563 = vadd.f32 %v2450, %v2562
      %2564 = vmatmul.f32.gmra.mxu0 %v535
      %v2565 = vpop.f32.mrf.mxu0
      %v2566 = vadd.f32 %v2453, %v2565
      %2567 = vmatmul.f32.gmra.mxu0 %v536
      %v2568 = vpop.f32.mrf.mxu0
      %v2569 = vadd.f32 %v2456, %v2568
      %2570 = vmatmul.f32.gmra.mxu0 %v537
      %v2571 = vpop.f32.mrf.mxu0
      %v2572 = vadd.f32 %v2459, %v2571
      %2573 = vmatmul.f32.gmra.mxu0 %v538
      %v2574 = vpop.f32.mrf.mxu0
      %v2575 = vadd.f32 %v2462, %v2574
      %2576 = vmatmul.f32.gmra.mxu0 %v539
      %v2577 = vpop.f32.mrf.mxu0
      %v2578 = vadd.f32 %v2465, %v2577
      %2579 = vmatmul.f32.gmra.mxu0 %v540
      %v2580 = vpop.f32.mrf.mxu0
      %v2581 = vadd.f32 %v2468, %v2580
      %2582 = vmatmul.f32.gmra.mxu0 %v541
      %v2583 = vpop.f32.mrf.mxu0
      %v2584 = vadd.f32 %v2471, %v2583
      %2585 = vmatmul.f32.gmra.mxu0 %v542
      %v2586 = vpop.f32.mrf.mxu0
      %v2587 = vadd.f32 %v2474, %v2586
      %2588 = vmatmul.f32.gmra.mxu0 %v543
      %v2589 = vpop.f32.mrf.mxu0
      %v2590 = vadd.f32 %v2477, %v2589
      %2591 = vmatmul.f32.gmra.mxu0 %v544
      %v2592 = vpop.f32.mrf.mxu0
      %v2593 = vadd.f32 %v2480, %v2592
      %2594 = vmatmul.f32.gmra.mxu0 %v545
      %v2595 = vpop.f32.mrf.mxu0
      %v2596 = vadd.f32 %v2483, %v2595
      %2597 = vmatmul.f32.gmra.mxu0 %v546
      %v2598 = vpop.f32.mrf.mxu0
      %v2599 = vadd.f32 %v2486, %v2598
      %2600 = vmatmul.f32.gmra.mxu0 %v547
      %v2601 = vpop.f32.mrf.mxu0
      %v2602 = vadd.f32 %v2489, %v2601
      %2603 = vmatmul.f32.gmra.mxu0 %v548
      %v2604 = vpop.f32.mrf.mxu0
      %v2605 = vadd.f32 %v2492, %v2604
      %2606 = vmatmul.f32.gmra.mxu0 %v549
      %v2607 = vpop.f32.mrf.mxu0
      %v2608 = vadd.f32 %v2495, %v2607
      %2609 = vmatmul.f32.gmra.mxu0 %v550
      %v2610 = vpop.f32.mrf.mxu0
      %v2611 = vadd.f32 %v2498, %v2610
      %2612 = vmatmul.f32.gmra.mxu0 %v551
      %v2613 = vpop.f32.mrf.mxu0
      %v2614 = vadd.f32 %v2501, %v2613
      %2615 = vmatmul.f32.gmra.mxu0 %v552
      %v2616 = vpop.f32.mrf.mxu0
      %v2617 = vadd.f32 %v2504, %v2616
      %2618 = vmatmul.f32.gmra.mxu0 %v553
      %v2619 = vpop.f32.mrf.mxu0
      %v2620 = vadd.f32 %v2507, %v2619
      %2621 = vmatmul.f32.gmra.mxu0 %v554
      %v2622 = vpop.f32.mrf.mxu0
      %v2623 = vadd.f32 %v2510, %v2622
      %2624 = vmatmul.f32.gmra.mxu0 %v555
      %v2625 = vpop.f32.mrf.mxu0
      %v2626 = vadd.f32 %v2513, %v2625
      %2627 = vmatmul.f32.gmra.mxu0 %v556
      %v2628 = vpop.f32.mrf.mxu0
      %v2629 = vadd.f32 %v2516, %v2628
      %2630 = vmatmul.f32.gmra.mxu0 %v557
      %v2631 = vpop.f32.mrf.mxu0
      %v2632 = vadd.f32 %v2519, %v2631
      %2633 = vmatmul.f32.gmra.mxu0 %v558
      %v2634 = vpop.f32.mrf.mxu0
      %v2635 = vadd.f32 %v2522, %v2634
      %2636 = vmatmul.f32.gmra.mxu0 %v559
      %v2637 = vpop.f32.mrf.mxu0
      %v2638 = vadd.f32 %v2525, %v2637
      %2639 = vdwg.mxu0
      %2640 = vmatpush.msra.mxu0 %v1929
      %2641 = vmatpush.msra.mxu0 %v1928
      %2642 = vmatpush.msra.mxu0 %v1927
      %2643 = vmatpush.msra.mxu0 %v1926
      %2644 = vmatpush.msra.mxu0 %v1925
      %2645 = vmatpush.msra.mxu0 %v1924
      %2646 = vmatpush.msra.mxu0 %v1923
      %2647 = vmatpush.msra.mxu0 %v1922
      %2648 = vmatpush.msra.mxu0 %v1921
      %2649 = vmatpush.msra.mxu0 %v1920
      %2650 = vmatpush.msra.mxu0 %v1919
      %2651 = vmatpush.msra.mxu0 %v1918
      %2652 = vmatpush.msra.mxu0 %v1917
      %2653 = vmatpush.msra.mxu0 %v1916
      %2654 = vmatpush.msra.mxu0 %v1915
      %2655 = vmatpush.msra.mxu0 %v1914
      %2656 = vmatmul.f32.gmra.mxu0 %v561
      %v2657 = vpop.f32.mrf.mxu0
      %v2658 = vadd.f32 %v2545, %v2657
      %2659 = vmatmul.f32.gmra.mxu0 %v562
      %v2660 = vpop.f32.mrf.mxu0
      %v2661 = vadd.f32 %v2548, %v2660
      %2662 = vmatmul.f32.gmra.mxu0 %v563
      %v2663 = vpop.f32.mrf.mxu0
      %v2664 = vadd.f32 %v2551, %v2663
      %2665 = vmatmul.f32.gmra.mxu0 %v564
      %v2666 = vpop.f32.mrf.mxu0
      %v2667 = vadd.f32 %v2554, %v2666
      %2668 = vmatmul.f32.gmra.mxu0 %v565
      %v2669 = vpop.f32.mrf.mxu0
      %v2670 = vadd.f32 %v2557, %v2669
      %2671 = vmatmul.f32.gmra.mxu0 %v566
      %v2672 = vpop.f32.mrf.mxu0
      %v2673 = vadd.f32 %v2560, %v2672
      %2674 = vmatmul.f32.gmra.mxu0 %v567
      %v2675 = vpop.f32.mrf.mxu0
      %v2676 = vadd.f32 %v2563, %v2675
      %2677 = vmatmul.f32.gmra.mxu0 %v568
      %v2678 = vpop.f32.mrf.mxu0
      %v2679 = vadd.f32 %v2566, %v2678
      %2680 = vmatmul.f32.gmra.mxu0 %v569
      %v2681 = vpop.f32.mrf.mxu0
      %v2682 = vadd.f32 %v2569, %v2681
      %2683 = vmatmul.f32.gmra.mxu0 %v570
      %v2684 = vpop.f32.mrf.mxu0
      %v2685 = vadd.f32 %v2572, %v2684
      %2686 = vmatmul.f32.gmra.mxu0 %v571
      %v2687 = vpop.f32.mrf.mxu0
      %v2688 = vadd.f32 %v2575, %v2687
      %2689 = vmatmul.f32.gmra.mxu0 %v572
      %v2690 = vpop.f32.mrf.mxu0
      %v2691 = vadd.f32 %v2578, %v2690
      %2692 = vmatmul.f32.gmra.mxu0 %v573
      %v2693 = vpop.f32.mrf.mxu0
      %v2694 = vadd.f32 %v2581, %v2693
      %2695 = vmatmul.f32.gmra.mxu0 %v574
      %v2696 = vpop.f32.mrf.mxu0
      %v2697 = vadd.f32 %v2584, %v2696
      %2698 = vmatmul.f32.gmra.mxu0 %v575
      %v2699 = vpop.f32.mrf.mxu0
      %v2700 = vadd.f32 %v2587, %v2699
      %2701 = vmatmul.f32.gmra.mxu0 %v576
      %v2702 = vpop.f32.mrf.mxu0
      %v2703 = vadd.f32 %v2590, %v2702
      %2704 = vmatmul.f32.gmra.mxu0 %v577
      %v2705 = vpop.f32.mrf.mxu0
      %v2706 = vadd.f32 %v2593, %v2705
      %2707 = vmatmul.f32.gmra.mxu0 %v578
      %v2708 = vpop.f32.mrf.mxu0
      %v2709 = vadd.f32 %v2596, %v2708
      %2710 = vmatmul.f32.gmra.mxu0 %v579
      %v2711 = vpop.f32.mrf.mxu0
      %v2712 = vadd.f32 %v2599, %v2711
      %2713 = vmatmul.f32.gmra.mxu0 %v580
      %v2714 = vpop.f32.mrf.mxu0
      %v2715 = vadd.f32 %v2602, %v2714
      %2716 = vmatmul.f32.gmra.mxu0 %v581
      %v2717 = vpop.f32.mrf.mxu0
      %v2718 = vadd.f32 %v2605, %v2717
      %2719 = vmatmul.f32.gmra.mxu0 %v582
      %v2720 = vpop.f32.mrf.mxu0
      %v2721 = vadd.f32 %v2608, %v2720
      %2722 = vmatmul.f32.gmra.mxu0 %v583
      %v2723 = vpop.f32.mrf.mxu0
      %v2724 = vadd.f32 %v2611, %v2723
      %2725 = vmatmul.f32.gmra.mxu0 %v584
      %v2726 = vpop.f32.mrf.mxu0
      %v2727 = vadd.f32 %v2614, %v2726
      %2728 = vmatmul.f32.gmra.mxu0 %v585
      %v2729 = vpop.f32.mrf.mxu0
      %v2730 = vadd.f32 %v2617, %v2729
      %2731 = vmatmul.f32.gmra.mxu0 %v586
      %v2732 = vpop.f32.mrf.mxu0
      %v2733 = vadd.f32 %v2620, %v2732
      %2734 = vmatmul.f32.gmra.mxu0 %v587
      %v2735 = vpop.f32.mrf.mxu0
      %v2736 = vadd.f32 %v2623, %v2735
      %2737 = vmatmul.f32.gmra.mxu0 %v588
      %v2738 = vpop.f32.mrf.mxu0
      %v2739 = vadd.f32 %v2626, %v2738
      %2740 = vmatmul.f32.gmra.mxu0 %v589
      %v2741 = vpop.f32.mrf.mxu0
      %v2742 = vadd.f32 %v2629, %v2741
      %2743 = vmatmul.f32.gmra.mxu0 %v590
      %v2744 = vpop.f32.mrf.mxu0
      %v2745 = vadd.f32 %v2632, %v2744
      %2746 = vmatmul.f32.gmra.mxu0 %v591
      %v2747 = vpop.f32.mrf.mxu0
      %v2748 = vadd.f32 %v2635, %v2747
      %2749 = vmatmul.f32.gmra.mxu0 %v592
      %v2750 = vpop.f32.mrf.mxu0
      %v2751 = vadd.f32 %v2638, %v2750
      %2752 = vdwg.mxu0
      %2753 = vmatpush.msra.mxu0 %v1945
      %2754 = vmatpush.msra.mxu0 %v1944
      %2755 = vmatpush.msra.mxu0 %v1943
      %2756 = vmatpush.msra.mxu0 %v1942
      %2757 = vmatpush.msra.mxu0 %v1941
      %2758 = vmatpush.msra.mxu0 %v1940
      %2759 = vmatpush.msra.mxu0 %v1939
      %2760 = vmatpush.msra.mxu0 %v1938
      %2761 = vmatpush.msra.mxu0 %v1937
      %2762 = vmatpush.msra.mxu0 %v1936
      %2763 = vmatpush.msra.mxu0 %v1935
      %2764 = vmatpush.msra.mxu0 %v1934
      %2765 = vmatpush.msra.mxu0 %v1933
      %2766 = vmatpush.msra.mxu0 %v1932
      %2767 = vmatpush.msra.mxu0 %v1931
      %2768 = vmatpush.msra.mxu0 %v1930
      %2769 = vmatmul.f32.gmra.mxu0 %v593
      %v2770 = vpop.f32.mrf.mxu0
      %v2771 = vadd.f32 %v2658, %v2770
      %2772 = vmatmul.f32.gmra.mxu0 %v594
      %v2773 = vpop.f32.mrf.mxu0
      %v2774 = vadd.f32 %v2661, %v2773
      %2775 = vmatmul.f32.gmra.mxu0 %v595
      %v2776 = vpop.f32.mrf.mxu0
      %v2777 = vadd.f32 %v2664, %v2776
      %2778 = vmatmul.f32.gmra.mxu0 %v596
      %v2779 = vpop.f32.mrf.mxu0
      %v2780 = vadd.f32 %v2667, %v2779
      %2781 = vmatmul.f32.gmra.mxu0 %v597
      %v2782 = vpop.f32.mrf.mxu0
      %v2783 = vadd.f32 %v2670, %v2782
      %2784 = vmatmul.f32.gmra.mxu0 %v598
      %v2785 = vpop.f32.mrf.mxu0
      %v2786 = vadd.f32 %v2673, %v2785
      %2787 = vmatmul.f32.gmra.mxu0 %v599
      %v2788 = vpop.f32.mrf.mxu0
      %v2789 = vadd.f32 %v2676, %v2788
      %2790 = vmatmul.f32.gmra.mxu0 %v600
      %v2791 = vpop.f32.mrf.mxu0
      %v2792 = vadd.f32 %v2679, %v2791
      %2793 = vmatmul.f32.gmra.mxu0 %v601
      %v2794 = vpop.f32.mrf.mxu0
      %v2795 = vadd.f32 %v2682, %v2794
      %2796 = vmatmul.f32.gmra.mxu0 %v602
      %v2797 = vpop.f32.mrf.mxu0
      %v2798 = vadd.f32 %v2685, %v2797
      %2799 = vmatmul.f32.gmra.mxu0 %v603
      %v2800 = vpop.f32.mrf.mxu0
      %v2801 = vadd.f32 %v2688, %v2800
      %2802 = vmatmul.f32.gmra.mxu0 %v604
      %v2803 = vpop.f32.mrf.mxu0
      %v2804 = vadd.f32 %v2691, %v2803
      %2805 = vmatmul.f32.gmra.mxu0 %v605
      %v2806 = vpop.f32.mrf.mxu0
      %v2807 = vadd.f32 %v2694, %v2806
      %2808 = vmatmul.f32.gmra.mxu0 %v606
      %v2809 = vpop.f32.mrf.mxu0
      %v2810 = vadd.f32 %v2697, %v2809
      %2811 = vmatmul.f32.gmra.mxu0 %v607
      %v2812 = vpop.f32.mrf.mxu0
      %v2813 = vadd.f32 %v2700, %v2812
      %2814 = vmatmul.f32.gmra.mxu0 %v608
      %v2815 = vpop.f32.mrf.mxu0
      %v2816 = vadd.f32 %v2703, %v2815
      %2817 = vmatmul.f32.gmra.mxu0 %v609
      %v2818 = vpop.f32.mrf.mxu0
      %v2819 = vadd.f32 %v2706, %v2818
      %2820 = vmatmul.f32.gmra.mxu0 %v610
      %v2821 = vpop.f32.mrf.mxu0
      %v2822 = vadd.f32 %v2709, %v2821
      %2823 = vmatmul.f32.gmra.mxu0 %v611
      %v2824 = vpop.f32.mrf.mxu0
      %v2825 = vadd.f32 %v2712, %v2824
      %2826 = vmatmul.f32.gmra.mxu0 %v612
      %v2827 = vpop.f32.mrf.mxu0
      %v2828 = vadd.f32 %v2715, %v2827
      %2829 = vmatmul.f32.gmra.mxu0 %v613
      %v2830 = vpop.f32.mrf.mxu0
      %v2831 = vadd.f32 %v2718, %v2830
      %2832 = vmatmul.f32.gmra.mxu0 %v614
      %v2833 = vpop.f32.mrf.mxu0
      %v2834 = vadd.f32 %v2721, %v2833
      %2835 = vmatmul.f32.gmra.mxu0 %v615
      %v2836 = vpop.f32.mrf.mxu0
      %v2837 = vadd.f32 %v2724, %v2836
      %2838 = vmatmul.f32.gmra.mxu0 %v616
      %v2839 = vpop.f32.mrf.mxu0
      %v2840 = vadd.f32 %v2727, %v2839
      %2841 = vmatmul.f32.gmra.mxu0 %v617
      %v2842 = vpop.f32.mrf.mxu0
      %v2843 = vadd.f32 %v2730, %v2842
      %2844 = vmatmul.f32.gmra.mxu0 %v618
      %v2845 = vpop.f32.mrf.mxu0
      %v2846 = vadd.f32 %v2733, %v2845
      %2847 = vmatmul.f32.gmra.mxu0 %v619
      %v2848 = vpop.f32.mrf.mxu0
      %v2849 = vadd.f32 %v2736, %v2848
      %2850 = vmatmul.f32.gmra.mxu0 %v620
      %v2851 = vpop.f32.mrf.mxu0
      %v2852 = vadd.f32 %v2739, %v2851
      %2853 = vmatmul.f32.gmra.mxu0 %v621
      %v2854 = vpop.f32.mrf.mxu0
      %v2855 = vadd.f32 %v2742, %v2854
      %2856 = vmatmul.f32.gmra.mxu0 %v622
      %v2857 = vpop.f32.mrf.mxu0
      %v2858 = vadd.f32 %v2745, %v2857
      %2859 = vmatmul.f32.gmra.mxu0 %v623
      %v2860 = vpop.f32.mrf.mxu0
      %v2861 = vadd.f32 %v2748, %v2860
      %2862 = vmatmul.f32.gmra.mxu0 %v624
      %v2863 = vpop.f32.mrf.mxu0
      %v2864 = vadd.f32 %v2751, %v2863
      %2865 = vdwg.mxu0
      %2866 = vmatpush.msra.mxu0 %v1961
      %2867 = vmatpush.msra.mxu0 %v1960
      %2868 = vmatpush.msra.mxu0 %v1959
      %2869 = vmatpush.msra.mxu0 %v1958
      %2870 = vmatpush.msra.mxu0 %v1957
      %2871 = vmatpush.msra.mxu0 %v1956
      %2872 = vmatpush.msra.mxu0 %v1955
      %2873 = vmatpush.msra.mxu0 %v1954
      %2874 = vmatpush.msra.mxu0 %v1953
      %2875 = vmatpush.msra.mxu0 %v1952
      %2876 = vmatpush.msra.mxu0 %v1951
      %2877 = vmatpush.msra.mxu0 %v1950
      %2878 = vmatpush.msra.mxu0 %v1949
      %2879 = vmatpush.msra.mxu0 %v1948
      %2880 = vmatpush.msra.mxu0 %v1947
      %2881 = vmatpush.msra.mxu0 %v1946
      %2882 = vmatmul.f32.gmra.mxu0 %v625
      %v2883 = vpop.f32.mrf.mxu0
      %v2884 = vadd.f32 %v2771, %v2883
      %2885 = vmatmul.f32.gmra.mxu0 %v626
      %v2886 = vpop.f32.mrf.mxu0
      %v2887 = vadd.f32 %v2774, %v2886
      %2888 = vmatmul.f32.gmra.mxu0 %v627
      %v2889 = vpop.f32.mrf.mxu0
      %v2890 = vadd.f32 %v2777, %v2889
      %2891 = vmatmul.f32.gmra.mxu0 %v628
      %v2892 = vpop.f32.mrf.mxu0
      %v2893 = vadd.f32 %v2780, %v2892
      %2894 = vmatmul.f32.gmra.mxu0 %v629
      %v2895 = vpop.f32.mrf.mxu0
      %v2896 = vadd.f32 %v2783, %v2895
      %2897 = vmatmul.f32.gmra.mxu0 %v630
      %v2898 = vpop.f32.mrf.mxu0
      %v2899 = vadd.f32 %v2786, %v2898
      %2900 = vmatmul.f32.gmra.mxu0 %v631
      %v2901 = vpop.f32.mrf.mxu0
      %v2902 = vadd.f32 %v2789, %v2901
      %2903 = vmatmul.f32.gmra.mxu0 %v632
      %v2904 = vpop.f32.mrf.mxu0
      %v2905 = vadd.f32 %v2792, %v2904
      %2906 = vmatmul.f32.gmra.mxu0 %v633
      %v2907 = vpop.f32.mrf.mxu0
      %v2908 = vadd.f32 %v2795, %v2907
      %2909 = vmatmul.f32.gmra.mxu0 %v634
      %v2910 = vpop.f32.mrf.mxu0
      %v2911 = vadd.f32 %v2798, %v2910
      %2912 = vmatmul.f32.gmra.mxu0 %v635
      %v2913 = vpop.f32.mrf.mxu0
      %v2914 = vadd.f32 %v2801, %v2913
      %2915 = vmatmul.f32.gmra.mxu0 %v636
      %v2916 = vpop.f32.mrf.mxu0
      %v2917 = vadd.f32 %v2804, %v2916
      %2918 = vmatmul.f32.gmra.mxu0 %v637
      %v2919 = vpop.f32.mrf.mxu0
      %v2920 = vadd.f32 %v2807, %v2919
      %2921 = vmatmul.f32.gmra.mxu0 %v638
      %v2922 = vpop.f32.mrf.mxu0
      %v2923 = vadd.f32 %v2810, %v2922
      %2924 = vmatmul.f32.gmra.mxu0 %v639
      %v2925 = vpop.f32.mrf.mxu0
      %v2926 = vadd.f32 %v2813, %v2925
      %2927 = vmatmul.f32.gmra.mxu0 %v640
      %v2928 = vpop.f32.mrf.mxu0
      %v2929 = vadd.f32 %v2816, %v2928
      %2930 = vmatmul.f32.gmra.mxu0 %v641
      %v2931 = vpop.f32.mrf.mxu0
      %v2932 = vadd.f32 %v2819, %v2931
      %2933 = vmatmul.f32.gmra.mxu0 %v642
      %v2934 = vpop.f32.mrf.mxu0
      %v2935 = vadd.f32 %v2822, %v2934
      %2936 = vmatmul.f32.gmra.mxu0 %v643
      %v2937 = vpop.f32.mrf.mxu0
      %v2938 = vadd.f32 %v2825, %v2937
      %2939 = vmatmul.f32.gmra.mxu0 %v644
      %v2940 = vpop.f32.mrf.mxu0
      %v2941 = vadd.f32 %v2828, %v2940
      %2942 = vmatmul.f32.gmra.mxu0 %v645
      %v2943 = vpop.f32.mrf.mxu0
      %v2944 = vadd.f32 %v2831, %v2943
      %2945 = vmatmul.f32.gmra.mxu0 %v646
      %v2946 = vpop.f32.mrf.mxu0
      %v2947 = vadd.f32 %v2834, %v2946
      %2948 = vmatmul.f32.gmra.mxu0 %v647
      %v2949 = vpop.f32.mrf.mxu0
      %v2950 = vadd.f32 %v2837, %v2949
      %2951 = vmatmul.f32.gmra.mxu0 %v648
      %v2952 = vpop.f32.mrf.mxu0
      %v2953 = vadd.f32 %v2840, %v2952
      %2954 = vmatmul.f32.gmra.mxu0 %v649
      %v2955 = vpop.f32.mrf.mxu0
      %v2956 = vadd.f32 %v2843, %v2955
      %2957 = vmatmul.f32.gmra.mxu0 %v650
      %v2958 = vpop.f32.mrf.mxu0
      %v2959 = vadd.f32 %v2846, %v2958
      %2960 = vmatmul.f32.gmra.mxu0 %v651
      %v2961 = vpop.f32.mrf.mxu0
      %v2962 = vadd.f32 %v2849, %v2961
      %2963 = vmatmul.f32.gmra.mxu0 %v652
      %v2964 = vpop.f32.mrf.mxu0
      %v2965 = vadd.f32 %v2852, %v2964
      %2966 = vmatmul.f32.gmra.mxu0 %v653
      %v2967 = vpop.f32.mrf.mxu0
      %v2968 = vadd.f32 %v2855, %v2967
      %2969 = vmatmul.f32.gmra.mxu0 %v654
      %v2970 = vpop.f32.mrf.mxu0
      %v2971 = vadd.f32 %v2858, %v2970
      %2972 = vmatmul.f32.gmra.mxu0 %v655
      %v2973 = vpop.f32.mrf.mxu0
      %v2974 = vadd.f32 %v2861, %v2973
      %2975 = vmatmul.f32.gmra.mxu0 %v656
      %v2976 = vpop.f32.mrf.mxu0
      %v2977 = vadd.f32 %v2864, %v2976
      %2978 = vdwg.mxu0
      %2979 = vst [vmem:[%s238] sm:$0xff] %v1723
      %2980 = vst [vmem:[%s238 + $0x8] sm:$0xff] %v1726
      %2981 = vst [vmem:[%s238 + $0x10] sm:$0xff] %v1729
      %2982 = vst [vmem:[%s238 + $0x18] sm:$0xff] %v1732
      %2983 = vst [vmem:[%s238 + $0x20] sm:$0xff] %v1735
      %2984 = vst [vmem:[%s238 + $0x28] sm:$0xff] %v1738
      %2985 = vst [vmem:[%s238 + $0x30] sm:$0xff] %v1741
      %2986 = vst [vmem:[%s238 + $0x38] sm:$0xff] %v1744
      %2987 = vst [vmem:[%s238 + $0x40] sm:$0xff] %v1747
      %2988 = vst [vmem:[%s238 + $0x48] sm:$0xff] %v1750
      %2989 = vst [vmem:[%s238 + $0x50] sm:$0xff] %v1753
      %2990 = vst [vmem:[%s238 + $0x58] sm:$0xff] %v1756
      %2991 = vst [vmem:[%s238 + $0x60] sm:$0xff] %v1759
      %2992 = vst [vmem:[%s238 + $0x68] sm:$0xff] %v1762
      %2993 = vst [vmem:[%s238 + $0x70] sm:$0xff] %v1765
      %2994 = vst [vmem:[%s238 + $0x78] sm:$0xff] %v1768
      %2995 = vst [vmem:[%s238 + $0x80] sm:$0xff] %v1771
      %2996 = vst [vmem:[%s238 + $0x88] sm:$0xff] %v1774
      %2997 = vst [vmem:[%s238 + $0x90] sm:$0xff] %v1777
      %2998 = vst [vmem:[%s238 + $0x98] sm:$0xff] %v1780
      %2999 = vst [vmem:[%s238 + $0xa0] sm:$0xff] %v1783
      %3000 = vst [vmem:[%s238 + $0xa8] sm:$0xff] %v1786
      %3001 = vst [vmem:[%s238 + $0xb0] sm:$0xff] %v1789
      %3002 = vst [vmem:[%s238 + $0xb8] sm:$0xff] %v1792
      %3003 = vst [vmem:[%s238 + $0xc0] sm:$0xff] %v1795
      %3004 = vst [vmem:[%s238 + $0xc8] sm:$0xff] %v1798
      %3005 = vst [vmem:[%s238 + $0xd0] sm:$0xff] %v1801
      %3006 = vst [vmem:[%s238 + $0xd8] sm:$0xff] %v1804
      %3007 = vst [vmem:[%s238 + $0xe0] sm:$0xff] %v1807
      %3008 = vst [vmem:[%s238 + $0xe8] sm:$0xff] %v1810
      %3009 = vst [vmem:[%s238 + $0xf0] sm:$0xff] %v1813
      %3010 = vst [vmem:[%s238 + $0xf8] sm:$0xff] %v1816
      %3011 = vst [vmem:[%s243] sm:$0xff] %v2884
      %3012 = vst [vmem:[%s243 + $0x8] sm:$0xff] %v2887
      %3013 = vst [vmem:[%s243 + $0x10] sm:$0xff] %v2890
      %3014 = vst [vmem:[%s243 + $0x18] sm:$0xff] %v2893
      %3015 = vst [vmem:[%s243 + $0x20] sm:$0xff] %v2896
      %3016 = vst [vmem:[%s243 + $0x28] sm:$0xff] %v2899
      %3017 = vst [vmem:[%s243 + $0x30] sm:$0xff] %v2902
      %3018 = vst [vmem:[%s243 + $0x38] sm:$0xff] %v2905
      %3019 = vst [vmem:[%s243 + $0x40] sm:$0xff] %v2908
      %3020 = vst [vmem:[%s243 + $0x48] sm:$0xff] %v2911
      %3021 = vst [vmem:[%s243 + $0x50] sm:$0xff] %v2914
      %3022 = vst [vmem:[%s243 + $0x58] sm:$0xff] %v2917
      %3023 = vst [vmem:[%s243 + $0x60] sm:$0xff] %v2920
      %3024 = vst [vmem:[%s243 + $0x68] sm:$0xff] %v2923
      %3025 = vst [vmem:[%s243 + $0x70] sm:$0xff] %v2926
      %3026 = vst [vmem:[%s243 + $0x78] sm:$0xff] %v2929
      %3027 = vst [vmem:[%s243 + $0x80] sm:$0xff] %v2932
      %3028 = vst [vmem:[%s243 + $0x88] sm:$0xff] %v2935
      %3029 = vst [vmem:[%s243 + $0x90] sm:$0xff] %v2938
      %3030 = vst [vmem:[%s243 + $0x98] sm:$0xff] %v2941
      %3031 = vst [vmem:[%s243 + $0xa0] sm:$0xff] %v2944
      %3032 = vst [vmem:[%s243 + $0xa8] sm:$0xff] %v2947
      %3033 = vst [vmem:[%s243 + $0xb0] sm:$0xff] %v2950
      %3034 = vst [vmem:[%s243 + $0xb8] sm:$0xff] %v2953
      %3035 = vst [vmem:[%s243 + $0xc0] sm:$0xff] %v2956
      %3036 = vst [vmem:[%s243 + $0xc8] sm:$0xff] %v2959
      %3037 = vst [vmem:[%s243 + $0xd0] sm:$0xff] %v2962
      %3038 = vst [vmem:[%s243 + $0xd8] sm:$0xff] %v2965
      %3039 = vst [vmem:[%s243 + $0xe0] sm:$0xff] %v2968
      %3040 = vst [vmem:[%s243 + $0xe8] sm:$0xff] %v2971
      %3041 = vst [vmem:[%s243 + $0xf0] sm:$0xff] %v2974
      %3042 = vst [vmem:[%s243 + $0xf8] sm:$0xff] %v2977
      %v3043 = vadd.f32 %v2884, %v2887
      %v3044 = vadd.f32 %v3043, %v2890
      %v3045 = vadd.f32 %v3044, %v2893
      %v3046 = vadd.f32 %v3045, %v2896
      %v3047 = vadd.f32 %v3046, %v2899
      %v3048 = vadd.f32 %v3047, %v2902
      %v3049 = vadd.f32 %v3048, %v2905
      %v3050 = vadd.f32 %v3049, %v2908
      %v3051 = vadd.f32 %v3050, %v2911
      %v3052 = vadd.f32 %v3051, %v2914
      %v3053 = vadd.f32 %v3052, %v2917
      %v3054 = vadd.f32 %v3053, %v2920
      %v3055 = vadd.f32 %v3054, %v2923
      %v3056 = vadd.f32 %v3055, %v2926
      %v3057 = vadd.f32 %v3056, %v2929
      %v3058 = vadd.f32 %v3057, %v2932
      %v3059 = vadd.f32 %v3058, %v2935
      %v3060 = vadd.f32 %v3059, %v2938
      %v3061 = vadd.f32 %v3060, %v2941
      %v3062 = vadd.f32 %v3061, %v2944
      %v3063 = vadd.f32 %v3062, %v2947
      %v3064 = vadd.f32 %v3063, %v2950
      %v3065 = vadd.f32 %v3064, %v2953
      %v3066 = vadd.f32 %v3065, %v2956
      %v3067 = vadd.f32 %v3066, %v2959
      %v3068 = vadd.f32 %v3067, %v2962
      %v3069 = vadd.f32 %v3068, %v2965
      %v3070 = vadd.f32 %v3069, %v2968
      %v3071 = vadd.f32 %v3070, %v2971
      %v3072 = vadd.f32 %v3071, %v2974
      %v3073 = vadd.f32 %v3072, %v2977
      %v3074 = vrot.slane %v3073, 4
      %v3075 = vadd.f32 %v3073, %v3074
      %v3076 = vrot.slane %v3075, 2
      %v3077 = vadd.f32 %v3075, %v3076
      %v3078 = vrot.slane %v3077, 1
      %v3079 = vadd.f32 %v3077, %v3078
      %v3080 = vmul.f32 %v2884, %v2884
      %v3081 = vmul.f32 %v2887, %v2887
      %v3082 = vmul.f32 %v2890, %v2890
      %v3083 = vmul.f32 %v2893, %v2893
      %v3084 = vmul.f32 %v2896, %v2896
      %v3085 = vmul.f32 %v2899, %v2899
      %v3086 = vmul.f32 %v2902, %v2902
      %v3087 = vmul.f32 %v2905, %v2905
      %v3088 = vmul.f32 %v2908, %v2908
      %v3089 = vmul.f32 %v2911, %v2911
      %v3090 = vmul.f32 %v2914, %v2914
      %v3091 = vmul.f32 %v2917, %v2917
      %v3092 = vmul.f32 %v2920, %v2920
      %v3093 = vmul.f32 %v2923, %v2923
      %v3094 = vmul.f32 %v2926, %v2926
      %v3095 = vmul.f32 %v2929, %v2929
      %v3096 = vmul.f32 %v2932, %v2932
      %v3097 = vmul.f32 %v2935, %v2935
      %v3098 = vmul.f32 %v2938, %v2938
      %v3099 = vmul.f32 %v2941, %v2941
      %v3100 = vmul.f32 %v2944, %v2944
      %v3101 = vmul.f32 %v2947, %v2947
      %v3102 = vmul.f32 %v2950, %v2950
      %v3103 = vmul.f32 %v2953, %v2953
      %v3104 = vmul.f32 %v2956, %v2956
      %v3105 = vmul.f32 %v2959, %v2959
      %v3106 = vmul.f32 %v2962, %v2962
      %v3107 = vmul.f32 %v2965, %v2965
      %v3108 = vmul.f32 %v2968, %v2968
      %v3109 = vmul.f32 %v2971, %v2971
      %v3110 = vmul.f32 %v2974, %v2974
      %v3111 = vmul.f32 %v2977, %v2977
      %v3112 = vadd.f32 %v3080, %v3081
      %v3113 = vadd.f32 %v3112, %v3082
      %v3114 = vadd.f32 %v3113, %v3083
      %v3115 = vadd.f32 %v3114, %v3084
      %v3116 = vadd.f32 %v3115, %v3085
      %v3117 = vadd.f32 %v3116, %v3086
      %v3118 = vadd.f32 %v3117, %v3087
      %v3119 = vadd.f32 %v3118, %v3088
      %v3120 = vadd.f32 %v3119, %v3089
      %v3121 = vadd.f32 %v3120, %v3090
      %v3122 = vadd.f32 %v3121, %v3091
      %v3123 = vadd.f32 %v3122, %v3092
      %v3124 = vadd.f32 %v3123, %v3093
      %v3125 = vadd.f32 %v3124, %v3094
      %v3126 = vadd.f32 %v3125, %v3095
      %v3127 = vadd.f32 %v3126, %v3096
      %v3128 = vadd.f32 %v3127, %v3097
      %v3129 = vadd.f32 %v3128, %v3098
      %v3130 = vadd.f32 %v3129, %v3099
      %v3131 = vadd.f32 %v3130, %v3100
      %v3132 = vadd.f32 %v3131, %v3101
      %v3133 = vadd.f32 %v3132, %v3102
      %v3134 = vadd.f32 %v3133, %v3103
      %v3135 = vadd.f32 %v3134, %v3104
      %v3136 = vadd.f32 %v3135, %v3105
      %v3137 = vadd.f32 %v3136, %v3106
      %v3138 = vadd.f32 %v3137, %v3107
      %v3139 = vadd.f32 %v3138, %v3108
      %v3140 = vadd.f32 %v3139, %v3109
      %v3141 = vadd.f32 %v3140, %v3110
      %v3142 = vadd.f32 %v3141, %v3111
      %v3143 = vrot.slane %v3142, 4
      %v3144 = vadd.f32 %v3142, %v3143
      %v3145 = vrot.slane %v3144, 2
      %v3146 = vadd.f32 %v3144, %v3145
      %v3147 = vrot.slane %v3146, 1
      %v3148 = vadd.f32 %v3146, %v3147
      %vm3149 = vcmask 1040384
      %v3150 = vsel %vm3149, %v3079, %v3148
      %3151 = vst [vmem:[%s247] sm:$0x3] %v3150
      %p3152 = scmp.lt.s32.totalorder %s17, 1
      %s3153 = scalar_select %p3152, %s17, 1
      %s3154 = smul.addr %s3153, 32
      %s3155 = smul.addr %s3154, 8
      %s3156 = scalar_lea.vmem %s3, %s3155
      %p3157 = scmp.lt.s32.totalorder %s17, 1
      %s3158 = scalar_select %p3157, %s17, 1
      %s3159 = smul.addr %s3158, 32
      %s3160 = smul.addr %s3159, 8
      %s3161 = scalar_lea.vmem %s4, %s3160
      %p3162 = scmp.lt.s32.totalorder %s17, 1
      %s3163 = scalar_select %p3162, %s17, 1
      %s3164 = smul.addr %s3163, 2
      %s3165 = scalar_lea.vmem %s5, %s3164
      // Predicated region
      $region33: #{base_block_forward.2} parent=31 // pred_check
        %p3166 = pneg %p103
      $region34: #{base_block_forward.2} parent=31 // pred_check_branch
        %3168 = sbr.rel (%p3166) target = $region36
      $region35: #{base_block_forward.2} parent=31 // pred_region
        _
      $region36: #{base_block_forward.2} parent=31 // pred_fallthru
        _
      // Predicated region
      $region37: #{base_block_forward.2} parent=31 // pred_check
        %p3169 = pneg %p129
      $region38: #{base_block_forward.2} parent=31 // pred_check_branch
        %3171 = sbr.rel (%p3169) target = $region40
      $region39: #{base_block_forward.2} parent=31 // pred_region
        _
      $region40: #{base_block_forward.2} parent=31 // pred_fallthru
        _
      // Predicated region
      $region41: #{base_block_forward.2} parent=31 // pred_check
        %p3172 = pneg %p155
      $region42: #{base_block_forward.2} parent=31 // pred_check_branch
        %3174 = sbr.rel (%p3172) target = $region44
      $region43: #{base_block_forward.2} parent=31 // pred_region
        _
      $region44: #{base_block_forward.2} parent=31 // pred_fallthru
        _
    $region32: #{base_block_forward.2} parent=5 // pred_fallthru
      _
    %p3175 = scmp.le.s32.totalorder 2, %s12
    // Predicated region
    $region45: #{base_block_forward.2} parent=5 // pred_check
      %p3176 = pneg %p3175
    $region46: #{base_block_forward.2} parent=5 // pred_check_branch
      %3178 = sbr.rel (%p3176) target = $region48
    $region47: #{base_block_forward.2} parent=5 // pred_region
      %s3179 = ssub.s32 %s12, 2
      // Predicated region
      $region49: #{base_block_forward.2} parent=47 // pred_check
        %p3180 = pneg %p109
      $region50: #{base_block_forward.2} parent=47 // pred_check_branch
        %3182 = sbr.rel (%p3180) target = $region52
      $region51: #{base_block_forward.2} parent=47 // pred_region
        %p3183 = scmp.lt.s32.totalorder %s18, 1
        %s3184 = scalar_select %p3183, %s18, 1
        %s3185 = smul.addr %s3184, 32
        %s3186 = smul.addr %s3185, 8
        %s3187 = scalar_lea.vmem %s3, %s3186
      $region52: #{base_block_forward.2} parent=47 // pred_fallthru
        _
      // Predicated region
      $region53: #{base_block_forward.2} parent=47 // pred_check
        %p3188 = pneg %p135
      $region54: #{base_block_forward.2} parent=47 // pred_check_branch
        %3190 = sbr.rel (%p3188) target = $region56
      $region55: #{base_block_forward.2} parent=47 // pred_region
        %p3191 = scmp.lt.s32.totalorder %s18, 1
        %s3192 = scalar_select %p3191, %s18, 1
        %s3193 = smul.addr %s3192, 32
        %s3194 = smul.addr %s3193, 8
        %s3195 = scalar_lea.vmem %s4, %s3194
      $region56: #{base_block_forward.2} parent=47 // pred_fallthru
        _
      // Predicated region
      $region57: #{base_block_forward.2} parent=47 // pred_check
        %p3196 = pneg %p161
      $region58: #{base_block_forward.2} parent=47 // pred_check_branch
        %3198 = sbr.rel (%p3196) target = $region60
      $region59: #{base_block_forward.2} parent=47 // pred_region
        %p3199 = scmp.lt.s32.totalorder %s18, 1
        %s3200 = scalar_select %p3199, %s18, 1
        %s3201 = smul.addr %s3200, 2
        %s3202 = scalar_lea.vmem %s5, %s3201
      $region60: #{base_block_forward.2} parent=47 // pred_fallthru
        _
    $region48: #{base_block_forward.2} parent=5 // pred_fallthru
      _
  $region6: #{base_block_forward.2} parent=0 // loop_footer
    %s16 = sadd.s32 1, %s12
  $region7: #{base_block_forward.2} parent=0 // loop_footer_branch
    %11 = sbr.rel target = $region3
  $region8: #{base_block_forward.2} parent=0 // loop_exit
    _

// kernel: base_block_forward.3
$region0: #{base_block_forward.3}
  #allocation0 [shape = 'u32[]', space=smem, size = 0x4, offset = 0x4, fixed_abs, tag = 'smem constant byte address 0x4 - core index']
  #allocation1 [shape = 'u32[72,128]{1,0:T(1,128)}', space=vmem, size = 0x9000, scoped, tag = 'internal scratch']
  #allocation2 [shape = 'f32[18,18,128]{2,1,0:T(8,128)}', space=vmem, size = 0x36000, scoped, tag = 'scratch operand']
  %s0 = inlined_call_operand.vmem [shape: f32[2,16,16,128], index: 0, kind: input, shape index: {}]
  %s1 = inlined_call_operand.vmem [shape: f32[2,16,16,128], index: 1, kind: input, shape index: {}]
  %s2 = inlined_call_operand.vmem [shape: f32[1,128], index: 2, kind: input, shape index: {}]
  %s3 = inlined_call_operand.vmem [shape: f32[1,128], index: 3, kind: input, shape index: {}]
  %s4 = inlined_call_operand.vmem [shape: f32[1152,128], index: 4, kind: input, shape index: {}]
  %s5 = inlined_call_operand.vmem [shape: f32[2,16,16,128], index: 5, kind: output, shape index: {}]
  %s6 = sld [smem:[#allocation0]]
  $region53: #{base_block_forward.3} parent=0
    _
  %s8 = ssub.s32 1, %s6
  %s9 = scalar_select 0, %s8, %s6
  loop: start=0, step=1, limit=4
  $region2: #{base_block_forward.3} parent=0 // loop_pre_header
    _
  $region3: #{base_block_forward.3} parent=0 // loop_header
    %s11 = sphi 0, %s15
    %p12 = scmp.ge.s32.totalorder %s11, 4
    %s21 = sphi 0, %s23
    %s24 = sphi 0, %s21
    %s25 = sphi 0, %s24
    %s41 = sphi 0, %s25
    %s47 = sphi 0, %s49
    %s50 = sphi 0, %s47
    %s51 = sphi 0, %s50
    %s67 = sphi 0, %s51
    %s71 = sphi 0, %s71
    %s73 = sphi 0, %s71
    %s74 = sphi 0, %s73
    %s88 = sphi 0, %s74
    %s92 = sphi 0, %s92
    %s94 = sphi 0, %s92
    %s95 = sphi 0, %s94
    %s109 = sphi 0, %s95
    %s113 = sphi 0, %s113
    %s115 = sphi 0, %s113
    %s116 = sphi 0, %s115
    %s130 = sphi 0, %s116
    %s136 = sphi 0, %s138
    %s139 = sphi 0, %s136
    %s140 = sphi 0, %s139
    %s156 = sphi 0, %s140
  $region4: #{base_block_forward.3} parent=0 // loop_header_branch
    %14 = sbr.rel (%p12) target = $region8
  $region5: #{base_block_forward.3} parent=0 // loop_body
    %s16 = ssub.s32 %s11, 1
    %s17 = ssub.s32 %s11, 2
    %s18 = sadd.s32 %s11, 1
    %s19 = ssub.s32 %s11, %s18
    %p20 = scmp.eq.s32.totalorder %s19, 0
    %s22 = sadd.s32 %s21, 1
    %s23 = scalar_select %p20, %s21, %s22
    %p26 = pneg %p20
    %p27 = scmp.eq.s32.totalorder %s11, 1
    %p28 = por %p26, %p27
    %p29 = scmp.ne.s32.totalorder %s21, %s24
    %p30 = scmp.eq.s32.totalorder %s11, 0
    %p31 = por %p29, %p30
    %p32 = scmp.ne.s32.totalorder %s21, %s24
    %p33 = scmp.eq.s32.totalorder %s16, 1
    %p34 = por %p32, %p33
    %p35 = scmp.ne.s32.totalorder %s24, %s25
    %p36 = scmp.eq.s32.totalorder %s16, 0
    %p37 = por %p35, %p36
    %p38 = scmp.ne.s32.totalorder %s24, %s25
    %p39 = scmp.eq.s32.totalorder %s17, 1
    %p40 = por %p38, %p39
    %p42 = scmp.ne.s32.totalorder %s25, %s41
    %p43 = scmp.eq.s32.totalorder %s17, 0
    %p44 = por %p42, %p43
    %s45 = ssub.s32 %s11, %s18
    %p46 = scmp.eq.s32.totalorder %s45, 0
    %s48 = sadd.s32 %s47, 1
    %s49 = scalar_select %p46, %s47, %s48
    %p52 = pneg %p46
    %p53 = scmp.eq.s32.totalorder %s11, 1
    %p54 = por %p52, %p53
    %p55 = scmp.ne.s32.totalorder %s47, %s50
    %p56 = scmp.eq.s32.totalorder %s11, 0
    %p57 = por %p55, %p56
    %p58 = scmp.ne.s32.totalorder %s47, %s50
    %p59 = scmp.eq.s32.totalorder %s16, 1
    %p60 = por %p58, %p59
    %p61 = scmp.ne.s32.totalorder %s50, %s51
    %p62 = scmp.eq.s32.totalorder %s16, 0
    %p63 = por %p61, %p62
    %p64 = scmp.ne.s32.totalorder %s50, %s51
    %p65 = scmp.eq.s32.totalorder %s17, 1
    %p66 = por %p64, %p65
    %p68 = scmp.ne.s32.totalorder %s51, %s67
    %p69 = scmp.eq.s32.totalorder %s17, 0
    %p70 = por %p68, %p69
    %s72 = sadd.s32 %s71, 1
    %p75 = scmp.eq.s32.totalorder %s11, 1
    %p76 = scmp.ne.s32.totalorder %s71, %s73
    %p77 = scmp.eq.s32.totalorder %s11, 0
    %p78 = por %p76, %p77
    %p79 = scmp.ne.s32.totalorder %s71, %s73
    %p80 = scmp.eq.s32.totalorder %s16, 1
    %p81 = por %p79, %p80
    %p82 = scmp.ne.s32.totalorder %s73, %s74
    %p83 = scmp.eq.s32.totalorder %s16, 0
    %p84 = por %p82, %p83
    %p85 = scmp.ne.s32.totalorder %s73, %s74
    %p86 = scmp.eq.s32.totalorder %s17, 1
    %p87 = por %p85, %p86
    %p89 = scmp.ne.s32.totalorder %s74, %s88
    %p90 = scmp.eq.s32.totalorder %s17, 0
    %p91 = por %p89, %p90
    %s93 = sadd.s32 %s92, 1
    %p96 = scmp.eq.s32.totalorder %s11, 1
    %p97 = scmp.ne.s32.totalorder %s92, %s94
    %p98 = scmp.eq.s32.totalorder %s11, 0
    %p99 = por %p97, %p98
    %p100 = scmp.ne.s32.totalorder %s92, %s94
    %p101 = scmp.eq.s32.totalorder %s16, 1
    %p102 = por %p100, %p101
    %p103 = scmp.ne.s32.totalorder %s94, %s95
    %p104 = scmp.eq.s32.totalorder %s16, 0
    %p105 = por %p103, %p104
    %p106 = scmp.ne.s32.totalorder %s94, %s95
    %p107 = scmp.eq.s32.totalorder %s17, 1
    %p108 = por %p106, %p107
    %p110 = scmp.ne.s32.totalorder %s95, %s109
    %p111 = scmp.eq.s32.totalorder %s17, 0
    %p112 = por %p110, %p111
    %s114 = sadd.s32 %s113, 1
    %p117 = scmp.eq.s32.totalorder %s11, 1
    %p118 = scmp.ne.s32.totalorder %s113, %s115
    %p119 = scmp.eq.s32.totalorder %s11, 0
    %p120 = por %p118, %p119
    %p121 = scmp.ne.s32.totalorder %s113, %s115
    %p122 = scmp.eq.s32.totalorder %s16, 1
    %p123 = por %p121, %p122
    %p124 = scmp.ne.s32.totalorder %s115, %s116
    %p125 = scmp.eq.s32.totalorder %s16, 0
    %p126 = por %p124, %p125
    %p127 = scmp.ne.s32.totalorder %s115, %s116
    %p128 = scmp.eq.s32.totalorder %s17, 1
    %p129 = por %p127, %p128
    %p131 = scmp.ne.s32.totalorder %s116, %s130
    %p132 = scmp.eq.s32.totalorder %s17, 0
    %p133 = por %p131, %p132
    %s134 = ssub.s32 %s11, %s18
    %p135 = scmp.eq.s32.totalorder %s134, 0
    %s137 = sadd.s32 %s136, 1
    %s138 = scalar_select %p135, %s136, %s137
    %p141 = pneg %p135
    %p142 = scmp.eq.s32.totalorder %s11, 1
    %p143 = por %p141, %p142
    %p144 = scmp.ne.s32.totalorder %s136, %s139
    %p145 = scmp.eq.s32.totalorder %s11, 0
    %p146 = por %p144, %p145
    %p147 = scmp.ne.s32.totalorder %s136, %s139
    %p148 = scmp.eq.s32.totalorder %s16, 1
    %p149 = por %p147, %p148
    %p150 = scmp.ne.s32.totalorder %s139, %s140
    %p151 = scmp.eq.s32.totalorder %s16, 0
    %p152 = por %p150, %p151
    %p153 = scmp.ne.s32.totalorder %s139, %s140
    %p154 = scmp.eq.s32.totalorder %s17, 1
    %p155 = por %p153, %p154
    %p157 = scmp.ne.s32.totalorder %s140, %s156
    %p158 = scmp.eq.s32.totalorder %s17, 0
    %p159 = por %p157, %p158
    %p160 = scmp.le.s32.totalorder 1, %s11
    %p161 = scmp.lt.s32.totalorder %s11, 3
    %p162 = pnand %p160, %p161
    %p163 = pneg %p162
    // Predicated region
    $region9: #{base_block_forward.3} parent=5 // pred_check
      _
    $region10: #{base_block_forward.3} parent=5 // pred_check_branch
      %165 = sbr.rel (%p162) target = $region12
    $region11: #{base_block_forward.3} parent=5 // pred_region
      %s166 = ssub.s32 %s11, 1
      // Predicated region
      $region13: #{base_block_forward.3} parent=11 // pred_check
        %p167 = pneg %p84
      $region14: #{base_block_forward.3} parent=11 // pred_check_branch
        %169 = sbr.rel (%p167) target = $region16
      $region15: #{base_block_forward.3} parent=11 // pred_region
        _
      $region16: #{base_block_forward.3} parent=11 // pred_fallthru
        _
      // Predicated region
      $region17: #{base_block_forward.3} parent=11 // pred_check
        %p170 = pneg %p105
      $region18: #{base_block_forward.3} parent=11 // pred_check_branch
        %172 = sbr.rel (%p170) target = $region20
      $region19: #{base_block_forward.3} parent=11 // pred_region
        _
      $region20: #{base_block_forward.3} parent=11 // pred_fallthru
        _
      // Predicated region
      $region21: #{base_block_forward.3} parent=11 // pred_check
        %p173 = pneg %p126
      $region22: #{base_block_forward.3} parent=11 // pred_check_branch
        %175 = sbr.rel (%p173) target = $region24
      $region23: #{base_block_forward.3} parent=11 // pred_region
        _
      $region24: #{base_block_forward.3} parent=11 // pred_fallthru
        _
    $region12: #{base_block_forward.3} parent=5 // pred_fallthru
      _
    %p176 = scmp.lt.s32.totalorder %s11, 2
    // Predicated region
    $region25: #{base_block_forward.3} parent=5 // pred_check
      %p177 = pneg %p176
    $region26: #{base_block_forward.3} parent=5 // pred_check_branch
      %179 = sbr.rel (%p177) target = $region28
    $region27: #{base_block_forward.3} parent=5 // pred_region
      // Predicated region
      $region29: #{base_block_forward.3} parent=27 // pred_check
        %p180 = pneg %p31
      $region30: #{base_block_forward.3} parent=27 // pred_check_branch
        %182 = sbr.rel (%p180) target = $region32
      $region31: #{base_block_forward.3} parent=27 // pred_region
        %p183 = scmp.lt.s32.totalorder %s11, 1
        %s184 = scalar_select %p183, %s11, 1
        %s185 = smul.addr %s184, 32
        %s186 = smul.addr %s185, 8
        %s187 = scalar_lea.vmem %s0, %s186
      $region32: #{base_block_forward.3} parent=27 // pred_fallthru
        _
      // Predicated region
      $region33: #{base_block_forward.3} parent=27 // pred_check
        %p188 = pneg %p57
      $region34: #{base_block_forward.3} parent=27 // pred_check_branch
        %190 = sbr.rel (%p188) target = $region36
      $region35: #{base_block_forward.3} parent=27 // pred_region
        %p191 = scmp.lt.s32.totalorder %s11, 1
        %s192 = scalar_select %p191, %s11, 1
        %s193 = smul.addr %s192, 32
        %s194 = smul.addr %s193, 8
        %s195 = scalar_lea.vmem %s1, %s194
      $region36: #{base_block_forward.3} parent=27 // pred_fallthru
        _
    $region28: #{base_block_forward.3} parent=5 // pred_fallthru
      _
    %p196 = scmp.le.s32.totalorder 1, %s11
    %p197 = scmp.lt.s32.totalorder %s11, 3
    %p198 = pnand %p196, %p197
    %p199 = pneg %p198
    // Predicated region
    $region37: #{base_block_forward.3} parent=5 // pred_check
      _
    $region38: #{base_block_forward.3} parent=5 // pred_check_branch
      %201 = sbr.rel (%p198) target = $region40
    $region39: #{base_block_forward.3} parent=5 // pred_region
      %s202 = ssub.s32 %s11, 1
      %p203 = scmp.lt.s32.totalorder %s16, 1
      %s204 = scalar_select %p203, %s16, 1
      %s205 = smul.addr %s204, 32
      %s206 = smul.addr %s205, 8
      %s207 = scalar_lea.vmem %s0, %s206
      %p208 = pneg %p37
      %p209 = pneg %p34
      %p210 = scmp.lt.s32.totalorder %s16, 1
      %s211 = scalar_select %p210, %s16, 1
      %s212 = smul.addr %s211, 32
      %s213 = smul.addr %s212, 8
      %s214 = scalar_lea.vmem %s1, %s213
      %p215 = pneg %p63
      %p216 = pneg %p60
      %p217 = pneg %p84
      %p218 = pneg %p81
      %p219 = pneg %p105
      %p220 = pneg %p102
      %p221 = pneg %p126
      %p222 = pneg %p123
      %p223 = pneg %p152
      %p224 = pneg %p149
      %p225 = scmp.lt.s32.totalorder %s16, 1
      %s226 = scalar_select %p225, %s16, 1
      %s227 = smul.addr %s226, 32
      %s228 = smul.addr %s227, 8
      %s229 = scalar_lea.vmem %s5, %s228
      %p230 = scmp.lt.s32.totalorder %s16, 1
      %s231 = scalar_select %p230, %s16, 1
      %s232 = smul.addr %s231, 32
      %s233 = smul.addr %s232, 8
      %s234 = scalar_lea.vmem %s0, %s233
      %p235 = scmp.lt.s32.totalorder %s16, 1
      %s236 = scalar_select %p235, %s16, 1
      %s237 = smul.addr %s236, 32
      %s238 = smul.addr %s237, 8
      %s239 = scalar_lea.vmem %s1, %s238
      %p240 = scmp.lt.s32.totalorder %s16, 1
      %s241 = scalar_select %p240, %s16, 1
      %s242 = smul.addr %s241, 32
      %s243 = smul.addr %s242, 8
      %s244 = scalar_lea.vmem %s5, %s243
      %v245 = vld [vmem:[%s234] sm:$0xff]
      %v246 = vld [vmem:[%s234 + $0x8] sm:$0xff]
      %v247 = vld [vmem:[%s234 + $0x10] sm:$0xff]
      %v248 = vld [vmem:[%s234 + $0x18] sm:$0xff]
      %v249 = vld [vmem:[%s234 + $0x20] sm:$0xff]
      %v250 = vld [vmem:[%s234 + $0x28] sm:$0xff]
      %v251 = vld [vmem:[%s234 + $0x30] sm:$0xff]
      %v252 = vld [vmem:[%s234 + $0x38] sm:$0xff]
      %v253 = vld [vmem:[%s234 + $0x40] sm:$0xff]
      %v254 = vld [vmem:[%s234 + $0x48] sm:$0xff]
      %v255 = vld [vmem:[%s234 + $0x50] sm:$0xff]
      %v256 = vld [vmem:[%s234 + $0x58] sm:$0xff]
      %v257 = vld [vmem:[%s234 + $0x60] sm:$0xff]
      %v258 = vld [vmem:[%s234 + $0x68] sm:$0xff]
      %v259 = vld [vmem:[%s234 + $0x70] sm:$0xff]
      %v260 = vld [vmem:[%s234 + $0x78] sm:$0xff]
      %v261 = vld [vmem:[%s234 + $0x80] sm:$0xff]
      %v262 = vld [vmem:[%s234 + $0x88] sm:$0xff]
      %v263 = vld [vmem:[%s234 + $0x90] sm:$0xff]
      %v264 = vld [vmem:[%s234 + $0x98] sm:$0xff]
      %v265 = vld [vmem:[%s234 + $0xa0] sm:$0xff]
      %v266 = vld [vmem:[%s234 + $0xa8] sm:$0xff]
      %v267 = vld [vmem:[%s234 + $0xb0] sm:$0xff]
      %v268 = vld [vmem:[%s234 + $0xb8] sm:$0xff]
      %v269 = vld [vmem:[%s234 + $0xc0] sm:$0xff]
      %v270 = vld [vmem:[%s234 + $0xc8] sm:$0xff]
      %v271 = vld [vmem:[%s234 + $0xd0] sm:$0xff]
      %v272 = vld [vmem:[%s234 + $0xd8] sm:$0xff]
      %v273 = vld [vmem:[%s234 + $0xe0] sm:$0xff]
      %v274 = vld [vmem:[%s234 + $0xe8] sm:$0xff]
      %v275 = vld [vmem:[%s234 + $0xf0] sm:$0xff]
      %v276 = vld [vmem:[%s234 + $0xf8] sm:$0xff]
      %v277 = vld [vmem:[%s2] sm:$0x1]
      %v279 = vperm.slane %v277, 0
      %v281 = vmul.f32 %v245, %v279
      %v282 = vmul.f32 %v246, %v279
      %v283 = vmul.f32 %v247, %v279
      %v284 = vmul.f32 %v248, %v279
      %v285 = vmul.f32 %v249, %v279
      %v286 = vmul.f32 %v250, %v279
      %v287 = vmul.f32 %v251, %v279
      %v288 = vmul.f32 %v252, %v279
      %v289 = vmul.f32 %v253, %v279
      %v290 = vmul.f32 %v254, %v279
      %v291 = vmul.f32 %v255, %v279
      %v292 = vmul.f32 %v256, %v279
      %v293 = vmul.f32 %v257, %v279
      %v294 = vmul.f32 %v258, %v279
      %v295 = vmul.f32 %v259, %v279
      %v296 = vmul.f32 %v260, %v279
      %v297 = vmul.f32 %v261, %v279
      %v298 = vmul.f32 %v262, %v279
      %v299 = vmul.f32 %v263, %v279
      %v300 = vmul.f32 %v264, %v279
      %v301 = vmul.f32 %v265, %v279
      %v302 = vmul.f32 %v266, %v279
      %v303 = vmul.f32 %v267, %v279
      %v304 = vmul.f32 %v268, %v279
      %v305 = vmul.f32 %v269, %v279
      %v306 = vmul.f32 %v270, %v279
      %v307 = vmul.f32 %v271, %v279
      %v308 = vmul.f32 %v272, %v279
      %v309 = vmul.f32 %v273, %v279
      %v310 = vmul.f32 %v274, %v279
      %v311 = vmul.f32 %v275, %v279
      %v312 = vmul.f32 %v276, %v279
      %v313 = vld [vmem:[%s3] sm:$0x1]
      %v315 = vperm.slane %v313, 0
      %v317 = vadd.f32 %v281, %v315
      %v318 = vadd.f32 %v282, %v315
      %v319 = vadd.f32 %v283, %v315
      %v320 = vadd.f32 %v284, %v315
      %v321 = vadd.f32 %v285, %v315
      %v322 = vadd.f32 %v286, %v315
      %v323 = vadd.f32 %v287, %v315
      %v324 = vadd.f32 %v288, %v315
      %v325 = vadd.f32 %v289, %v315
      %v326 = vadd.f32 %v290, %v315
      %v327 = vadd.f32 %v291, %v315
      %v328 = vadd.f32 %v292, %v315
      %v329 = vadd.f32 %v293, %v315
      %v330 = vadd.f32 %v294, %v315
      %v331 = vadd.f32 %v295, %v315
      %v332 = vadd.f32 %v296, %v315
      %v333 = vadd.f32 %v297, %v315
      %v334 = vadd.f32 %v298, %v315
      %v335 = vadd.f32 %v299, %v315
      %v336 = vadd.f32 %v300, %v315
      %v337 = vadd.f32 %v301, %v315
      %v338 = vadd.f32 %v302, %v315
      %v339 = vadd.f32 %v303, %v315
      %v340 = vadd.f32 %v304, %v315
      %v341 = vadd.f32 %v305, %v315
      %v342 = vadd.f32 %v306, %v315
      %v343 = vadd.f32 %v307, %v315
      %v344 = vadd.f32 %v308, %v315
      %v345 = vadd.f32 %v309, %v315
      %v346 = vadd.f32 %v310, %v315
      %v347 = vadd.f32 %v311, %v315
      %v348 = vadd.f32 %v312, %v315
      %v349 = vmax.f32 %v317, 0.0
      %v350 = vmax.f32 %v318, 0.0
      %v351 = vmax.f32 %v319, 0.0
      %v352 = vmax.f32 %v320, 0.0
      %v353 = vmax.f32 %v321, 0.0
      %v354 = vmax.f32 %v322, 0.0
      %v355 = vmax.f32 %v323, 0.0
      %v356 = vmax.f32 %v324, 0.0
      %v357 = vmax.f32 %v325, 0.0
      %v358 = vmax.f32 %v326, 0.0
      %v359 = vmax.f32 %v327, 0.0
      %v360 = vmax.f32 %v328, 0.0
      %v361 = vmax.f32 %v329, 0.0
      %v362 = vmax.f32 %v330, 0.0
      %v363 = vmax.f32 %v331, 0.0
      %v364 = vmax.f32 %v332, 0.0
      %v365 = vmax.f32 %v333, 0.0
      %v366 = vmax.f32 %v334, 0.0
      %v367 = vmax.f32 %v335, 0.0
      %v368 = vmax.f32 %v336, 0.0
      %v369 = vmax.f32 %v337, 0.0
      %v370 = vmax.f32 %v338, 0.0
      %v371 = vmax.f32 %v339, 0.0
      %v372 = vmax.f32 %v340, 0.0
      %v373 = vmax.f32 %v341, 0.0
      %v374 = vmax.f32 %v342, 0.0
      %v375 = vmax.f32 %v343, 0.0
      %v376 = vmax.f32 %v344, 0.0
      %v377 = vmax.f32 %v345, 0.0
      %v378 = vmax.f32 %v346, 0.0
      %v379 = vmax.f32 %v347, 0.0
      %v380 = vmax.f32 %v348, 0.0
      %381 = vst [vmem:[#allocation2] sm:$0xff] 0.0
      %382 = vst [vmem:[#allocation2 + $0x8] sm:$0xff] 0.0
      %383 = vst [vmem:[#allocation2 + $0x10] sm:$0x3] 0.0
      %384 = vst [vmem:[#allocation2 + $0x18] sm:$0xff] 0.0
      %385 = vst [vmem:[#allocation2 + $0x20] sm:$0xff] 0.0
      %386 = vst [vmem:[#allocation2 + $0x28] sm:$0x3] 0.0
      %387 = vst [vmem:[#allocation2 + $0x30] sm:$0xff] 0.0
      %388 = vst [vmem:[#allocation2 + $0x38] sm:$0xff] 0.0
      %389 = vst [vmem:[#allocation2 + $0x40] sm:$0x3] 0.0
      %390 = vst [vmem:[#allocation2 + $0x48] sm:$0xff] 0.0
      %391 = vst [vmem:[#allocation2 + $0x50] sm:$0xff] 0.0
      %392 = vst [vmem:[#allocation2 + $0x58] sm:$0x3] 0.0
      %393 = vst [vmem:[#allocation2 + $0x60] sm:$0xff] 0.0
      %394 = vst [vmem:[#allocation2 + $0x68] sm:$0xff] 0.0
      %395 = vst [vmem:[#allocation2 + $0x70] sm:$0x3] 0.0
      %396 = vst [vmem:[#allocation2 + $0x78] sm:$0xff] 0.0
      %397 = vst [vmem:[#allocation2 + $0x80] sm:$0xff] 0.0
      %398 = vst [vmem:[#allocation2 + $0x88] sm:$0x3] 0.0
      %399 = vst [vmem:[#allocation2 + $0x90] sm:$0xff] 0.0
      %400 = vst [vmem:[#allocation2 + $0x98] sm:$0xff] 0.0
      %401 = vst [vmem:[#allocation2 + $0xa0] sm:$0x3] 0.0
      %402 = vst [vmem:[#allocation2 + $0xa8] sm:$0xff] 0.0
      %403 = vst [vmem:[#allocation2 + $0xb0] sm:$0xff] 0.0
      %404 = vst [vmem:[#allocation2 + $0xb8] sm:$0x3] 0.0
      %405 = vst [vmem:[#allocation2 + $0xc0] sm:$0xff] 0.0
      %406 = vst [vmem:[#allocation2 + $0xc8] sm:$0xff] 0.0
      %407 = vst [vmem:[#allocation2 + $0xd0] sm:$0x3] 0.0
      %408 = vst [vmem:[#allocation2 + $0xd8] sm:$0xff] 0.0
      %409 = vst [vmem:[#allocation2 + $0xe0] sm:$0xff] 0.0
      %410 = vst [vmem:[#allocation2 + $0xe8] sm:$0x3] 0.0
      %411 = vst [vmem:[#allocation2 + $0xf0] sm:$0xff] 0.0
      %412 = vst [vmem:[#allocation2 + $0xf8] sm:$0xff] 0.0
      %413 = vst [vmem:[#allocation2 + $0x100] sm:$0x3] 0.0
      %414 = vst [vmem:[#allocation2 + $0x108] sm:$0xff] 0.0
      %415 = vst [vmem:[#allocation2 + $0x110] sm:$0xff] 0.0
      %416 = vst [vmem:[#allocation2 + $0x118] sm:$0x3] 0.0
      %417 = vst [vmem:[#allocation2 + $0x120] sm:$0xff] 0.0
      %418 = vst [vmem:[#allocation2 + $0x128] sm:$0xff] 0.0
      %419 = vst [vmem:[#allocation2 + $0x130] sm:$0x3] 0.0
      %420 = vst [vmem:[#allocation2 + $0x138] sm:$0xff] 0.0
      %421 = vst [vmem:[#allocation2 + $0x140] sm:$0xff] 0.0
      %422 = vst [vmem:[#allocation2 + $0x148] sm:$0x3] 0.0
      %423 = vst [vmem:[#allocation2 + $0x150] sm:$0xff] 0.0
      %424 = vst [vmem:[#allocation2 + $0x158] sm:$0xff] 0.0
      %425 = vst [vmem:[#allocation2 + $0x160] sm:$0x3] 0.0
      %426 = vst [vmem:[#allocation2 + $0x168] sm:$0xff] 0.0
      %427 = vst [vmem:[#allocation2 + $0x170] sm:$0xff] 0.0
      %428 = vst [vmem:[#allocation2 + $0x178] sm:$0x3] 0.0
      %429 = vst [vmem:[#allocation2 + $0x180] sm:$0xff] 0.0
      %430 = vst [vmem:[#allocation2 + $0x188] sm:$0xff] 0.0
      %431 = vst [vmem:[#allocation2 + $0x190] sm:$0x3] 0.0
      %432 = vst [vmem:[#allocation2 + $0x198] sm:$0xff] 0.0
      %433 = vst [vmem:[#allocation2 + $0x1a0] sm:$0xff] 0.0
      %434 = vst [vmem:[#allocation2 + $0x1a8] sm:$0x3] 0.0
      %s435 = scalar_lea.vmem [#allocation2], 24
      %436 = vst [vmem:[%s435 + $0x1] sm:$0xff] %v349
      %437 = vst [vmem:[%s435 + $0x9] sm:$0xff] %v350
      %438 = vst [vmem:[%s435 + $0x19] sm:$0xff] %v351
      %439 = vst [vmem:[%s435 + $0x21] sm:$0xff] %v352
      %440 = vst [vmem:[%s435 + $0x31] sm:$0xff] %v353
      %441 = vst [vmem:[%s435 + $0x39] sm:$0xff] %v354
      %442 = vst [vmem:[%s435 + $0x49] sm:$0xff] %v355
      %443 = vst [vmem:[%s435 + $0x51] sm:$0xff] %v356
      %444 = vst [vmem:[%s435 + $0x61] sm:$0xff] %v357
      %445 = vst [vmem:[%s435 + $0x69] sm:$0xff] %v358
      %446 = vst [vmem:[%s435 + $0x79] sm:$0xff] %v359
      %447 = vst [vmem:[%s435 + $0x81] sm:$0xff] %v360
      %448 = vst [vmem:[%s435 + $0x91] sm:$0xff] %v361
      %449 = vst [vmem:[%s435 + $0x99] sm:$0xff] %v362
      %450 = vst [vmem:[%s435 + $0xa9] sm:$0xff] %v363
      %451 = vst [vmem:[%s435 + $0xb1] sm:$0xff] %v364
      %452 = vst [vmem:[%s435 + $0xc1] sm:$0xff] %v365
      %453 = vst [vmem:[%s435 + $0xc9] sm:$0xff] %v366
      %454 = vst [vmem:[%s435 + $0xd9] sm:$0xff] %v367
      %455 = vst [vmem:[%s435 + $0xe1] sm:$0xff] %v368
      %456 = vst [vmem:[%s435 + $0xf1] sm:$0xff] %v369
      %457 = vst [vmem:[%s435 + $0xf9] sm:$0xff] %v370
      %458 = vst [vmem:[%s435 + $0x109] sm:$0xff] %v371
      %459 = vst [vmem:[%s435 + $0x111] sm:$0xff] %v372
      %460 = vst [vmem:[%s435 + $0x121] sm:$0xff] %v373
      %461 = vst [vmem:[%s435 + $0x129] sm:$0xff] %v374
      %462 = vst [vmem:[%s435 + $0x139] sm:$0xff] %v375
      %463 = vst [vmem:[%s435 + $0x141] sm:$0xff] %v376
      %464 = vst [vmem:[%s435 + $0x151] sm:$0xff] %v377
      %465 = vst [vmem:[%s435 + $0x159] sm:$0xff] %v378
      %466 = vst [vmem:[%s435 + $0x169] sm:$0xff] %v379
      %467 = vst [vmem:[%s435 + $0x171] sm:$0xff] %v380
      %v468 = vld [vmem:[#allocation2] sm:$0xff]
      %v469 = vld [vmem:[#allocation2 + $0x8] sm:$0xff]
      %v470 = vld [vmem:[#allocation2 + $0x18] sm:$0xff]
      %v471 = vld [vmem:[#allocation2 + $0x20] sm:$0xff]
      %v472 = vld [vmem:[#allocation2 + $0x30] sm:$0xff]
      %v473 = vld [vmem:[#allocation2 + $0x38] sm:$0xff]
      %v474 = vld [vmem:[#allocation2 + $0x48] sm:$0xff]
      %v475 = vld [vmem:[#allocation2 + $0x50] sm:$0xff]
      %v476 = vld [vmem:[#allocation2 + $0x60] sm:$0xff]
      %v477 = vld [vmem:[#allocation2 + $0x68] sm:$0xff]
      %v478 = vld [vmem:[#allocation2 + $0x78] sm:$0xff]
      %v479 = vld [vmem:[#allocation2 + $0x80] sm:$0xff]
      %v480 = vld [vmem:[#allocation2 + $0x90] sm:$0xff]
      %v481 = vld [vmem:[#allocation2 + $0x98] sm:$0xff]
      %v482 = vld [vmem:[#allocation2 + $0xa8] sm:$0xff]
      %v483 = vld [vmem:[#allocation2 + $0xb0] sm:$0xff]
      %v484 = vld [vmem:[#allocation2 + $0xc0] sm:$0xff]
      %v485 = vld [vmem:[#allocation2 + $0xc8] sm:$0xff]
      %v486 = vld [vmem:[#allocation2 + $0xd8] sm:$0xff]
      %v487 = vld [vmem:[#allocation2 + $0xe0] sm:$0xff]
      %v488 = vld [vmem:[#allocation2 + $0xf0] sm:$0xff]
      %v489 = vld [vmem:[#allocation2 + $0xf8] sm:$0xff]
      %v490 = vld [vmem:[#allocation2 + $0x108] sm:$0xff]
      %v491 = vld [vmem:[#allocation2 + $0x110] sm:$0xff]
      %v492 = vld [vmem:[#allocation2 + $0x120] sm:$0xff]
      %v493 = vld [vmem:[#allocation2 + $0x128] sm:$0xff]
      %v494 = vld [vmem:[#allocation2 + $0x138] sm:$0xff]
      %v495 = vld [vmem:[#allocation2 + $0x140] sm:$0xff]
      %v496 = vld [vmem:[#allocation2 + $0x150] sm:$0xff]
      %v497 = vld [vmem:[#allocation2 + $0x158] sm:$0xff]
      %v498 = vld [vmem:[#allocation2 + $0x168] sm:$0xff]
      %v499 = vld [vmem:[#allocation2 + $0x170] sm:$0xff]
      %v500 = vld [vmem:[#allocation2 + $0x1] sm:$0xff]
      %v501 = vld [vmem:[#allocation2 + $0x9] sm:$0xff]
      %v502 = vld [vmem:[#allocation2 + $0x19] sm:$0xff]
      %v503 = vld [vmem:[#allocation2 + $0x21] sm:$0xff]
      %v504 = vld [vmem:[#allocation2 + $0x31] sm:$0xff]
      %v505 = vld [vmem:[#allocation2 + $0x39] sm:$0xff]
      %v506 = vld [vmem:[#allocation2 + $0x49] sm:$0xff]
      %v507 = vld [vmem:[#allocation2 + $0x51] sm:$0xff]
      %v508 = vld [vmem:[#allocation2 + $0x61] sm:$0xff]
      %v509 = vld [vmem:[#allocation2 + $0x69] sm:$0xff]
      %v510 = vld [vmem:[#allocation2 + $0x79] sm:$0xff]
      %v511 = vld [vmem:[#allocation2 + $0x81] sm:$0xff]
      %v512 = vld [vmem:[#allocation2 + $0x91] sm:$0xff]
      %v513 = vld [vmem:[#allocation2 + $0x99] sm:$0xff]
      %v514 = vld [vmem:[#allocation2 + $0xa9] sm:$0xff]
      %v515 = vld [vmem:[#allocation2 + $0xb1] sm:$0xff]
      %v516 = vld [vmem:[#allocation2 + $0xc1] sm:$0xff]
      %v517 = vld [vmem:[#allocation2 + $0xc9] sm:$0xff]
      %v518 = vld [vmem:[#allocation2 + $0xd9] sm:$0xff]
      %v519 = vld [vmem:[#allocation2 + $0xe1] sm:$0xff]
      %v520 = vld [vmem:[#allocation2 + $0xf1] sm:$0xff]
      %v521 = vld [vmem:[#allocation2 + $0xf9] sm:$0xff]
      %v522 = vld [vmem:[#allocation2 + $0x109] sm:$0xff]
      %v523 = vld [vmem:[#allocation2 + $0x111] sm:$0xff]
      %v524 = vld [vmem:[#allocation2 + $0x121] sm:$0xff]
      %v525 = vld [vmem:[#allocation2 + $0x129] sm:$0xff]
      %v526 = vld [vmem:[#allocation2 + $0x139] sm:$0xff]
      %v527 = vld [vmem:[#allocation2 + $0x141] sm:$0xff]
      %v528 = vld [vmem:[#allocation2 + $0x151] sm:$0xff]
      %v529 = vld [vmem:[#allocation2 + $0x159] sm:$0xff]
      %v530 = vld [vmem:[#allocation2 + $0x169] sm:$0xff]
      %v531 = vld [vmem:[#allocation2 + $0x171] sm:$0xff]
      %v532 = vld [vmem:[#allocation2 + $0x2] sm:$0xff]
      %v533 = vld [vmem:[#allocation2 + $0xa] sm:$0xff]
      %v534 = vld [vmem:[#allocation2 + $0x1a] sm:$0xff]
      %v535 = vld [vmem:[#allocation2 + $0x22] sm:$0xff]
      %v536 = vld [vmem:[#allocation2 + $0x32] sm:$0xff]
      %v537 = vld [vmem:[#allocation2 + $0x3a] sm:$0xff]
      %v538 = vld [vmem:[#allocation2 + $0x4a] sm:$0xff]
      %v539 = vld [vmem:[#allocation2 + $0x52] sm:$0xff]
      %v540 = vld [vmem:[#allocation2 + $0x62] sm:$0xff]
      %v541 = vld [vmem:[#allocation2 + $0x6a] sm:$0xff]
      %v542 = vld [vmem:[#allocation2 + $0x7a] sm:$0xff]
      %v543 = vld [vmem:[#allocation2 + $0x82] sm:$0xff]
      %v544 = vld [vmem:[#allocation2 + $0x92] sm:$0xff]
      %v545 = vld [vmem:[#allocation2 + $0x9a] sm:$0xff]
      %v546 = vld [vmem:[#allocation2 + $0xaa] sm:$0xff]
      %v547 = vld [vmem:[#allocation2 + $0xb2] sm:$0xff]
      %v548 = vld [vmem:[#allocation2 + $0xc2] sm:$0xff]
      %v549 = vld [vmem:[#allocation2 + $0xca] sm:$0xff]
      %v550 = vld [vmem:[#allocation2 + $0xda] sm:$0xff]
      %v551 = vld [vmem:[#allocation2 + $0xe2] sm:$0xff]
      %v552 = vld [vmem:[#allocation2 + $0xf2] sm:$0xff]
      %v553 = vld [vmem:[#allocation2 + $0xfa] sm:$0xff]
      %v554 = vld [vmem:[#allocation2 + $0x10a] sm:$0xff]
      %v555 = vld [vmem:[#allocation2 + $0x112] sm:$0xff]
      %v556 = vld [vmem:[#allocation2 + $0x122] sm:$0xff]
      %v557 = vld [vmem:[#allocation2 + $0x12a] sm:$0xff]
      %v558 = vld [vmem:[#allocation2 + $0x13a] sm:$0xff]
      %v559 = vld [vmem:[#allocation2 + $0x142] sm:$0xff]
      %v560 = vld [vmem:[#allocation2 + $0x152] sm:$0xff]
      %v561 = vld [vmem:[#allocation2 + $0x15a] sm:$0xff]
      %v562 = vld [vmem:[#allocation2 + $0x16a] sm:$0xff]
      %v563 = vld [vmem:[#allocation2 + $0x172] sm:$0xff]
      %v564 = vld [vmem:[%s435] sm:$0xff]
      %v565 = vld [vmem:[%s435 + $0x8] sm:$0xff]
      %v566 = vld [vmem:[%s435 + $0x18] sm:$0xff]
      %v567 = vld [vmem:[%s435 + $0x20] sm:$0xff]
      %v568 = vld [vmem:[%s435 + $0x30] sm:$0xff]
      %v569 = vld [vmem:[%s435 + $0x38] sm:$0xff]
      %v570 = vld [vmem:[%s435 + $0x48] sm:$0xff]
      %v571 = vld [vmem:[%s435 + $0x50] sm:$0xff]
      %v572 = vld [vmem:[%s435 + $0x60] sm:$0xff]
      %v573 = vld [vmem:[%s435 + $0x68] sm:$0xff]
      %v574 = vld [vmem:[%s435 + $0x78] sm:$0xff]
      %v575 = vld [vmem:[%s435 + $0x80] sm:$0xff]
      %v576 = vld [vmem:[%s435 + $0x90] sm:$0xff]
      %v577 = vld [vmem:[%s435 + $0x98] sm:$0xff]
      %v578 = vld [vmem:[%s435 + $0xa8] sm:$0xff]
      %v579 = vld [vmem:[%s435 + $0xb0] sm:$0xff]
      %v580 = vld [vmem:[%s435 + $0xc0] sm:$0xff]
      %v581 = vld [vmem:[%s435 + $0xc8] sm:$0xff]
      %v582 = vld [vmem:[%s435 + $0xd8] sm:$0xff]
      %v583 = vld [vmem:[%s435 + $0xe0] sm:$0xff]
      %v584 = vld [vmem:[%s435 + $0xf0] sm:$0xff]
      %v585 = vld [vmem:[%s435 + $0xf8] sm:$0xff]
      %v586 = vld [vmem:[%s435 + $0x108] sm:$0xff]
      %v587 = vld [vmem:[%s435 + $0x110] sm:$0xff]
      %v588 = vld [vmem:[%s435 + $0x120] sm:$0xff]
      %v589 = vld [vmem:[%s435 + $0x128] sm:$0xff]
      %v590 = vld [vmem:[%s435 + $0x138] sm:$0xff]
      %v591 = vld [vmem:[%s435 + $0x140] sm:$0xff]
      %v592 = vld [vmem:[%s435 + $0x150] sm:$0xff]
      %v593 = vld [vmem:[%s435 + $0x158] sm:$0xff]
      %v594 = vld [vmem:[%s435 + $0x168] sm:$0xff]
      %v595 = vld [vmem:[%s435 + $0x170] sm:$0xff]
      %v596 = vld [vmem:[%s435 + $0x1] sm:$0xff]
      %v597 = vld [vmem:[%s435 + $0x9] sm:$0xff]
      %v598 = vld [vmem:[%s435 + $0x19] sm:$0xff]
      %v599 = vld [vmem:[%s435 + $0x21] sm:$0xff]
      %v600 = vld [vmem:[%s435 + $0x31] sm:$0xff]
      %v601 = vld [vmem:[%s435 + $0x39] sm:$0xff]
      %v602 = vld [vmem:[%s435 + $0x49] sm:$0xff]
      %v603 = vld [vmem:[%s435 + $0x51] sm:$0xff]
      %v604 = vld [vmem:[%s435 + $0x61] sm:$0xff]
      %v605 = vld [vmem:[%s435 + $0x69] sm:$0xff]
      %v606 = vld [vmem:[%s435 + $0x79] sm:$0xff]
      %v607 = vld [vmem:[%s435 + $0x81] sm:$0xff]
      %v608 = vld [vmem:[%s435 + $0x91] sm:$0xff]
      %v609 = vld [vmem:[%s435 + $0x99] sm:$0xff]
      %v610 = vld [vmem:[%s435 + $0xa9] sm:$0xff]
      %v611 = vld [vmem:[%s435 + $0xb1] sm:$0xff]
      %v612 = vld [vmem:[%s435 + $0xc1] sm:$0xff]
      %v613 = vld [vmem:[%s435 + $0xc9] sm:$0xff]
      %v614 = vld [vmem:[%s435 + $0xd9] sm:$0xff]
      %v615 = vld [vmem:[%s435 + $0xe1] sm:$0xff]
      %v616 = vld [vmem:[%s435 + $0xf1] sm:$0xff]
      %v617 = vld [vmem:[%s435 + $0xf9] sm:$0xff]
      %v618 = vld [vmem:[%s435 + $0x109] sm:$0xff]
      %v619 = vld [vmem:[%s435 + $0x111] sm:$0xff]
      %v620 = vld [vmem:[%s435 + $0x121] sm:$0xff]
      %v621 = vld [vmem:[%s435 + $0x129] sm:$0xff]
      %v622 = vld [vmem:[%s435 + $0x139] sm:$0xff]
      %v623 = vld [vmem:[%s435 + $0x141] sm:$0xff]
      %v624 = vld [vmem:[%s435 + $0x151] sm:$0xff]
      %v625 = vld [vmem:[%s435 + $0x159] sm:$0xff]
      %v626 = vld [vmem:[%s435 + $0x169] sm:$0xff]
      %v627 = vld [vmem:[%s435 + $0x171] sm:$0xff]
      %v628 = vld [vmem:[%s435 + $0x2] sm:$0xff]
      %v629 = vld [vmem:[%s435 + $0xa] sm:$0xff]
      %v630 = vld [vmem:[%s435 + $0x1a] sm:$0xff]
      %v631 = vld [vmem:[%s435 + $0x22] sm:$0xff]
      %v632 = vld [vmem:[%s435 + $0x32] sm:$0xff]
      %v633 = vld [vmem:[%s435 + $0x3a] sm:$0xff]
      %v634 = vld [vmem:[%s435 + $0x4a] sm:$0xff]
      %v635 = vld [vmem:[%s435 + $0x52] sm:$0xff]
      %v636 = vld [vmem:[%s435 + $0x62] sm:$0xff]
      %v637 = vld [vmem:[%s435 + $0x6a] sm:$0xff]
      %v638 = vld [vmem:[%s435 + $0x7a] sm:$0xff]
      %v639 = vld [vmem:[%s435 + $0x82] sm:$0xff]
      %v640 = vld [vmem:[%s435 + $0x92] sm:$0xff]
      %v641 = vld [vmem:[%s435 + $0x9a] sm:$0xff]
      %v642 = vld [vmem:[%s435 + $0xaa] sm:$0xff]
      %v643 = vld [vmem:[%s435 + $0xb2] sm:$0xff]
      %v644 = vld [vmem:[%s435 + $0xc2] sm:$0xff]
      %v645 = vld [vmem:[%s435 + $0xca] sm:$0xff]
      %v646 = vld [vmem:[%s435 + $0xda] sm:$0xff]
      %v647 = vld [vmem:[%s435 + $0xe2] sm:$0xff]
      %v648 = vld [vmem:[%s435 + $0xf2] sm:$0xff]
      %v649 = vld [vmem:[%s435 + $0xfa] sm:$0xff]
      %v650 = vld [vmem:[%s435 + $0x10a] sm:$0xff]
      %v651 = vld [vmem:[%s435 + $0x112] sm:$0xff]
      %v652 = vld [vmem:[%s435 + $0x122] sm:$0xff]
      %v653 = vld [vmem:[%s435 + $0x12a] sm:$0xff]
      %v654 = vld [vmem:[%s435 + $0x13a] sm:$0xff]
      %v655 = vld [vmem:[%s435 + $0x142] sm:$0xff]
      %v656 = vld [vmem:[%s435 + $0x152] sm:$0xff]
      %v657 = vld [vmem:[%s435 + $0x15a] sm:$0xff]
      %v658 = vld [vmem:[%s435 + $0x16a] sm:$0xff]
      %v659 = vld [vmem:[%s435 + $0x172] sm:$0xff]
      %s660 = scalar_lea.vmem [#allocation2], 48
      %v661 = vld [vmem:[%s660] sm:$0xff]
      %v662 = vld [vmem:[%s660 + $0x8] sm:$0xff]
      %v663 = vld [vmem:[%s660 + $0x18] sm:$0xff]
      %v664 = vld [vmem:[%s660 + $0x20] sm:$0xff]
      %v665 = vld [vmem:[%s660 + $0x30] sm:$0xff]
      %v666 = vld [vmem:[%s660 + $0x38] sm:$0xff]
      %v667 = vld [vmem:[%s660 + $0x48] sm:$0xff]
      %v668 = vld [vmem:[%s660 + $0x50] sm:$0xff]
      %v669 = vld [vmem:[%s660 + $0x60] sm:$0xff]
      %v670 = vld [vmem:[%s660 + $0x68] sm:$0xff]
      %v671 = vld [vmem:[%s660 + $0x78] sm:$0xff]
      %v672 = vld [vmem:[%s660 + $0x80] sm:$0xff]
      %v673 = vld [vmem:[%s660 + $0x90] sm:$0xff]
      %v674 = vld [vmem:[%s660 + $0x98] sm:$0xff]
      %v675 = vld [vmem:[%s660 + $0xa8] sm:$0xff]
      %v676 = vld [vmem:[%s660 + $0xb0] sm:$0xff]
      %v677 = vld [vmem:[%s660 + $0xc0] sm:$0xff]
      %v678 = vld [vmem:[%s660 + $0xc8] sm:$0xff]
      %v679 = vld [vmem:[%s660 + $0xd8] sm:$0xff]
      %v680 = vld [vmem:[%s660 + $0xe0] sm:$0xff]
      %v681 = vld [vmem:[%s660 + $0xf0] sm:$0xff]
      %v682 = vld [vmem:[%s660 + $0xf8] sm:$0xff]
      %v683 = vld [vmem:[%s660 + $0x108] sm:$0xff]
      %v684 = vld [vmem:[%s660 + $0x110] sm:$0xff]
      %v685 = vld [vmem:[%s660 + $0x120] sm:$0xff]
      %v686 = vld [vmem:[%s660 + $0x128] sm:$0xff]
      %v687 = vld [vmem:[%s660 + $0x138] sm:$0xff]
      %v688 = vld [vmem:[%s660 + $0x140] sm:$0xff]
      %v689 = vld [vmem:[%s660 + $0x150] sm:$0xff]
      %v690 = vld [vmem:[%s660 + $0x158] sm:$0xff]
      %v691 = vld [vmem:[%s660 + $0x168] sm:$0xff]
      %v692 = vld [vmem:[%s660 + $0x170] sm:$0xff]
      %v693 = vld [vmem:[%s660 + $0x1] sm:$0xff]
      %v694 = vld [vmem:[%s660 + $0x9] sm:$0xff]
      %v695 = vld [vmem:[%s660 + $0x19] sm:$0xff]
      %v696 = vld [vmem:[%s660 + $0x21] sm:$0xff]
      %v697 = vld [vmem:[%s660 + $0x31] sm:$0xff]
      %v698 = vld [vmem:[%s660 + $0x39] sm:$0xff]
      %v699 = vld [vmem:[%s660 + $0x49] sm:$0xff]
      %v700 = vld [vmem:[%s660 + $0x51] sm:$0xff]
      %v701 = vld [vmem:[%s660 + $0x61] sm:$0xff]
      %v702 = vld [vmem:[%s660 + $0x69] sm:$0xff]
      %v703 = vld [vmem:[%s660 + $0x79] sm:$0xff]
      %v704 = vld [vmem:[%s660 + $0x81] sm:$0xff]
      %v705 = vld [vmem:[%s660 + $0x91] sm:$0xff]
      %v706 = vld [vmem:[%s660 + $0x99] sm:$0xff]
      %v707 = vld [vmem:[%s660 + $0xa9] sm:$0xff]
      %v708 = vld [vmem:[%s660 + $0xb1] sm:$0xff]
      %v709 = vld [vmem:[%s660 + $0xc1] sm:$0xff]
      %v710 = vld [vmem:[%s660 + $0xc9] sm:$0xff]
      %v711 = vld [vmem:[%s660 + $0xd9] sm:$0xff]
      %v712 = vld [vmem:[%s660 + $0xe1] sm:$0xff]
      %v713 = vld [vmem:[%s660 + $0xf1] sm:$0xff]
      %v714 = vld [vmem:[%s660 + $0xf9] sm:$0xff]
      %v715 = vld [vmem:[%s660 + $0x109] sm:$0xff]
      %v716 = vld [vmem:[%s660 + $0x111] sm:$0xff]
      %v717 = vld [vmem:[%s660 + $0x121] sm:$0xff]
      %v718 = vld [vmem:[%s660 + $0x129] sm:$0xff]
      %v719 = vld [vmem:[%s660 + $0x139] sm:$0xff]
      %v720 = vld [vmem:[%s660 + $0x141] sm:$0xff]
      %v721 = vld [vmem:[%s660 + $0x151] sm:$0xff]
      %v722 = vld [vmem:[%s660 + $0x159] sm:$0xff]
      %v723 = vld [vmem:[%s660 + $0x169] sm:$0xff]
      %v724 = vld [vmem:[%s660 + $0x171] sm:$0xff]
      %v725 = vld [vmem:[%s660 + $0x2] sm:$0xff]
      %v726 = vld [vmem:[%s660 + $0xa] sm:$0xff]
      %v727 = vld [vmem:[%s660 + $0x1a] sm:$0xff]
      %v728 = vld [vmem:[%s660 + $0x22] sm:$0xff]
      %v729 = vld [vmem:[%s660 + $0x32] sm:$0xff]
      %v730 = vld [vmem:[%s660 + $0x3a] sm:$0xff]
      %v731 = vld [vmem:[%s660 + $0x4a] sm:$0xff]
      %v732 = vld [vmem:[%s660 + $0x52] sm:$0xff]
      %v733 = vld [vmem:[%s660 + $0x62] sm:$0xff]
      %v734 = vld [vmem:[%s660 + $0x6a] sm:$0xff]
      %v735 = vld [vmem:[%s660 + $0x7a] sm:$0xff]
      %v736 = vld [vmem:[%s660 + $0x82] sm:$0xff]
      %v737 = vld [vmem:[%s660 + $0x92] sm:$0xff]
      %v738 = vld [vmem:[%s660 + $0x9a] sm:$0xff]
      %v739 = vld [vmem:[%s660 + $0xaa] sm:$0xff]
      %v740 = vld [vmem:[%s660 + $0xb2] sm:$0xff]
      %v741 = vld [vmem:[%s660 + $0xc2] sm:$0xff]
      %v742 = vld [vmem:[%s660 + $0xca] sm:$0xff]
      %v743 = vld [vmem:[%s660 + $0xda] sm:$0xff]
      %v744 = vld [vmem:[%s660 + $0xe2] sm:$0xff]
      %v745 = vld [vmem:[%s660 + $0xf2] sm:$0xff]
      %v746 = vld [vmem:[%s660 + $0xfa] sm:$0xff]
      %v747 = vld [vmem:[%s660 + $0x10a] sm:$0xff]
      %v748 = vld [vmem:[%s660 + $0x112] sm:$0xff]
      %v749 = vld [vmem:[%s660 + $0x122] sm:$0xff]
      %v750 = vld [vmem:[%s660 + $0x12a] sm:$0xff]
      %v751 = vld [vmem:[%s660 + $0x13a] sm:$0xff]
      %v752 = vld [vmem:[%s660 + $0x142] sm:$0xff]
      %v753 = vld [vmem:[%s660 + $0x152] sm:$0xff]
      %v754 = vld [vmem:[%s660 + $0x15a] sm:$0xff]
      %v755 = vld [vmem:[%s660 + $0x16a] sm:$0xff]
      %v756 = vld [vmem:[%s660 + $0x172] sm:$0xff]
      %v757 = vld [vmem:[%s4] sm:$0xff]
      %v758 = vld [vmem:[%s4 + $0x8] sm:$0xff]
      %v759 = vld [vmem:[%s4 + $0x10] sm:$0xff]
      %v760 = vld [vmem:[%s4 + $0x18] sm:$0xff]
      %v761 = vld [vmem:[%s4 + $0x20] sm:$0xff]
      %v762 = vld [vmem:[%s4 + $0x28] sm:$0xff]
      %v763 = vld [vmem:[%s4 + $0x30] sm:$0xff]
      %v764 = vld [vmem:[%s4 + $0x38] sm:$0xff]
      %v765 = vld [vmem:[%s4 + $0x40] sm:$0xff]
      %v766 = vld [vmem:[%s4 + $0x48] sm:$0xff]
      %v767 = vld [vmem:[%s4 + $0x50] sm:$0xff]
      %v768 = vld [vmem:[%s4 + $0x58] sm:$0xff]
      %v769 = vld [vmem:[%s4 + $0x60] sm:$0xff]
      %v770 = vld [vmem:[%s4 + $0x68] sm:$0xff]
      %v771 = vld [vmem:[%s4 + $0x70] sm:$0xff]
      %v772 = vld [vmem:[%s4 + $0x78] sm:$0xff]
      %v773 = vld [vmem:[%s4 + $0x80] sm:$0xff]
      %v774 = vld [vmem:[%s4 + $0x88] sm:$0xff]
      %v775 = vld [vmem:[%s4 + $0x90] sm:$0xff]
      %v776 = vld [vmem:[%s4 + $0x98] sm:$0xff]
      %v777 = vld [vmem:[%s4 + $0xa0] sm:$0xff]
      %v778 = vld [vmem:[%s4 + $0xa8] sm:$0xff]
      %v779 = vld [vmem:[%s4 + $0xb0] sm:$0xff]
      %v780 = vld [vmem:[%s4 + $0xb8] sm:$0xff]
      %v781 = vld [vmem:[%s4 + $0xc0] sm:$0xff]
      %v782 = vld [vmem:[%s4 + $0xc8] sm:$0xff]
      %v783 = vld [vmem:[%s4 + $0xd0] sm:$0xff]
      %v784 = vld [vmem:[%s4 + $0xd8] sm:$0xff]
      %v785 = vld [vmem:[%s4 + $0xe0] sm:$0xff]
      %v786 = vld [vmem:[%s4 + $0xe8] sm:$0xff]
      %v787 = vld [vmem:[%s4 + $0xf0] sm:$0xff]
      %v788 = vld [vmem:[%s4 + $0xf8] sm:$0xff]
      %v789 = vld [vmem:[%s4 + $0x100] sm:$0xff]
      %v790 = vld [vmem:[%s4 + $0x108] sm:$0xff]
      %v791 = vld [vmem:[%s4 + $0x110] sm:$0xff]
      %v792 = vld [vmem:[%s4 + $0x118] sm:$0xff]
      %v793 = vld [vmem:[%s4 + $0x120] sm:$0xff]
      %v794 = vld [vmem:[%s4 + $0x128] sm:$0xff]
      %v795 = vld [vmem:[%s4 + $0x130] sm:$0xff]
      %v796 = vld [vmem:[%s4 + $0x138] sm:$0xff]
      %v797 = vld [vmem:[%s4 + $0x140] sm:$0xff]
      %v798 = vld [vmem:[%s4 + $0x148] sm:$0xff]
      %v799 = vld [vmem:[%s4 + $0x150] sm:$0xff]
      %v800 = vld [vmem:[%s4 + $0x158] sm:$0xff]
      %v801 = vld [vmem:[%s4 + $0x160] sm:$0xff]
      %v802 = vld [vmem:[%s4 + $0x168] sm:$0xff]
      %v803 = vld [vmem:[%s4 + $0x170] sm:$0xff]
      %v804 = vld [vmem:[%s4 + $0x178] sm:$0xff]
      %v805 = vld [vmem:[%s4 + $0x180] sm:$0xff]
      %v806 = vld [vmem:[%s4 + $0x188] sm:$0xff]
      %v807 = vld [vmem:[%s4 + $0x190] sm:$0xff]
      %v808 = vld [vmem:[%s4 + $0x198] sm:$0xff]
      %v809 = vld [vmem:[%s4 + $0x1a0] sm:$0xff]
      %v810 = vld [vmem:[%s4 + $0x1a8] sm:$0xff]
      %v811 = vld [vmem:[%s4 + $0x1b0] sm:$0xff]
      %v812 = vld [vmem:[%s4 + $0x1b8] sm:$0xff]
      %v813 = vld [vmem:[%s4 + $0x1c0] sm:$0xff]
      %v814 = vld [vmem:[%s4 + $0x1c8] sm:$0xff]
      %v815 = vld [vmem:[%s4 + $0x1d0] sm:$0xff]
      %v816 = vld [vmem:[%s4 + $0x1d8] sm:$0xff]
      %v817 = vld [vmem:[%s4 + $0x1e0] sm:$0xff]
      %v818 = vld [vmem:[%s4 + $0x1e8] sm:$0xff]
      %v819 = vld [vmem:[%s4 + $0x1f0] sm:$0xff]
      %v820 = vld [vmem:[%s4 + $0x1f8] sm:$0xff]
      %v821 = vld [vmem:[%s4 + $0x200] sm:$0xff]
      %v822 = vld [vmem:[%s4 + $0x208] sm:$0xff]
      %v823 = vld [vmem:[%s4 + $0x210] sm:$0xff]
      %v824 = vld [vmem:[%s4 + $0x218] sm:$0xff]
      %v825 = vld [vmem:[%s4 + $0x220] sm:$0xff]
      %v826 = vld [vmem:[%s4 + $0x228] sm:$0xff]
      %v827 = vld [vmem:[%s4 + $0x230] sm:$0xff]
      %v828 = vld [vmem:[%s4 + $0x238] sm:$0xff]
      %v829 = vld [vmem:[%s4 + $0x240] sm:$0xff]
      %v830 = vld [vmem:[%s4 + $0x248] sm:$0xff]
      %v831 = vld [vmem:[%s4 + $0x250] sm:$0xff]
      %v832 = vld [vmem:[%s4 + $0x258] sm:$0xff]
      %v833 = vld [vmem:[%s4 + $0x260] sm:$0xff]
      %v834 = vld [vmem:[%s4 + $0x268] sm:$0xff]
      %v835 = vld [vmem:[%s4 + $0x270] sm:$0xff]
      %v836 = vld [vmem:[%s4 + $0x278] sm:$0xff]
      %v837 = vld [vmem:[%s4 + $0x280] sm:$0xff]
      %v838 = vld [vmem:[%s4 + $0x288] sm:$0xff]
      %v839 = vld [vmem:[%s4 + $0x290] sm:$0xff]
      %v840 = vld [vmem:[%s4 + $0x298] sm:$0xff]
      %v841 = vld [vmem:[%s4 + $0x2a0] sm:$0xff]
      %v842 = vld [vmem:[%s4 + $0x2a8] sm:$0xff]
      %v843 = vld [vmem:[%s4 + $0x2b0] sm:$0xff]
      %v844 = vld [vmem:[%s4 + $0x2b8] sm:$0xff]
      %v845 = vld [vmem:[%s4 + $0x2c0] sm:$0xff]
      %v846 = vld [vmem:[%s4 + $0x2c8] sm:$0xff]
      %v847 = vld [vmem:[%s4 + $0x2d0] sm:$0xff]
      %v848 = vld [vmem:[%s4 + $0x2d8] sm:$0xff]
      %v849 = vld [vmem:[%s4 + $0x2e0] sm:$0xff]
      %v850 = vld [vmem:[%s4 + $0x2e8] sm:$0xff]
      %v851 = vld [vmem:[%s4 + $0x2f0] sm:$0xff]
      %v852 = vld [vmem:[%s4 + $0x2f8] sm:$0xff]
      %v853 = vld [vmem:[%s4 + $0x300] sm:$0xff]
      %v854 = vld [vmem:[%s4 + $0x308] sm:$0xff]
      %v855 = vld [vmem:[%s4 + $0x310] sm:$0xff]
      %v856 = vld [vmem:[%s4 + $0x318] sm:$0xff]
      %v857 = vld [vmem:[%s4 + $0x320] sm:$0xff]
      %v858 = vld [vmem:[%s4 + $0x328] sm:$0xff]
      %v859 = vld [vmem:[%s4 + $0x330] sm:$0xff]
      %v860 = vld [vmem:[%s4 + $0x338] sm:$0xff]
      %v861 = vld [vmem:[%s4 + $0x340] sm:$0xff]
      %v862 = vld [vmem:[%s4 + $0x348] sm:$0xff]
      %v863 = vld [vmem:[%s4 + $0x350] sm:$0xff]
      %v864 = vld [vmem:[%s4 + $0x358] sm:$0xff]
      %v865 = vld [vmem:[%s4 + $0x360] sm:$0xff]
      %v866 = vld [vmem:[%s4 + $0x368] sm:$0xff]
      %v867 = vld [vmem:[%s4 + $0x370] sm:$0xff]
      %v868 = vld [vmem:[%s4 + $0x378] sm:$0xff]
      %v869 = vld [vmem:[%s4 + $0x380] sm:$0xff]
      %v870 = vld [vmem:[%s4 + $0x388] sm:$0xff]
      %v871 = vld [vmem:[%s4 + $0x390] sm:$0xff]
      %v872 = vld [vmem:[%s4 + $0x398] sm:$0xff]
      %v873 = vld [vmem:[%s4 + $0x3a0] sm:$0xff]
      %v874 = vld [vmem:[%s4 + $0x3a8] sm:$0xff]
      %v875 = vld [vmem:[%s4 + $0x3b0] sm:$0xff]
      %v876 = vld [vmem:[%s4 + $0x3b8] sm:$0xff]
      %v877 = vld [vmem:[%s4 + $0x3c0] sm:$0xff]
      %v878 = vld [vmem:[%s4 + $0x3c8] sm:$0xff]
      %v879 = vld [vmem:[%s4 + $0x3d0] sm:$0xff]
      %v880 = vld [vmem:[%s4 + $0x3d8] sm:$0xff]
      %v881 = vld [vmem:[%s4 + $0x3e0] sm:$0xff]
      %v882 = vld [vmem:[%s4 + $0x3e8] sm:$0xff]
      %v883 = vld [vmem:[%s4 + $0x3f0] sm:$0xff]
      %v884 = vld [vmem:[%s4 + $0x3f8] sm:$0xff]
      %v885 = vld [vmem:[%s4 + $0x400] sm:$0xff]
      %v886 = vld [vmem:[%s4 + $0x408] sm:$0xff]
      %v887 = vld [vmem:[%s4 + $0x410] sm:$0xff]
      %v888 = vld [vmem:[%s4 + $0x418] sm:$0xff]
      %v889 = vld [vmem:[%s4 + $0x420] sm:$0xff]
      %v890 = vld [vmem:[%s4 + $0x428] sm:$0xff]
      %v891 = vld [vmem:[%s4 + $0x430] sm:$0xff]
      %v892 = vld [vmem:[%s4 + $0x438] sm:$0xff]
      %v893 = vld [vmem:[%s4 + $0x440] sm:$0xff]
      %v894 = vld [vmem:[%s4 + $0x448] sm:$0xff]
      %v895 = vld [vmem:[%s4 + $0x450] sm:$0xff]
      %v896 = vld [vmem:[%s4 + $0x458] sm:$0xff]
      %v897 = vld [vmem:[%s4 + $0x460] sm:$0xff]
      %v898 = vld [vmem:[%s4 + $0x468] sm:$0xff]
      %v899 = vld [vmem:[%s4 + $0x470] sm:$0xff]
      %v900 = vld [vmem:[%s4 + $0x478] sm:$0xff]
      %901 = vmatpush.msra.mxu0 %v772
      %902 = vmatpush.msra.mxu0 %v771
      %903 = vmatpush.msra.mxu0 %v770
      %904 = vmatpush.msra.mxu0 %v769
      %905 = vmatpush.msra.mxu0 %v768
      %906 = vmatpush.msra.mxu0 %v767
      %907 = vmatpush.msra.mxu0 %v766
      %908 = vmatpush.msra.mxu0 %v765
      %909 = vmatpush.msra.mxu0 %v764
      %910 = vmatpush.msra.mxu0 %v763
      %911 = vmatpush.msra.mxu0 %v762
      %912 = vmatpush.msra.mxu0 %v761
      %913 = vmatpush.msra.mxu0 %v760
      %914 = vmatpush.msra.mxu0 %v759
      %915 = vmatpush.msra.mxu0 %v758
      %916 = vmatpush.msra.mxu0 %v757
      %917 = vmatmul.f32.gmra.mxu0 %v468
      %v918 = vpop.f32.mrf.mxu0
      %v919 = vadd.f32 0.0, %v918
      %920 = vmatmul.f32.gmra.mxu0 %v469
      %v921 = vpop.f32.mrf.mxu0
      %v922 = vadd.f32 0.0, %v921
      %923 = vmatmul.f32.gmra.mxu0 %v470
      %v924 = vpop.f32.mrf.mxu0
      %v925 = vadd.f32 0.0, %v924
      %926 = vmatmul.f32.gmra.mxu0 %v471
      %v927 = vpop.f32.mrf.mxu0
      %v928 = vadd.f32 0.0, %v927
      %929 = vmatmul.f32.gmra.mxu0 %v472
      %v930 = vpop.f32.mrf.mxu0
      %v931 = vadd.f32 0.0, %v930
      %932 = vmatmul.f32.gmra.mxu0 %v473
      %v933 = vpop.f32.mrf.mxu0
      %v934 = vadd.f32 0.0, %v933
      %935 = vmatmul.f32.gmra.mxu0 %v474
      %v936 = vpop.f32.mrf.mxu0
      %v937 = vadd.f32 0.0, %v936
      %938 = vmatmul.f32.gmra.mxu0 %v475
      %v939 = vpop.f32.mrf.mxu0
      %v940 = vadd.f32 0.0, %v939
      %941 = vmatmul.f32.gmra.mxu0 %v476
      %v942 = vpop.f32.mrf.mxu0
      %v943 = vadd.f32 0.0, %v942
      %944 = vmatmul.f32.gmra.mxu0 %v477
      %v945 = vpop.f32.mrf.mxu0
      %v946 = vadd.f32 0.0, %v945
      %947 = vmatmul.f32.gmra.mxu0 %v478
      %v948 = vpop.f32.mrf.mxu0
      %v949 = vadd.f32 0.0, %v948
      %950 = vmatmul.f32.gmra.mxu0 %v479
      %v951 = vpop.f32.mrf.mxu0
      %v952 = vadd.f32 0.0, %v951
      %953 = vmatmul.f32.gmra.mxu0 %v480
      %v954 = vpop.f32.mrf.mxu0
      %v955 = vadd.f32 0.0, %v954
      %956 = vmatmul.f32.gmra.mxu0 %v481
      %v957 = vpop.f32.mrf.mxu0
      %v958 = vadd.f32 0.0, %v957
      %959 = vmatmul.f32.gmra.mxu0 %v482
      %v960 = vpop.f32.mrf.mxu0
      %v961 = vadd.f32 0.0, %v960
      %962 = vmatmul.f32.gmra.mxu0 %v483
      %v963 = vpop.f32.mrf.mxu0
      %v964 = vadd.f32 0.0, %v963
      %965 = vmatmul.f32.gmra.mxu0 %v484
      %v966 = vpop.f32.mrf.mxu0
      %v967 = vadd.f32 0.0, %v966
      %968 = vmatmul.f32.gmra.mxu0 %v485
      %v969 = vpop.f32.mrf.mxu0
      %v970 = vadd.f32 0.0, %v969
      %971 = vmatmul.f32.gmra.mxu0 %v486
      %v972 = vpop.f32.mrf.mxu0
      %v973 = vadd.f32 0.0, %v972
      %974 = vmatmul.f32.gmra.mxu0 %v487
      %v975 = vpop.f32.mrf.mxu0
      %v976 = vadd.f32 0.0, %v975
      %977 = vmatmul.f32.gmra.mxu0 %v488
      %v978 = vpop.f32.mrf.mxu0
      %v979 = vadd.f32 0.0, %v978
      %980 = vmatmul.f32.gmra.mxu0 %v489
      %v981 = vpop.f32.mrf.mxu0
      %v982 = vadd.f32 0.0, %v981
      %983 = vmatmul.f32.gmra.mxu0 %v490
      %v984 = vpop.f32.mrf.mxu0
      %v985 = vadd.f32 0.0, %v984
      %986 = vmatmul.f32.gmra.mxu0 %v491
      %v987 = vpop.f32.mrf.mxu0
      %v988 = vadd.f32 0.0, %v987
      %989 = vmatmul.f32.gmra.mxu0 %v492
      %v990 = vpop.f32.mrf.mxu0
      %v991 = vadd.f32 0.0, %v990
      %992 = vmatmul.f32.gmra.mxu0 %v493
      %v993 = vpop.f32.mrf.mxu0
      %v994 = vadd.f32 0.0, %v993
      %995 = vmatmul.f32.gmra.mxu0 %v494
      %v996 = vpop.f32.mrf.mxu0
      %v997 = vadd.f32 0.0, %v996
      %998 = vmatmul.f32.gmra.mxu0 %v495
      %v999 = vpop.f32.mrf.mxu0
      %v1000 = vadd.f32 0.0, %v999
      %1001 = vmatmul.f32.gmra.mxu0 %v496
      %v1002 = vpop.f32.mrf.mxu0
      %v1003 = vadd.f32 0.0, %v1002
      %1004 = vmatmul.f32.gmra.mxu0 %v497
      %v1005 = vpop.f32.mrf.mxu0
      %v1006 = vadd.f32 0.0, %v1005
      %1007 = vmatmul.f32.gmra.mxu0 %v498
      %v1008 = vpop.f32.mrf.mxu0
      %v1009 = vadd.f32 0.0, %v1008
      %1010 = vmatmul.f32.gmra.mxu0 %v499
      %v1011 = vpop.f32.mrf.mxu0
      %v1012 = vadd.f32 0.0, %v1011
      %1013 = vdwg.mxu0
      %1014 = vmatpush.msra.mxu0 %v788
      %1015 = vmatpush.msra.mxu0 %v787
      %1016 = vmatpush.msra.mxu0 %v786
      %1017 = vmatpush.msra.mxu0 %v785
      %1018 = vmatpush.msra.mxu0 %v784
      %1019 = vmatpush.msra.mxu0 %v783
      %1020 = vmatpush.msra.mxu0 %v782
      %1021 = vmatpush.msra.mxu0 %v781
      %1022 = vmatpush.msra.mxu0 %v780
      %1023 = vmatpush.msra.mxu0 %v779
      %1024 = vmatpush.msra.mxu0 %v778
      %1025 = vmatpush.msra.mxu0 %v777
      %1026 = vmatpush.msra.mxu0 %v776
      %1027 = vmatpush.msra.mxu0 %v775
      %1028 = vmatpush.msra.mxu0 %v774
      %1029 = vmatpush.msra.mxu0 %v773
      %1030 = vmatmul.f32.gmra.mxu0 %v500
      %v1031 = vpop.f32.mrf.mxu0
      %v1032 = vadd.f32 %v919, %v1031
      %1033 = vmatmul.f32.gmra.mxu0 %v501
      %v1034 = vpop.f32.mrf.mxu0
      %v1035 = vadd.f32 %v922, %v1034
      %1036 = vmatmul.f32.gmra.mxu0 %v502
      %v1037 = vpop.f32.mrf.mxu0
      %v1038 = vadd.f32 %v925, %v1037
      %1039 = vmatmul.f32.gmra.mxu0 %v503
      %v1040 = vpop.f32.mrf.mxu0
      %v1041 = vadd.f32 %v928, %v1040
      %1042 = vmatmul.f32.gmra.mxu0 %v504
      %v1043 = vpop.f32.mrf.mxu0
      %v1044 = vadd.f32 %v931, %v1043
      %1045 = vmatmul.f32.gmra.mxu0 %v505
      %v1046 = vpop.f32.mrf.mxu0
      %v1047 = vadd.f32 %v934, %v1046
      %1048 = vmatmul.f32.gmra.mxu0 %v506
      %v1049 = vpop.f32.mrf.mxu0
      %v1050 = vadd.f32 %v937, %v1049
      %1051 = vmatmul.f32.gmra.mxu0 %v507
      %v1052 = vpop.f32.mrf.mxu0
      %v1053 = vadd.f32 %v940, %v1052
      %1054 = vmatmul.f32.gmra.mxu0 %v508
      %v1055 = vpop.f32.mrf.mxu0
      %v1056 = vadd.f32 %v943, %v1055
      %1057 = vmatmul.f32.gmra.mxu0 %v509
      %v1058 = vpop.f32.mrf.mxu0
      %v1059 = vadd.f32 %v946, %v1058
      %1060 = vmatmul.f32.gmra.mxu0 %v510
      %v1061 = vpop.f32.mrf.mxu0
      %v1062 = vadd.f32 %v949, %v1061
      %1063 = vmatmul.f32.gmra.mxu0 %v511
      %v1064 = vpop.f32.mrf.mxu0
      %v1065 = vadd.f32 %v952, %v1064
      %1066 = vmatmul.f32.gmra.mxu0 %v512
      %v1067 = vpop.f32.mrf.mxu0
      %v1068 = vadd.f32 %v955, %v1067
      %1069 = vmatmul.f32.gmra.mxu0 %v513
      %v1070 = vpop.f32.mrf.mxu0
      %v1071 = vadd.f32 %v958, %v1070
      %1072 = vmatmul.f32.gmra.mxu0 %v514
      %v1073 = vpop.f32.mrf.mxu0
      %v1074 = vadd.f32 %v961, %v1073
      %1075 = vmatmul.f32.gmra.mxu0 %v515
      %v1076 = vpop.f32.mrf.mxu0
      %v1077 = vadd.f32 %v964, %v1076
      %1078 = vmatmul.f32.gmra.mxu0 %v516
      %v1079 = vpop.f32.mrf.mxu0
      %v1080 = vadd.f32 %v967, %v1079
      %1081 = vmatmul.f32.gmra.mxu0 %v517
      %v1082 = vpop.f32.mrf.mxu0
      %v1083 = vadd.f32 %v970, %v1082
      %1084 = vmatmul.f32.gmra.mxu0 %v518
      %v1085 = vpop.f32.mrf.mxu0
      %v1086 = vadd.f32 %v973, %v1085
      %1087 = vmatmul.f32.gmra.mxu0 %v519
      %v1088 = vpop.f32.mrf.mxu0
      %v1089 = vadd.f32 %v976, %v1088
      %1090 = vmatmul.f32.gmra.mxu0 %v520
      %v1091 = vpop.f32.mrf.mxu0
      %v1092 = vadd.f32 %v979, %v1091
      %1093 = vmatmul.f32.gmra.mxu0 %v521
      %v1094 = vpop.f32.mrf.mxu0
      %v1095 = vadd.f32 %v982, %v1094
      %1096 = vmatmul.f32.gmra.mxu0 %v522
      %v1097 = vpop.f32.mrf.mxu0
      %v1098 = vadd.f32 %v985, %v1097
      %1099 = vmatmul.f32.gmra.mxu0 %v523
      %v1100 = vpop.f32.mrf.mxu0
      %v1101 = vadd.f32 %v988, %v1100
      %1102 = vmatmul.f32.gmra.mxu0 %v524
      %v1103 = vpop.f32.mrf.mxu0
      %v1104 = vadd.f32 %v991, %v1103
      %1105 = vmatmul.f32.gmra.mxu0 %v525
      %v1106 = vpop.f32.mrf.mxu0
      %v1107 = vadd.f32 %v994, %v1106
      %1108 = vmatmul.f32.gmra.mxu0 %v526
      %v1109 = vpop.f32.mrf.mxu0
      %v1110 = vadd.f32 %v997, %v1109
      %1111 = vmatmul.f32.gmra.mxu0 %v527
      %v1112 = vpop.f32.mrf.mxu0
      %v1113 = vadd.f32 %v1000, %v1112
      %1114 = vmatmul.f32.gmra.mxu0 %v528
      %v1115 = vpop.f32.mrf.mxu0
      %v1116 = vadd.f32 %v1003, %v1115
      %1117 = vmatmul.f32.gmra.mxu0 %v529
      %v1118 = vpop.f32.mrf.mxu0
      %v1119 = vadd.f32 %v1006, %v1118
      %1120 = vmatmul.f32.gmra.mxu0 %v530
      %v1121 = vpop.f32.mrf.mxu0
      %v1122 = vadd.f32 %v1009, %v1121
      %1123 = vmatmul.f32.gmra.mxu0 %v531
      %v1124 = vpop.f32.mrf.mxu0
      %v1125 = vadd.f32 %v1012, %v1124
      %1126 = vdwg.mxu0
      %1127 = vmatpush.msra.mxu0 %v804
      %1128 = vmatpush.msra.mxu0 %v803
      %1129 = vmatpush.msra.mxu0 %v802
      %1130 = vmatpush.msra.mxu0 %v801
      %1131 = vmatpush.msra.mxu0 %v800
      %1132 = vmatpush.msra.mxu0 %v799
      %1133 = vmatpush.msra.mxu0 %v798
      %1134 = vmatpush.msra.mxu0 %v797
      %1135 = vmatpush.msra.mxu0 %v796
      %1136 = vmatpush.msra.mxu0 %v795
      %1137 = vmatpush.msra.mxu0 %v794
      %1138 = vmatpush.msra.mxu0 %v793
      %1139 = vmatpush.msra.mxu0 %v792
      %1140 = vmatpush.msra.mxu0 %v791
      %1141 = vmatpush.msra.mxu0 %v790
      %1142 = vmatpush.msra.mxu0 %v789
      %1143 = vmatmul.f32.gmra.mxu0 %v532
      %v1144 = vpop.f32.mrf.mxu0
      %v1145 = vadd.f32 %v1032, %v1144
      %1146 = vmatmul.f32.gmra.mxu0 %v533
      %v1147 = vpop.f32.mrf.mxu0
      %v1148 = vadd.f32 %v1035, %v1147
      %1149 = vmatmul.f32.gmra.mxu0 %v534
      %v1150 = vpop.f32.mrf.mxu0
      %v1151 = vadd.f32 %v1038, %v1150
      %1152 = vmatmul.f32.gmra.mxu0 %v535
      %v1153 = vpop.f32.mrf.mxu0
      %v1154 = vadd.f32 %v1041, %v1153
      %1155 = vmatmul.f32.gmra.mxu0 %v536
      %v1156 = vpop.f32.mrf.mxu0
      %v1157 = vadd.f32 %v1044, %v1156
      %1158 = vmatmul.f32.gmra.mxu0 %v537
      %v1159 = vpop.f32.mrf.mxu0
      %v1160 = vadd.f32 %v1047, %v1159
      %1161 = vmatmul.f32.gmra.mxu0 %v538
      %v1162 = vpop.f32.mrf.mxu0
      %v1163 = vadd.f32 %v1050, %v1162
      %1164 = vmatmul.f32.gmra.mxu0 %v539
      %v1165 = vpop.f32.mrf.mxu0
      %v1166 = vadd.f32 %v1053, %v1165
      %1167 = vmatmul.f32.gmra.mxu0 %v540
      %v1168 = vpop.f32.mrf.mxu0
      %v1169 = vadd.f32 %v1056, %v1168
      %1170 = vmatmul.f32.gmra.mxu0 %v541
      %v1171 = vpop.f32.mrf.mxu0
      %v1172 = vadd.f32 %v1059, %v1171
      %1173 = vmatmul.f32.gmra.mxu0 %v542
      %v1174 = vpop.f32.mrf.mxu0
      %v1175 = vadd.f32 %v1062, %v1174
      %1176 = vmatmul.f32.gmra.mxu0 %v543
      %v1177 = vpop.f32.mrf.mxu0
      %v1178 = vadd.f32 %v1065, %v1177
      %1179 = vmatmul.f32.gmra.mxu0 %v544
      %v1180 = vpop.f32.mrf.mxu0
      %v1181 = vadd.f32 %v1068, %v1180
      %1182 = vmatmul.f32.gmra.mxu0 %v545
      %v1183 = vpop.f32.mrf.mxu0
      %v1184 = vadd.f32 %v1071, %v1183
      %1185 = vmatmul.f32.gmra.mxu0 %v546
      %v1186 = vpop.f32.mrf.mxu0
      %v1187 = vadd.f32 %v1074, %v1186
      %1188 = vmatmul.f32.gmra.mxu0 %v547
      %v1189 = vpop.f32.mrf.mxu0
      %v1190 = vadd.f32 %v1077, %v1189
      %1191 = vmatmul.f32.gmra.mxu0 %v548
      %v1192 = vpop.f32.mrf.mxu0
      %v1193 = vadd.f32 %v1080, %v1192
      %1194 = vmatmul.f32.gmra.mxu0 %v549
      %v1195 = vpop.f32.mrf.mxu0
      %v1196 = vadd.f32 %v1083, %v1195
      %1197 = vmatmul.f32.gmra.mxu0 %v550
      %v1198 = vpop.f32.mrf.mxu0
      %v1199 = vadd.f32 %v1086, %v1198
      %1200 = vmatmul.f32.gmra.mxu0 %v551
      %v1201 = vpop.f32.mrf.mxu0
      %v1202 = vadd.f32 %v1089, %v1201
      %1203 = vmatmul.f32.gmra.mxu0 %v552
      %v1204 = vpop.f32.mrf.mxu0
      %v1205 = vadd.f32 %v1092, %v1204
      %1206 = vmatmul.f32.gmra.mxu0 %v553
      %v1207 = vpop.f32.mrf.mxu0
      %v1208 = vadd.f32 %v1095, %v1207
      %1209 = vmatmul.f32.gmra.mxu0 %v554
      %v1210 = vpop.f32.mrf.mxu0
      %v1211 = vadd.f32 %v1098, %v1210
      %1212 = vmatmul.f32.gmra.mxu0 %v555
      %v1213 = vpop.f32.mrf.mxu0
      %v1214 = vadd.f32 %v1101, %v1213
      %1215 = vmatmul.f32.gmra.mxu0 %v556
      %v1216 = vpop.f32.mrf.mxu0
      %v1217 = vadd.f32 %v1104, %v1216
      %1218 = vmatmul.f32.gmra.mxu0 %v557
      %v1219 = vpop.f32.mrf.mxu0
      %v1220 = vadd.f32 %v1107, %v1219
      %1221 = vmatmul.f32.gmra.mxu0 %v558
      %v1222 = vpop.f32.mrf.mxu0
      %v1223 = vadd.f32 %v1110, %v1222
      %1224 = vmatmul.f32.gmra.mxu0 %v559
      %v1225 = vpop.f32.mrf.mxu0
      %v1226 = vadd.f32 %v1113, %v1225
      %1227 = vmatmul.f32.gmra.mxu0 %v560
      %v1228 = vpop.f32.mrf.mxu0
      %v1229 = vadd.f32 %v1116, %v1228
      %1230 = vmatmul.f32.gmra.mxu0 %v561
      %v1231 = vpop.f32.mrf.mxu0
      %v1232 = vadd.f32 %v1119, %v1231
      %1233 = vmatmul.f32.gmra.mxu0 %v562
      %v1234 = vpop.f32.mrf.mxu0
      %v1235 = vadd.f32 %v1122, %v1234
      %1236 = vmatmul.f32.gmra.mxu0 %v563
      %v1237 = vpop.f32.mrf.mxu0
      %v1238 = vadd.f32 %v1125, %v1237
      %1239 = vdwg.mxu0
      %1240 = vmatpush.msra.mxu0 %v820
      %1241 = vmatpush.msra.mxu0 %v819
      %1242 = vmatpush.msra.mxu0 %v818
      %1243 = vmatpush.msra.mxu0 %v817
      %1244 = vmatpush.msra.mxu0 %v816
      %1245 = vmatpush.msra.mxu0 %v815
      %1246 = vmatpush.msra.mxu0 %v814
      %1247 = vmatpush.msra.mxu0 %v813
      %1248 = vmatpush.msra.mxu0 %v812
      %1249 = vmatpush.msra.mxu0 %v811
      %1250 = vmatpush.msra.mxu0 %v810
      %1251 = vmatpush.msra.mxu0 %v809
      %1252 = vmatpush.msra.mxu0 %v808
      %1253 = vmatpush.msra.mxu0 %v807
      %1254 = vmatpush.msra.mxu0 %v806
      %1255 = vmatpush.msra.mxu0 %v805
      %1256 = vmatmul.f32.gmra.mxu0 %v564
      %v1257 = vpop.f32.mrf.mxu0
      %v1258 = vadd.f32 %v1145, %v1257
      %1259 = vmatmul.f32.gmra.mxu0 %v565
      %v1260 = vpop.f32.mrf.mxu0
      %v1261 = vadd.f32 %v1148, %v1260
      %1262 = vmatmul.f32.gmra.mxu0 %v566
      %v1263 = vpop.f32.mrf.mxu0
      %v1264 = vadd.f32 %v1151, %v1263
      %1265 = vmatmul.f32.gmra.mxu0 %v567
      %v1266 = vpop.f32.mrf.mxu0
      %v1267 = vadd.f32 %v1154, %v1266
      %1268 = vmatmul.f32.gmra.mxu0 %v568
      %v1269 = vpop.f32.mrf.mxu0
      %v1270 = vadd.f32 %v1157, %v1269
      %1271 = vmatmul.f32.gmra.mxu0 %v569
      %v1272 = vpop.f32.mrf.mxu0
      %v1273 = vadd.f32 %v1160, %v1272
      %1274 = vmatmul.f32.gmra.mxu0 %v570
      %v1275 = vpop.f32.mrf.mxu0
      %v1276 = vadd.f32 %v1163, %v1275
      %1277 = vmatmul.f32.gmra.mxu0 %v571
      %v1278 = vpop.f32.mrf.mxu0
      %v1279 = vadd.f32 %v1166, %v1278
      %1280 = vmatmul.f32.gmra.mxu0 %v572
      %v1281 = vpop.f32.mrf.mxu0
      %v1282 = vadd.f32 %v1169, %v1281
      %1283 = vmatmul.f32.gmra.mxu0 %v573
      %v1284 = vpop.f32.mrf.mxu0
      %v1285 = vadd.f32 %v1172, %v1284
      %1286 = vmatmul.f32.gmra.mxu0 %v574
      %v1287 = vpop.f32.mrf.mxu0
      %v1288 = vadd.f32 %v1175, %v1287
      %1289 = vmatmul.f32.gmra.mxu0 %v575
      %v1290 = vpop.f32.mrf.mxu0
      %v1291 = vadd.f32 %v1178, %v1290
      %1292 = vmatmul.f32.gmra.mxu0 %v576
      %v1293 = vpop.f32.mrf.mxu0
      %v1294 = vadd.f32 %v1181, %v1293
      %1295 = vmatmul.f32.gmra.mxu0 %v577
      %v1296 = vpop.f32.mrf.mxu0
      %v1297 = vadd.f32 %v1184, %v1296
      %1298 = vmatmul.f32.gmra.mxu0 %v578
      %v1299 = vpop.f32.mrf.mxu0
      %v1300 = vadd.f32 %v1187, %v1299
      %1301 = vmatmul.f32.gmra.mxu0 %v579
      %v1302 = vpop.f32.mrf.mxu0
      %v1303 = vadd.f32 %v1190, %v1302
      %1304 = vmatmul.f32.gmra.mxu0 %v580
      %v1305 = vpop.f32.mrf.mxu0
      %v1306 = vadd.f32 %v1193, %v1305
      %1307 = vmatmul.f32.gmra.mxu0 %v581
      %v1308 = vpop.f32.mrf.mxu0
      %v1309 = vadd.f32 %v1196, %v1308
      %1310 = vmatmul.f32.gmra.mxu0 %v582
      %v1311 = vpop.f32.mrf.mxu0
      %v1312 = vadd.f32 %v1199, %v1311
      %1313 = vmatmul.f32.gmra.mxu0 %v583
      %v1314 = vpop.f32.mrf.mxu0
      %v1315 = vadd.f32 %v1202, %v1314
      %1316 = vmatmul.f32.gmra.mxu0 %v584
      %v1317 = vpop.f32.mrf.mxu0
      %v1318 = vadd.f32 %v1205, %v1317
      %1319 = vmatmul.f32.gmra.mxu0 %v585
      %v1320 = vpop.f32.mrf.mxu0
      %v1321 = vadd.f32 %v1208, %v1320
      %1322 = vmatmul.f32.gmra.mxu0 %v586
      %v1323 = vpop.f32.mrf.mxu0
      %v1324 = vadd.f32 %v1211, %v1323
      %1325 = vmatmul.f32.gmra.mxu0 %v587
      %v1326 = vpop.f32.mrf.mxu0
      %v1327 = vadd.f32 %v1214, %v1326
      %1328 = vmatmul.f32.gmra.mxu0 %v588
      %v1329 = vpop.f32.mrf.mxu0
      %v1330 = vadd.f32 %v1217, %v1329
      %1331 = vmatmul.f32.gmra.mxu0 %v589
      %v1332 = vpop.f32.mrf.mxu0
      %v1333 = vadd.f32 %v1220, %v1332
      %1334 = vmatmul.f32.gmra.mxu0 %v590
      %v1335 = vpop.f32.mrf.mxu0
      %v1336 = vadd.f32 %v1223, %v1335
      %1337 = vmatmul.f32.gmra.mxu0 %v591
      %v1338 = vpop.f32.mrf.mxu0
      %v1339 = vadd.f32 %v1226, %v1338
      %1340 = vmatmul.f32.gmra.mxu0 %v592
      %v1341 = vpop.f32.mrf.mxu0
      %v1342 = vadd.f32 %v1229, %v1341
      %1343 = vmatmul.f32.gmra.mxu0 %v593
      %v1344 = vpop.f32.mrf.mxu0
      %v1345 = vadd.f32 %v1232, %v1344
      %1346 = vmatmul.f32.gmra.mxu0 %v594
      %v1347 = vpop.f32.mrf.mxu0
      %v1348 = vadd.f32 %v1235, %v1347
      %1349 = vmatmul.f32.gmra.mxu0 %v595
      %v1350 = vpop.f32.mrf.mxu0
      %v1351 = vadd.f32 %v1238, %v1350
      %1352 = vdwg.mxu0
      %1353 = vmatpush.msra.mxu0 %v836
      %1354 = vmatpush.msra.mxu0 %v835
      %1355 = vmatpush.msra.mxu0 %v834
      %1356 = vmatpush.msra.mxu0 %v833
      %1357 = vmatpush.msra.mxu0 %v832
      %1358 = vmatpush.msra.mxu0 %v831
      %1359 = vmatpush.msra.mxu0 %v830
      %1360 = vmatpush.msra.mxu0 %v829
      %1361 = vmatpush.msra.mxu0 %v828
      %1362 = vmatpush.msra.mxu0 %v827
      %1363 = vmatpush.msra.mxu0 %v826
      %1364 = vmatpush.msra.mxu0 %v825
      %1365 = vmatpush.msra.mxu0 %v824
      %1366 = vmatpush.msra.mxu0 %v823
      %1367 = vmatpush.msra.mxu0 %v822
      %1368 = vmatpush.msra.mxu0 %v821
      %1369 = vmatmul.f32.gmra.mxu0 %v596
      %v1370 = vpop.f32.mrf.mxu0
      %v1371 = vadd.f32 %v1258, %v1370
      %1372 = vmatmul.f32.gmra.mxu0 %v597
      %v1373 = vpop.f32.mrf.mxu0
      %v1374 = vadd.f32 %v1261, %v1373
      %1375 = vmatmul.f32.gmra.mxu0 %v598
      %v1376 = vpop.f32.mrf.mxu0
      %v1377 = vadd.f32 %v1264, %v1376
      %1378 = vmatmul.f32.gmra.mxu0 %v599
      %v1379 = vpop.f32.mrf.mxu0
      %v1380 = vadd.f32 %v1267, %v1379
      %1381 = vmatmul.f32.gmra.mxu0 %v600
      %v1382 = vpop.f32.mrf.mxu0
      %v1383 = vadd.f32 %v1270, %v1382
      %1384 = vmatmul.f32.gmra.mxu0 %v601
      %v1385 = vpop.f32.mrf.mxu0
      %v1386 = vadd.f32 %v1273, %v1385
      %1387 = vmatmul.f32.gmra.mxu0 %v602
      %v1388 = vpop.f32.mrf.mxu0
      %v1389 = vadd.f32 %v1276, %v1388
      %1390 = vmatmul.f32.gmra.mxu0 %v603
      %v1391 = vpop.f32.mrf.mxu0
      %v1392 = vadd.f32 %v1279, %v1391
      %1393 = vmatmul.f32.gmra.mxu0 %v604
      %v1394 = vpop.f32.mrf.mxu0
      %v1395 = vadd.f32 %v1282, %v1394
      %1396 = vmatmul.f32.gmra.mxu0 %v605
      %v1397 = vpop.f32.mrf.mxu0
      %v1398 = vadd.f32 %v1285, %v1397
      %1399 = vmatmul.f32.gmra.mxu0 %v606
      %v1400 = vpop.f32.mrf.mxu0
      %v1401 = vadd.f32 %v1288, %v1400
      %1402 = vmatmul.f32.gmra.mxu0 %v607
      %v1403 = vpop.f32.mrf.mxu0
      %v1404 = vadd.f32 %v1291, %v1403
      %1405 = vmatmul.f32.gmra.mxu0 %v608
      %v1406 = vpop.f32.mrf.mxu0
      %v1407 = vadd.f32 %v1294, %v1406
      %1408 = vmatmul.f32.gmra.mxu0 %v609
      %v1409 = vpop.f32.mrf.mxu0
      %v1410 = vadd.f32 %v1297, %v1409
      %1411 = vmatmul.f32.gmra.mxu0 %v610
      %v1412 = vpop.f32.mrf.mxu0
      %v1413 = vadd.f32 %v1300, %v1412
      %1414 = vmatmul.f32.gmra.mxu0 %v611
      %v1415 = vpop.f32.mrf.mxu0
      %v1416 = vadd.f32 %v1303, %v1415
      %1417 = vmatmul.f32.gmra.mxu0 %v612
      %v1418 = vpop.f32.mrf.mxu0
      %v1419 = vadd.f32 %v1306, %v1418
      %1420 = vmatmul.f32.gmra.mxu0 %v613
      %v1421 = vpop.f32.mrf.mxu0
      %v1422 = vadd.f32 %v1309, %v1421
      %1423 = vmatmul.f32.gmra.mxu0 %v614
      %v1424 = vpop.f32.mrf.mxu0
      %v1425 = vadd.f32 %v1312, %v1424
      %1426 = vmatmul.f32.gmra.mxu0 %v615
      %v1427 = vpop.f32.mrf.mxu0
      %v1428 = vadd.f32 %v1315, %v1427
      %1429 = vmatmul.f32.gmra.mxu0 %v616
      %v1430 = vpop.f32.mrf.mxu0
      %v1431 = vadd.f32 %v1318, %v1430
      %1432 = vmatmul.f32.gmra.mxu0 %v617
      %v1433 = vpop.f32.mrf.mxu0
      %v1434 = vadd.f32 %v1321, %v1433
      %1435 = vmatmul.f32.gmra.mxu0 %v618
      %v1436 = vpop.f32.mrf.mxu0
      %v1437 = vadd.f32 %v1324, %v1436
      %1438 = vmatmul.f32.gmra.mxu0 %v619
      %v1439 = vpop.f32.mrf.mxu0
      %v1440 = vadd.f32 %v1327, %v1439
      %1441 = vmatmul.f32.gmra.mxu0 %v620
      %v1442 = vpop.f32.mrf.mxu0
      %v1443 = vadd.f32 %v1330, %v1442
      %1444 = vmatmul.f32.gmra.mxu0 %v621
      %v1445 = vpop.f32.mrf.mxu0
      %v1446 = vadd.f32 %v1333, %v1445
      %1447 = vmatmul.f32.gmra.mxu0 %v622
      %v1448 = vpop.f32.mrf.mxu0
      %v1449 = vadd.f32 %v1336, %v1448
      %1450 = vmatmul.f32.gmra.mxu0 %v623
      %v1451 = vpop.f32.mrf.mxu0
      %v1452 = vadd.f32 %v1339, %v1451
      %1453 = vmatmul.f32.gmra.mxu0 %v624
      %v1454 = vpop.f32.mrf.mxu0
      %v1455 = vadd.f32 %v1342, %v1454
      %1456 = vmatmul.f32.gmra.mxu0 %v625
      %v1457 = vpop.f32.mrf.mxu0
      %v1458 = vadd.f32 %v1345, %v1457
      %1459 = vmatmul.f32.gmra.mxu0 %v626
      %v1460 = vpop.f32.mrf.mxu0
      %v1461 = vadd.f32 %v1348, %v1460
      %1462 = vmatmul.f32.gmra.mxu0 %v627
      %v1463 = vpop.f32.mrf.mxu0
      %v1464 = vadd.f32 %v1351, %v1463
      %1465 = vdwg.mxu0
      %1466 = vmatpush.msra.mxu0 %v852
      %1467 = vmatpush.msra.mxu0 %v851
      %1468 = vmatpush.msra.mxu0 %v850
      %1469 = vmatpush.msra.mxu0 %v849
      %1470 = vmatpush.msra.mxu0 %v848
      %1471 = vmatpush.msra.mxu0 %v847
      %1472 = vmatpush.msra.mxu0 %v846
      %1473 = vmatpush.msra.mxu0 %v845
      %1474 = vmatpush.msra.mxu0 %v844
      %1475 = vmatpush.msra.mxu0 %v843
      %1476 = vmatpush.msra.mxu0 %v842
      %1477 = vmatpush.msra.mxu0 %v841
      %1478 = vmatpush.msra.mxu0 %v840
      %1479 = vmatpush.msra.mxu0 %v839
      %1480 = vmatpush.msra.mxu0 %v838
      %1481 = vmatpush.msra.mxu0 %v837
      %1482 = vmatmul.f32.gmra.mxu0 %v628
      %v1483 = vpop.f32.mrf.mxu0
      %v1484 = vadd.f32 %v1371, %v1483
      %1485 = vmatmul.f32.gmra.mxu0 %v629
      %v1486 = vpop.f32.mrf.mxu0
      %v1487 = vadd.f32 %v1374, %v1486
      %1488 = vmatmul.f32.gmra.mxu0 %v630
      %v1489 = vpop.f32.mrf.mxu0
      %v1490 = vadd.f32 %v1377, %v1489
      %1491 = vmatmul.f32.gmra.mxu0 %v631
      %v1492 = vpop.f32.mrf.mxu0
      %v1493 = vadd.f32 %v1380, %v1492
      %1494 = vmatmul.f32.gmra.mxu0 %v632
      %v1495 = vpop.f32.mrf.mxu0
      %v1496 = vadd.f32 %v1383, %v1495
      %1497 = vmatmul.f32.gmra.mxu0 %v633
      %v1498 = vpop.f32.mrf.mxu0
      %v1499 = vadd.f32 %v1386, %v1498
      %1500 = vmatmul.f32.gmra.mxu0 %v634
      %v1501 = vpop.f32.mrf.mxu0
      %v1502 = vadd.f32 %v1389, %v1501
      %1503 = vmatmul.f32.gmra.mxu0 %v635
      %v1504 = vpop.f32.mrf.mxu0
      %v1505 = vadd.f32 %v1392, %v1504
      %1506 = vmatmul.f32.gmra.mxu0 %v636
      %v1507 = vpop.f32.mrf.mxu0
      %v1508 = vadd.f32 %v1395, %v1507
      %1509 = vmatmul.f32.gmra.mxu0 %v637
      %v1510 = vpop.f32.mrf.mxu0
      %v1511 = vadd.f32 %v1398, %v1510
      %1512 = vmatmul.f32.gmra.mxu0 %v638
      %v1513 = vpop.f32.mrf.mxu0
      %v1514 = vadd.f32 %v1401, %v1513
      %1515 = vmatmul.f32.gmra.mxu0 %v639
      %v1516 = vpop.f32.mrf.mxu0
      %v1517 = vadd.f32 %v1404, %v1516
      %1518 = vmatmul.f32.gmra.mxu0 %v640
      %v1519 = vpop.f32.mrf.mxu0
      %v1520 = vadd.f32 %v1407, %v1519
      %1521 = vmatmul.f32.gmra.mxu0 %v641
      %v1522 = vpop.f32.mrf.mxu0
      %v1523 = vadd.f32 %v1410, %v1522
      %1524 = vmatmul.f32.gmra.mxu0 %v642
      %v1525 = vpop.f32.mrf.mxu0
      %v1526 = vadd.f32 %v1413, %v1525
      %1527 = vmatmul.f32.gmra.mxu0 %v643
      %v1528 = vpop.f32.mrf.mxu0
      %v1529 = vadd.f32 %v1416, %v1528
      %1530 = vmatmul.f32.gmra.mxu0 %v644
      %v1531 = vpop.f32.mrf.mxu0
      %v1532 = vadd.f32 %v1419, %v1531
      %1533 = vmatmul.f32.gmra.mxu0 %v645
      %v1534 = vpop.f32.mrf.mxu0
      %v1535 = vadd.f32 %v1422, %v1534
      %1536 = vmatmul.f32.gmra.mxu0 %v646
      %v1537 = vpop.f32.mrf.mxu0
      %v1538 = vadd.f32 %v1425, %v1537
      %1539 = vmatmul.f32.gmra.mxu0 %v647
      %v1540 = vpop.f32.mrf.mxu0
      %v1541 = vadd.f32 %v1428, %v1540
      %1542 = vmatmul.f32.gmra.mxu0 %v648
      %v1543 = vpop.f32.mrf.mxu0
      %v1544 = vadd.f32 %v1431, %v1543
      %1545 = vmatmul.f32.gmra.mxu0 %v649
      %v1546 = vpop.f32.mrf.mxu0
      %v1547 = vadd.f32 %v1434, %v1546
      %1548 = vmatmul.f32.gmra.mxu0 %v650
      %v1549 = vpop.f32.mrf.mxu0
      %v1550 = vadd.f32 %v1437, %v1549
      %1551 = vmatmul.f32.gmra.mxu0 %v651
      %v1552 = vpop.f32.mrf.mxu0
      %v1553 = vadd.f32 %v1440, %v1552
      %1554 = vmatmul.f32.gmra.mxu0 %v652
      %v1555 = vpop.f32.mrf.mxu0
      %v1556 = vadd.f32 %v1443, %v1555
      %1557 = vmatmul.f32.gmra.mxu0 %v653
      %v1558 = vpop.f32.mrf.mxu0
      %v1559 = vadd.f32 %v1446, %v1558
      %1560 = vmatmul.f32.gmra.mxu0 %v654
      %v1561 = vpop.f32.mrf.mxu0
      %v1562 = vadd.f32 %v1449, %v1561
      %1563 = vmatmul.f32.gmra.mxu0 %v655
      %v1564 = vpop.f32.mrf.mxu0
      %v1565 = vadd.f32 %v1452, %v1564
      %1566 = vmatmul.f32.gmra.mxu0 %v656
      %v1567 = vpop.f32.mrf.mxu0
      %v1568 = vadd.f32 %v1455, %v1567
      %1569 = vmatmul.f32.gmra.mxu0 %v657
      %v1570 = vpop.f32.mrf.mxu0
      %v1571 = vadd.f32 %v1458, %v1570
      %1572 = vmatmul.f32.gmra.mxu0 %v658
      %v1573 = vpop.f32.mrf.mxu0
      %v1574 = vadd.f32 %v1461, %v1573
      %1575 = vmatmul.f32.gmra.mxu0 %v659
      %v1576 = vpop.f32.mrf.mxu0
      %v1577 = vadd.f32 %v1464, %v1576
      %1578 = vdwg.mxu0
      %1579 = vmatpush.msra.mxu0 %v868
      %1580 = vmatpush.msra.mxu0 %v867
      %1581 = vmatpush.msra.mxu0 %v866
      %1582 = vmatpush.msra.mxu0 %v865
      %1583 = vmatpush.msra.mxu0 %v864
      %1584 = vmatpush.msra.mxu0 %v863
      %1585 = vmatpush.msra.mxu0 %v862
      %1586 = vmatpush.msra.mxu0 %v861
      %1587 = vmatpush.msra.mxu0 %v860
      %1588 = vmatpush.msra.mxu0 %v859
      %1589 = vmatpush.msra.mxu0 %v858
      %1590 = vmatpush.msra.mxu0 %v857
      %1591 = vmatpush.msra.mxu0 %v856
      %1592 = vmatpush.msra.mxu0 %v855
      %1593 = vmatpush.msra.mxu0 %v854
      %1594 = vmatpush.msra.mxu0 %v853
      %1595 = vmatmul.f32.gmra.mxu0 %v661
      %v1596 = vpop.f32.mrf.mxu0
      %v1597 = vadd.f32 %v1484, %v1596
      %1598 = vmatmul.f32.gmra.mxu0 %v662
      %v1599 = vpop.f32.mrf.mxu0
      %v1600 = vadd.f32 %v1487, %v1599
      %1601 = vmatmul.f32.gmra.mxu0 %v663
      %v1602 = vpop.f32.mrf.mxu0
      %v1603 = vadd.f32 %v1490, %v1602
      %1604 = vmatmul.f32.gmra.mxu0 %v664
      %v1605 = vpop.f32.mrf.mxu0
      %v1606 = vadd.f32 %v1493, %v1605
      %1607 = vmatmul.f32.gmra.mxu0 %v665
      %v1608 = vpop.f32.mrf.mxu0
      %v1609 = vadd.f32 %v1496, %v1608
      %1610 = vmatmul.f32.gmra.mxu0 %v666
      %v1611 = vpop.f32.mrf.mxu0
      %v1612 = vadd.f32 %v1499, %v1611
      %1613 = vmatmul.f32.gmra.mxu0 %v667
      %v1614 = vpop.f32.mrf.mxu0
      %v1615 = vadd.f32 %v1502, %v1614
      %1616 = vmatmul.f32.gmra.mxu0 %v668
      %v1617 = vpop.f32.mrf.mxu0
      %v1618 = vadd.f32 %v1505, %v1617
      %1619 = vmatmul.f32.gmra.mxu0 %v669
      %v1620 = vpop.f32.mrf.mxu0
      %v1621 = vadd.f32 %v1508, %v1620
      %1622 = vmatmul.f32.gmra.mxu0 %v670
      %v1623 = vpop.f32.mrf.mxu0
      %v1624 = vadd.f32 %v1511, %v1623
      %1625 = vmatmul.f32.gmra.mxu0 %v671
      %v1626 = vpop.f32.mrf.mxu0
      %v1627 = vadd.f32 %v1514, %v1626
      %1628 = vmatmul.f32.gmra.mxu0 %v672
      %v1629 = vpop.f32.mrf.mxu0
      %v1630 = vadd.f32 %v1517, %v1629
      %1631 = vmatmul.f32.gmra.mxu0 %v673
      %v1632 = vpop.f32.mrf.mxu0
      %v1633 = vadd.f32 %v1520, %v1632
      %1634 = vmatmul.f32.gmra.mxu0 %v674
      %v1635 = vpop.f32.mrf.mxu0
      %v1636 = vadd.f32 %v1523, %v1635
      %1637 = vmatmul.f32.gmra.mxu0 %v675
      %v1638 = vpop.f32.mrf.mxu0
      %v1639 = vadd.f32 %v1526, %v1638
      %1640 = vmatmul.f32.gmra.mxu0 %v676
      %v1641 = vpop.f32.mrf.mxu0
      %v1642 = vadd.f32 %v1529, %v1641
      %1643 = vmatmul.f32.gmra.mxu0 %v677
      %v1644 = vpop.f32.mrf.mxu0
      %v1645 = vadd.f32 %v1532, %v1644
      %1646 = vmatmul.f32.gmra.mxu0 %v678
      %v1647 = vpop.f32.mrf.mxu0
      %v1648 = vadd.f32 %v1535, %v1647
      %1649 = vmatmul.f32.gmra.mxu0 %v679
      %v1650 = vpop.f32.mrf.mxu0
      %v1651 = vadd.f32 %v1538, %v1650
      %1652 = vmatmul.f32.gmra.mxu0 %v680
      %v1653 = vpop.f32.mrf.mxu0
      %v1654 = vadd.f32 %v1541, %v1653
      %1655 = vmatmul.f32.gmra.mxu0 %v681
      %v1656 = vpop.f32.mrf.mxu0
      %v1657 = vadd.f32 %v1544, %v1656
      %1658 = vmatmul.f32.gmra.mxu0 %v682
      %v1659 = vpop.f32.mrf.mxu0
      %v1660 = vadd.f32 %v1547, %v1659
      %1661 = vmatmul.f32.gmra.mxu0 %v683
      %v1662 = vpop.f32.mrf.mxu0
      %v1663 = vadd.f32 %v1550, %v1662
      %1664 = vmatmul.f32.gmra.mxu0 %v684
      %v1665 = vpop.f32.mrf.mxu0
      %v1666 = vadd.f32 %v1553, %v1665
      %1667 = vmatmul.f32.gmra.mxu0 %v685
      %v1668 = vpop.f32.mrf.mxu0
      %v1669 = vadd.f32 %v1556, %v1668
      %1670 = vmatmul.f32.gmra.mxu0 %v686
      %v1671 = vpop.f32.mrf.mxu0
      %v1672 = vadd.f32 %v1559, %v1671
      %1673 = vmatmul.f32.gmra.mxu0 %v687
      %v1674 = vpop.f32.mrf.mxu0
      %v1675 = vadd.f32 %v1562, %v1674
      %1676 = vmatmul.f32.gmra.mxu0 %v688
      %v1677 = vpop.f32.mrf.mxu0
      %v1678 = vadd.f32 %v1565, %v1677
      %1679 = vmatmul.f32.gmra.mxu0 %v689
      %v1680 = vpop.f32.mrf.mxu0
      %v1681 = vadd.f32 %v1568, %v1680
      %1682 = vmatmul.f32.gmra.mxu0 %v690
      %v1683 = vpop.f32.mrf.mxu0
      %v1684 = vadd.f32 %v1571, %v1683
      %1685 = vmatmul.f32.gmra.mxu0 %v691
      %v1686 = vpop.f32.mrf.mxu0
      %v1687 = vadd.f32 %v1574, %v1686
      %1688 = vmatmul.f32.gmra.mxu0 %v692
      %v1689 = vpop.f32.mrf.mxu0
      %v1690 = vadd.f32 %v1577, %v1689
      %1691 = vdwg.mxu0
      %1692 = vmatpush.msra.mxu0 %v884
      %1693 = vmatpush.msra.mxu0 %v883
      %1694 = vmatpush.msra.mxu0 %v882
      %1695 = vmatpush.msra.mxu0 %v881
      %1696 = vmatpush.msra.mxu0 %v880
      %1697 = vmatpush.msra.mxu0 %v879
      %1698 = vmatpush.msra.mxu0 %v878
      %1699 = vmatpush.msra.mxu0 %v877
      %1700 = vmatpush.msra.mxu0 %v876
      %1701 = vmatpush.msra.mxu0 %v875
      %1702 = vmatpush.msra.mxu0 %v874
      %1703 = vmatpush.msra.mxu0 %v873
      %1704 = vmatpush.msra.mxu0 %v872
      %1705 = vmatpush.msra.mxu0 %v871
      %1706 = vmatpush.msra.mxu0 %v870
      %1707 = vmatpush.msra.mxu0 %v869
      %1708 = vmatmul.f32.gmra.mxu0 %v693
      %v1709 = vpop.f32.mrf.mxu0
      %v1710 = vadd.f32 %v1597, %v1709
      %1711 = vmatmul.f32.gmra.mxu0 %v694
      %v1712 = vpop.f32.mrf.mxu0
      %v1713 = vadd.f32 %v1600, %v1712
      %1714 = vmatmul.f32.gmra.mxu0 %v695
      %v1715 = vpop.f32.mrf.mxu0
      %v1716 = vadd.f32 %v1603, %v1715
      %1717 = vmatmul.f32.gmra.mxu0 %v696
      %v1718 = vpop.f32.mrf.mxu0
      %v1719 = vadd.f32 %v1606, %v1718
      %1720 = vmatmul.f32.gmra.mxu0 %v697
      %v1721 = vpop.f32.mrf.mxu0
      %v1722 = vadd.f32 %v1609, %v1721
      %1723 = vmatmul.f32.gmra.mxu0 %v698
      %v1724 = vpop.f32.mrf.mxu0
      %v1725 = vadd.f32 %v1612, %v1724
      %1726 = vmatmul.f32.gmra.mxu0 %v699
      %v1727 = vpop.f32.mrf.mxu0
      %v1728 = vadd.f32 %v1615, %v1727
      %1729 = vmatmul.f32.gmra.mxu0 %v700
      %v1730 = vpop.f32.mrf.mxu0
      %v1731 = vadd.f32 %v1618, %v1730
      %1732 = vmatmul.f32.gmra.mxu0 %v701
      %v1733 = vpop.f32.mrf.mxu0
      %v1734 = vadd.f32 %v1621, %v1733
      %1735 = vmatmul.f32.gmra.mxu0 %v702
      %v1736 = vpop.f32.mrf.mxu0
      %v1737 = vadd.f32 %v1624, %v1736
      %1738 = vmatmul.f32.gmra.mxu0 %v703
      %v1739 = vpop.f32.mrf.mxu0
      %v1740 = vadd.f32 %v1627, %v1739
      %1741 = vmatmul.f32.gmra.mxu0 %v704
      %v1742 = vpop.f32.mrf.mxu0
      %v1743 = vadd.f32 %v1630, %v1742
      %1744 = vmatmul.f32.gmra.mxu0 %v705
      %v1745 = vpop.f32.mrf.mxu0
      %v1746 = vadd.f32 %v1633, %v1745
      %1747 = vmatmul.f32.gmra.mxu0 %v706
      %v1748 = vpop.f32.mrf.mxu0
      %v1749 = vadd.f32 %v1636, %v1748
      %1750 = vmatmul.f32.gmra.mxu0 %v707
      %v1751 = vpop.f32.mrf.mxu0
      %v1752 = vadd.f32 %v1639, %v1751
      %1753 = vmatmul.f32.gmra.mxu0 %v708
      %v1754 = vpop.f32.mrf.mxu0
      %v1755 = vadd.f32 %v1642, %v1754
      %1756 = vmatmul.f32.gmra.mxu0 %v709
      %v1757 = vpop.f32.mrf.mxu0
      %v1758 = vadd.f32 %v1645, %v1757
      %1759 = vmatmul.f32.gmra.mxu0 %v710
      %v1760 = vpop.f32.mrf.mxu0
      %v1761 = vadd.f32 %v1648, %v1760
      %1762 = vmatmul.f32.gmra.mxu0 %v711
      %v1763 = vpop.f32.mrf.mxu0
      %v1764 = vadd.f32 %v1651, %v1763
      %1765 = vmatmul.f32.gmra.mxu0 %v712
      %v1766 = vpop.f32.mrf.mxu0
      %v1767 = vadd.f32 %v1654, %v1766
      %1768 = vmatmul.f32.gmra.mxu0 %v713
      %v1769 = vpop.f32.mrf.mxu0
      %v1770 = vadd.f32 %v1657, %v1769
      %1771 = vmatmul.f32.gmra.mxu0 %v714
      %v1772 = vpop.f32.mrf.mxu0
      %v1773 = vadd.f32 %v1660, %v1772
      %1774 = vmatmul.f32.gmra.mxu0 %v715
      %v1775 = vpop.f32.mrf.mxu0
      %v1776 = vadd.f32 %v1663, %v1775
      %1777 = vmatmul.f32.gmra.mxu0 %v716
      %v1778 = vpop.f32.mrf.mxu0
      %v1779 = vadd.f32 %v1666, %v1778
      %1780 = vmatmul.f32.gmra.mxu0 %v717
      %v1781 = vpop.f32.mrf.mxu0
      %v1782 = vadd.f32 %v1669, %v1781
      %1783 = vmatmul.f32.gmra.mxu0 %v718
      %v1784 = vpop.f32.mrf.mxu0
      %v1785 = vadd.f32 %v1672, %v1784
      %1786 = vmatmul.f32.gmra.mxu0 %v719
      %v1787 = vpop.f32.mrf.mxu0
      %v1788 = vadd.f32 %v1675, %v1787
      %1789 = vmatmul.f32.gmra.mxu0 %v720
      %v1790 = vpop.f32.mrf.mxu0
      %v1791 = vadd.f32 %v1678, %v1790
      %1792 = vmatmul.f32.gmra.mxu0 %v721
      %v1793 = vpop.f32.mrf.mxu0
      %v1794 = vadd.f32 %v1681, %v1793
      %1795 = vmatmul.f32.gmra.mxu0 %v722
      %v1796 = vpop.f32.mrf.mxu0
      %v1797 = vadd.f32 %v1684, %v1796
      %1798 = vmatmul.f32.gmra.mxu0 %v723
      %v1799 = vpop.f32.mrf.mxu0
      %v1800 = vadd.f32 %v1687, %v1799
      %1801 = vmatmul.f32.gmra.mxu0 %v724
      %v1802 = vpop.f32.mrf.mxu0
      %v1803 = vadd.f32 %v1690, %v1802
      %1804 = vdwg.mxu0
      %1805 = vmatpush.msra.mxu0 %v900
      %1806 = vmatpush.msra.mxu0 %v899
      %1807 = vmatpush.msra.mxu0 %v898
      %1808 = vmatpush.msra.mxu0 %v897
      %1809 = vmatpush.msra.mxu0 %v896
      %1810 = vmatpush.msra.mxu0 %v895
      %1811 = vmatpush.msra.mxu0 %v894
      %1812 = vmatpush.msra.mxu0 %v893
      %1813 = vmatpush.msra.mxu0 %v892
      %1814 = vmatpush.msra.mxu0 %v891
      %1815 = vmatpush.msra.mxu0 %v890
      %1816 = vmatpush.msra.mxu0 %v889
      %1817 = vmatpush.msra.mxu0 %v888
      %1818 = vmatpush.msra.mxu0 %v887
      %1819 = vmatpush.msra.mxu0 %v886
      %1820 = vmatpush.msra.mxu0 %v885
      %1821 = vmatmul.f32.gmra.mxu0 %v725
      %v1822 = vpop.f32.mrf.mxu0
      %v1823 = vadd.f32 %v1710, %v1822
      %1824 = vmatmul.f32.gmra.mxu0 %v726
      %v1825 = vpop.f32.mrf.mxu0
      %v1826 = vadd.f32 %v1713, %v1825
      %1827 = vmatmul.f32.gmra.mxu0 %v727
      %v1828 = vpop.f32.mrf.mxu0
      %v1829 = vadd.f32 %v1716, %v1828
      %1830 = vmatmul.f32.gmra.mxu0 %v728
      %v1831 = vpop.f32.mrf.mxu0
      %v1832 = vadd.f32 %v1719, %v1831
      %1833 = vmatmul.f32.gmra.mxu0 %v729
      %v1834 = vpop.f32.mrf.mxu0
      %v1835 = vadd.f32 %v1722, %v1834
      %1836 = vmatmul.f32.gmra.mxu0 %v730
      %v1837 = vpop.f32.mrf.mxu0
      %v1838 = vadd.f32 %v1725, %v1837
      %1839 = vmatmul.f32.gmra.mxu0 %v731
      %v1840 = vpop.f32.mrf.mxu0
      %v1841 = vadd.f32 %v1728, %v1840
      %1842 = vmatmul.f32.gmra.mxu0 %v732
      %v1843 = vpop.f32.mrf.mxu0
      %v1844 = vadd.f32 %v1731, %v1843
      %1845 = vmatmul.f32.gmra.mxu0 %v733
      %v1846 = vpop.f32.mrf.mxu0
      %v1847 = vadd.f32 %v1734, %v1846
      %1848 = vmatmul.f32.gmra.mxu0 %v734
      %v1849 = vpop.f32.mrf.mxu0
      %v1850 = vadd.f32 %v1737, %v1849
      %1851 = vmatmul.f32.gmra.mxu0 %v735
      %v1852 = vpop.f32.mrf.mxu0
      %v1853 = vadd.f32 %v1740, %v1852
      %1854 = vmatmul.f32.gmra.mxu0 %v736
      %v1855 = vpop.f32.mrf.mxu0
      %v1856 = vadd.f32 %v1743, %v1855
      %1857 = vmatmul.f32.gmra.mxu0 %v737
      %v1858 = vpop.f32.mrf.mxu0
      %v1859 = vadd.f32 %v1746, %v1858
      %1860 = vmatmul.f32.gmra.mxu0 %v738
      %v1861 = vpop.f32.mrf.mxu0
      %v1862 = vadd.f32 %v1749, %v1861
      %1863 = vmatmul.f32.gmra.mxu0 %v739
      %v1864 = vpop.f32.mrf.mxu0
      %v1865 = vadd.f32 %v1752, %v1864
      %1866 = vmatmul.f32.gmra.mxu0 %v740
      %v1867 = vpop.f32.mrf.mxu0
      %v1868 = vadd.f32 %v1755, %v1867
      %1869 = vmatmul.f32.gmra.mxu0 %v741
      %v1870 = vpop.f32.mrf.mxu0
      %v1871 = vadd.f32 %v1758, %v1870
      %1872 = vmatmul.f32.gmra.mxu0 %v742
      %v1873 = vpop.f32.mrf.mxu0
      %v1874 = vadd.f32 %v1761, %v1873
      %1875 = vmatmul.f32.gmra.mxu0 %v743
      %v1876 = vpop.f32.mrf.mxu0
      %v1877 = vadd.f32 %v1764, %v1876
      %1878 = vmatmul.f32.gmra.mxu0 %v744
      %v1879 = vpop.f32.mrf.mxu0
      %v1880 = vadd.f32 %v1767, %v1879
      %1881 = vmatmul.f32.gmra.mxu0 %v745
      %v1882 = vpop.f32.mrf.mxu0
      %v1883 = vadd.f32 %v1770, %v1882
      %1884 = vmatmul.f32.gmra.mxu0 %v746
      %v1885 = vpop.f32.mrf.mxu0
      %v1886 = vadd.f32 %v1773, %v1885
      %1887 = vmatmul.f32.gmra.mxu0 %v747
      %v1888 = vpop.f32.mrf.mxu0
      %v1889 = vadd.f32 %v1776, %v1888
      %1890 = vmatmul.f32.gmra.mxu0 %v748
      %v1891 = vpop.f32.mrf.mxu0
      %v1892 = vadd.f32 %v1779, %v1891
      %1893 = vmatmul.f32.gmra.mxu0 %v749
      %v1894 = vpop.f32.mrf.mxu0
      %v1895 = vadd.f32 %v1782, %v1894
      %1896 = vmatmul.f32.gmra.mxu0 %v750
      %v1897 = vpop.f32.mrf.mxu0
      %v1898 = vadd.f32 %v1785, %v1897
      %1899 = vmatmul.f32.gmra.mxu0 %v751
      %v1900 = vpop.f32.mrf.mxu0
      %v1901 = vadd.f32 %v1788, %v1900
      %1902 = vmatmul.f32.gmra.mxu0 %v752
      %v1903 = vpop.f32.mrf.mxu0
      %v1904 = vadd.f32 %v1791, %v1903
      %1905 = vmatmul.f32.gmra.mxu0 %v753
      %v1906 = vpop.f32.mrf.mxu0
      %v1907 = vadd.f32 %v1794, %v1906
      %1908 = vmatmul.f32.gmra.mxu0 %v754
      %v1909 = vpop.f32.mrf.mxu0
      %v1910 = vadd.f32 %v1797, %v1909
      %1911 = vmatmul.f32.gmra.mxu0 %v755
      %v1912 = vpop.f32.mrf.mxu0
      %v1913 = vadd.f32 %v1800, %v1912
      %1914 = vmatmul.f32.gmra.mxu0 %v756
      %v1915 = vpop.f32.mrf.mxu0
      %v1916 = vadd.f32 %v1803, %v1915
      %1917 = vdwg.mxu0
      %v1918 = vld [vmem:[%s239] sm:$0xff]
      %v1919 = vld [vmem:[%s239 + $0x8] sm:$0xff]
      %v1920 = vld [vmem:[%s239 + $0x10] sm:$0xff]
      %v1921 = vld [vmem:[%s239 + $0x18] sm:$0xff]
      %v1922 = vld [vmem:[%s239 + $0x20] sm:$0xff]
      %v1923 = vld [vmem:[%s239 + $0x28] sm:$0xff]
      %v1924 = vld [vmem:[%s239 + $0x30] sm:$0xff]
      %v1925 = vld [vmem:[%s239 + $0x38] sm:$0xff]
      %v1926 = vld [vmem:[%s239 + $0x40] sm:$0xff]
      %v1927 = vld [vmem:[%s239 + $0x48] sm:$0xff]
      %v1928 = vld [vmem:[%s239 + $0x50] sm:$0xff]
      %v1929 = vld [vmem:[%s239 + $0x58] sm:$0xff]
      %v1930 = vld [vmem:[%s239 + $0x60] sm:$0xff]
      %v1931 = vld [vmem:[%s239 + $0x68] sm:$0xff]
      %v1932 = vld [vmem:[%s239 + $0x70] sm:$0xff]
      %v1933 = vld [vmem:[%s239 + $0x78] sm:$0xff]
      %v1934 = vld [vmem:[%s239 + $0x80] sm:$0xff]
      %v1935 = vld [vmem:[%s239 + $0x88] sm:$0xff]
      %v1936 = vld [vmem:[%s239 + $0x90] sm:$0xff]
      %v1937 = vld [vmem:[%s239 + $0x98] sm:$0xff]
      %v1938 = vld [vmem:[%s239 + $0xa0] sm:$0xff]
      %v1939 = vld [vmem:[%s239 + $0xa8] sm:$0xff]
      %v1940 = vld [vmem:[%s239 + $0xb0] sm:$0xff]
      %v1941 = vld [vmem:[%s239 + $0xb8] sm:$0xff]
      %v1942 = vld [vmem:[%s239 + $0xc0] sm:$0xff]
      %v1943 = vld [vmem:[%s239 + $0xc8] sm:$0xff]
      %v1944 = vld [vmem:[%s239 + $0xd0] sm:$0xff]
      %v1945 = vld [vmem:[%s239 + $0xd8] sm:$0xff]
      %v1946 = vld [vmem:[%s239 + $0xe0] sm:$0xff]
      %v1947 = vld [vmem:[%s239 + $0xe8] sm:$0xff]
      %v1948 = vld [vmem:[%s239 + $0xf0] sm:$0xff]
      %v1949 = vld [vmem:[%s239 + $0xf8] sm:$0xff]
      %v1950 = vadd.f32 %v1823, %v1918
      %v1951 = vadd.f32 %v1826, %v1919
      %v1952 = vadd.f32 %v1829, %v1920
      %v1953 = vadd.f32 %v1832, %v1921
      %v1954 = vadd.f32 %v1835, %v1922
      %v1955 = vadd.f32 %v1838, %v1923
      %v1956 = vadd.f32 %v1841, %v1924
      %v1957 = vadd.f32 %v1844, %v1925
      %v1958 = vadd.f32 %v1847, %v1926
      %v1959 = vadd.f32 %v1850, %v1927
      %v1960 = vadd.f32 %v1853, %v1928
      %v1961 = vadd.f32 %v1856, %v1929
      %v1962 = vadd.f32 %v1859, %v1930
      %v1963 = vadd.f32 %v1862, %v1931
      %v1964 = vadd.f32 %v1865, %v1932
      %v1965 = vadd.f32 %v1868, %v1933
      %v1966 = vadd.f32 %v1871, %v1934
      %v1967 = vadd.f32 %v1874, %v1935
      %v1968 = vadd.f32 %v1877, %v1936
      %v1969 = vadd.f32 %v1880, %v1937
      %v1970 = vadd.f32 %v1883, %v1938
      %v1971 = vadd.f32 %v1886, %v1939
      %v1972 = vadd.f32 %v1889, %v1940
      %v1973 = vadd.f32 %v1892, %v1941
      %v1974 = vadd.f32 %v1895, %v1942
      %v1975 = vadd.f32 %v1898, %v1943
      %v1976 = vadd.f32 %v1901, %v1944
      %v1977 = vadd.f32 %v1904, %v1945
      %v1978 = vadd.f32 %v1907, %v1946
      %v1979 = vadd.f32 %v1910, %v1947
      %v1980 = vadd.f32 %v1913, %v1948
      %v1981 = vadd.f32 %v1916, %v1949
      %1982 = vst [vmem:[%s244] sm:$0xff] %v1950
      %1983 = vst [vmem:[%s244 + $0x8] sm:$0xff] %v1951
      %1984 = vst [vmem:[%s244 + $0x10] sm:$0xff] %v1952
      %1985 = vst [vmem:[%s244 + $0x18] sm:$0xff] %v1953
      %1986 = vst [vmem:[%s244 + $0x20] sm:$0xff] %v1954
      %1987 = vst [vmem:[%s244 + $0x28] sm:$0xff] %v1955
      %1988 = vst [vmem:[%s244 + $0x30] sm:$0xff] %v1956
      %1989 = vst [vmem:[%s244 + $0x38] sm:$0xff] %v1957
      %1990 = vst [vmem:[%s244 + $0x40] sm:$0xff] %v1958
      %1991 = vst [vmem:[%s244 + $0x48] sm:$0xff] %v1959
      %1992 = vst [vmem:[%s244 + $0x50] sm:$0xff] %v1960
      %1993 = vst [vmem:[%s244 + $0x58] sm:$0xff] %v1961
      %1994 = vst [vmem:[%s244 + $0x60] sm:$0xff] %v1962
      %1995 = vst [vmem:[%s244 + $0x68] sm:$0xff] %v1963
      %1996 = vst [vmem:[%s244 + $0x70] sm:$0xff] %v1964
      %1997 = vst [vmem:[%s244 + $0x78] sm:$0xff] %v1965
      %1998 = vst [vmem:[%s244 + $0x80] sm:$0xff] %v1966
      %1999 = vst [vmem:[%s244 + $0x88] sm:$0xff] %v1967
      %2000 = vst [vmem:[%s244 + $0x90] sm:$0xff] %v1968
      %2001 = vst [vmem:[%s244 + $0x98] sm:$0xff] %v1969
      %2002 = vst [vmem:[%s244 + $0xa0] sm:$0xff] %v1970
      %2003 = vst [vmem:[%s244 + $0xa8] sm:$0xff] %v1971
      %2004 = vst [vmem:[%s244 + $0xb0] sm:$0xff] %v1972
      %2005 = vst [vmem:[%s244 + $0xb8] sm:$0xff] %v1973
      %2006 = vst [vmem:[%s244 + $0xc0] sm:$0xff] %v1974
      %2007 = vst [vmem:[%s244 + $0xc8] sm:$0xff] %v1975
      %2008 = vst [vmem:[%s244 + $0xd0] sm:$0xff] %v1976
      %2009 = vst [vmem:[%s244 + $0xd8] sm:$0xff] %v1977
      %2010 = vst [vmem:[%s244 + $0xe0] sm:$0xff] %v1978
      %2011 = vst [vmem:[%s244 + $0xe8] sm:$0xff] %v1979
      %2012 = vst [vmem:[%s244 + $0xf0] sm:$0xff] %v1980
      %2013 = vst [vmem:[%s244 + $0xf8] sm:$0xff] %v1981
      %p2014 = scmp.lt.s32.totalorder %s16, 1
      %s2015 = scalar_select %p2014, %s16, 1
      %s2016 = smul.addr %s2015, 32
      %s2017 = smul.addr %s2016, 8
      %s2018 = scalar_lea.vmem %s5, %s2017
      // Predicated region
      $region41: #{base_block_forward.3} parent=39 // pred_check
        %p2019 = pneg %p149
      $region42: #{base_block_forward.3} parent=39 // pred_check_branch
        %2021 = sbr.rel (%p2019) target = $region44
      $region43: #{base_block_forward.3} parent=39 // pred_region
        _
      $region44: #{base_block_forward.3} parent=39 // pred_fallthru
        _
    $region40: #{base_block_forward.3} parent=5 // pred_fallthru
      _
    %p2022 = scmp.le.s32.totalorder 2, %s11
    // Predicated region
    $region45: #{base_block_forward.3} parent=5 // pred_check
      %p2023 = pneg %p2022
    $region46: #{base_block_forward.3} parent=5 // pred_check_branch
      %2025 = sbr.rel (%p2023) target = $region48
    $region47: #{base_block_forward.3} parent=5 // pred_region
      %s2026 = ssub.s32 %s11, 2
      // Predicated region
      $region49: #{base_block_forward.3} parent=47 // pred_check
        %p2027 = pneg %p155
      $region50: #{base_block_forward.3} parent=47 // pred_check_branch
        %2029 = sbr.rel (%p2027) target = $region52
      $region51: #{base_block_forward.3} parent=47 // pred_region
        %p2030 = scmp.lt.s32.totalorder %s17, 1
        %s2031 = scalar_select %p2030, %s17, 1
        %s2032 = smul.addr %s2031, 32
        %s2033 = smul.addr %s2032, 8
        %s2034 = scalar_lea.vmem %s5, %s2033
      $region52: #{base_block_forward.3} parent=47 // pred_fallthru
        _
    $region48: #{base_block_forward.3} parent=5 // pred_fallthru
      _
  $region6: #{base_block_forward.3} parent=0 // loop_footer
    %s15 = sadd.s32 1, %s11
  $region7: #{base_block_forward.3} parent=0 // loop_footer_branch
    %10 = sbr.rel target = $region3
  $region8: #{base_block_forward.3} parent=0 // loop_exit
    _

</llo_original>
